<compile_context>
chip_gen: v7x
topology: tpu7x:2x2x1
jax: 0.10.0
libtpu: 0.0.40
codegen_flags: <defaults>
</compile_context>

<pallas_src>
import functools
import math

import jax
import jax.numpy as jnp
from jax.experimental import pallas as pl
from jax.experimental.pallas import tpu as pltpu

DEFAULT_VMEM_LIMIT = 64 * 1024 * 1024
NEG_INF = -1e30


def _round_up(x, m):
    return ((x + m - 1) // m) * m


def _pad_to(arr, axis, target):
    pad = target - arr.shape[axis]
    if pad == 0:
        return arr
    widths = [(0, 0)] * arr.ndim
    widths[axis] = (0, pad)
    return jnp.pad(arr, widths)


def _erf_poly(z):
    # Abramowitz & Stegun 7.1.26 (|err| < 1.5e-7): matches PyTorch's exact-erf
    # GELU to f32 tolerance using only VPU/EUP-friendly ops (no erf lowering).
    a1, a2, a3, a4, a5 = 0.254829592, -0.284496736, 1.421413741, -1.453152027, 1.061405429
    p = 0.3275911
    sign = jnp.where(z >= 0.0, 1.0, -1.0)
    az = jnp.abs(z)
    t = 1.0 / (1.0 + p * az)
    poly = ((((a5 * t + a4) * t + a3) * t + a2) * t + a1) * t
    return sign * (1.0 - poly * jnp.exp(-az * az))


def _gelu_exact(x):
    return 0.5 * x * (1.0 + _erf_poly(x * 0.7071067811865476))


# --------------------------------------------------------------------------
# Kernel 1: tiled matmul with f32 accumulator (grid = M x N x K)
# --------------------------------------------------------------------------

def _matmul_kernel(x_ref, w_ref, b_ref, o_ref, acc_ref):
    k = pl.program_id(2)

    @pl.when(k == 0)
    def _():
        acc_ref[...] = jnp.zeros_like(acc_ref)

    acc_ref[...] += jnp.dot(x_ref[...], w_ref[...],
                            preferred_element_type=jnp.float32)

    @pl.when(k == pl.num_programs(2) - 1)
    def _():
        o_ref[...] = (acc_ref[...] + b_ref[...].astype(jnp.float32)
                      ).astype(o_ref.dtype)


def pallas_linear(x2d, w, b, *, tm=256, tn=256, tk=512, out_dtype=None):
    """(M, K) @ (K, N) + (N,) with a tiled, software-pipelined MXU kernel."""
    out_dtype = out_dtype or x2d.dtype
    M, K = x2d.shape
    _, N = w.shape

    N_pad = _round_up(N, 128)                      # lane-dense output columns
    tn_eff = math.gcd(min(tn, N_pad), N_pad)
    tm_eff = min(tm, _round_up(M, 8))
    M_pad = _round_up(M, tm_eff)
    tk_eff = math.gcd(min(tk, K), K) if K % 128 == 0 else K

    xp = _pad_to(x2d, 0, M_pad)
    wp = _pad_to(w, 1, N_pad)
    bp = _pad_to(b.reshape(1, N), 1, N_pad)

    grid = (M_pad // tm_eff, N_pad // tn_eff, K // tk_eff)
    itemsize = x2d.dtype.itemsize
    out = pl.pallas_call(
        _matmul_kernel,
        out_shape=jax.ShapeDtypeStruct((M_pad, N_pad), out_dtype),
        grid=grid,
        in_specs=[pl.BlockSpec((tm_eff, tk_eff), lambda i, j, k: (i, k)),
                  pl.BlockSpec((tk_eff, tn_eff), lambda i, j, k: (k, j)),
                  pl.BlockSpec((1, tn_eff), lambda i, j, k: (0, j))],
        out_specs=pl.BlockSpec((tm_eff, tn_eff), lambda i, j, k: (i, j)),
        scratch_shapes=[pltpu.VMEM((tm_eff, tn_eff), jnp.float32)],
        compiler_params=pltpu.CompilerParams(
            dimension_semantics=("parallel", "parallel", "arbitrary"),
            vmem_limit_bytes=DEFAULT_VMEM_LIMIT),
        cost_estimate=pl.CostEstimate(
            flops=2 * M_pad * N_pad * K,
            transcendentals=0,
            bytes_accessed=(M_pad * K + K * N_pad + M_pad * N_pad) * itemsize),
    )(xp, wp, bp)
    return out[:M, :N]


# --------------------------------------------------------------------------
# Kernel 2: fused LayerNorm + matmul (grid = M x N; LN result cached in VMEM
#           scratch and reused across the N-tile axis)
# --------------------------------------------------------------------------

def _ln_linear_kernel(x_ref, g_ref, bt_ref, w_ref, b_ref, o_ref, xn_ref, *, eps):
    j = pl.program_id(1)

    @pl.when(j == 0)
    def _():
        x = x_ref[...].astype(jnp.float32)
        mu = jnp.mean(x, axis=-1, keepdims=True)
        var = jnp.mean(jnp.square(x - mu), axis=-1, keepdims=True)
        xn = (x - mu) * jax.lax.rsqrt(var + eps)
        xn = xn * g_ref[...].astype(jnp.float32) + bt_ref[...].astype(jnp.float32)
        xn_ref[...] = xn.astype(xn_ref.dtype)

    acc = jnp.dot(xn_ref[...], w_ref[...], preferred_element_type=jnp.float32)
    o_ref[...] = (acc + b_ref[...].astype(jnp.float32)).astype(o_ref.dtype)


def pallas_ln_linear(x2d, gamma, beta, w, b, *, eps=1e-5, tm=256, tn=256,
                     out_dtype=None):
    out_dtype = out_dtype or x2d.dtype
    M, K = x2d.shape
    _, N = w.shape
    N_pad = _round_up(N, 128)
    tn_eff = math.gcd(min(tn, N_pad), N_pad)
    tm_eff = min(tm, _round_up(M, 8))
    M_pad = _round_up(M, tm_eff)

    xp = _pad_to(x2d, 0, M_pad)
    wp = _pad_to(w, 1, N_pad)
    bp = _pad_to(b.reshape(1, N), 1, N_pad)

    grid = (M_pad // tm_eff, N_pad // tn_eff)
    itemsize = x2d.dtype.itemsize
    out = pl.pallas_call(
        functools.partial(_ln_linear_kernel, eps=eps),
        out_shape=jax.ShapeDtypeStruct((M_pad, N_pad), out_dtype),
        grid=grid,
        in_specs=[pl.BlockSpec((tm_eff, K), lambda i, j: (i, 0)),
                  pl.BlockSpec((1, K), lambda i, j: (0, 0)),
                  pl.BlockSpec((1, K), lambda i, j: (0, 0)),
                  pl.BlockSpec((K, tn_eff), lambda i, j: (0, j)),
                  pl.BlockSpec((1, tn_eff), lambda i, j: (0, j))],
        out_specs=pl.BlockSpec((tm_eff, tn_eff), lambda i, j: (i, j)),
        scratch_shapes=[pltpu.VMEM((tm_eff, K), w.dtype)],
        compiler_params=pltpu.CompilerParams(
            # N axis is "arbitrary" so the cached LN tile (scratch) is valid
            # across column tiles of the same row tile.
            dimension_semantics=("parallel", "arbitrary"),
            vmem_limit_bytes=DEFAULT_VMEM_LIMIT),
        cost_estimate=pl.CostEstimate(
            flops=2 * M_pad * N_pad * K,
            transcendentals=0,
            bytes_accessed=(M_pad * K + K * N_pad + M_pad * N_pad) * itemsize),
    )(xp, gamma.reshape(1, K), beta.reshape(1, K), wp, bp)
    return out[:M, :N]


# --------------------------------------------------------------------------
# Kernel 3: matmul + bias + residual add (attention output projection)
# --------------------------------------------------------------------------

def _linear_res_kernel(x_ref, w_ref, b_ref, r_ref, o_ref):
    acc = jnp.dot(x_ref[...], w_ref[...], preferred_element_type=jnp.float32)
    acc = acc + b_ref[...].astype(jnp.float32) + r_ref[...].astype(jnp.float32)
    o_ref[...] = acc.astype(o_ref.dtype)


def pallas_linear_residual(x2d, w, b, residual, *, tm=256, out_dtype=None):
    out_dtype = out_dtype or residual.dtype
    M, K = x2d.shape
    _, N = w.shape
    tm_eff = min(tm, _round_up(M, 8))
    M_pad = _round_up(M, tm_eff)
    xp = _pad_to(x2d, 0, M_pad)
    rp = _pad_to(residual, 0, M_pad)
    itemsize = x2d.dtype.itemsize
    out = pl.pallas_call(
        _linear_res_kernel,
        out_shape=jax.ShapeDtypeStruct((M_pad, N), out_dtype),
        grid=(M_pad // tm_eff,),
        in_specs=[pl.BlockSpec((tm_eff, K), lambda i: (i, 0)),
                  pl.BlockSpec((K, N), lambda i: (0, 0)),
                  pl.BlockSpec((1, N), lambda i: (0, 0)),
                  pl.BlockSpec((tm_eff, N), lambda i: (i, 0))],
        out_specs=pl.BlockSpec((tm_eff, N), lambda i: (i, 0)),
        compiler_params=pltpu.CompilerParams(
            dimension_semantics=("parallel",),
            vmem_limit_bytes=DEFAULT_VMEM_LIMIT),
        cost_estimate=pl.CostEstimate(
            flops=2 * M_pad * N * K,
            transcendentals=0,
            bytes_accessed=(M_pad * K + K * N + 2 * M_pad * N) * itemsize),
    )(xp, w, b.reshape(1, N), rp)
    return out[:M]


# --------------------------------------------------------------------------
# Kernel 4: fused LayerNorm + fc1 + GELU + fc2 + residual (transformer MLP),
#           tiled over the intermediate F axis with an f32 accumulator and
#           the LN'd activations cached in VMEM scratch.
# --------------------------------------------------------------------------

def _ln_mlp_res_kernel(x_ref, g_ref, bt_ref, w1_ref, b1_ref, w2_ref, b2_ref,
                       r_ref, o_ref, xn_ref, acc_ref, *, eps):
    fj = pl.program_id(1)

    @pl.when(fj == 0)
    def _():
        x = x_ref[...].astype(jnp.float32)
        mu = jnp.mean(x, axis=-1, keepdims=True)
        var = jnp.mean(jnp.square(x - mu), axis=-1, keepdims=True)
        xn = (x - mu) * jax.lax.rsqrt(var + eps)
        xn = xn * g_ref[...].astype(jnp.float32) + bt_ref[...].astype(jnp.float32)
        xn_ref[...] = xn.astype(xn_ref.dtype)
        acc_ref[...] = jnp.zeros_like(acc_ref)

    h = jnp.dot(xn_ref[...], w1_ref[...], preferred_element_type=jnp.float32)
    h = _gelu_exact(h + b1_ref[...].astype(jnp.float32))
    acc_ref[...] += jnp.dot(h.astype(w2_ref.dtype), w2_ref[...],
                            preferred_element_type=jnp.float32)

    @pl.when(fj == pl.num_programs(1) - 1)
    def _():
        o = (acc_ref[...] + b2_ref[...].astype(jnp.float32)
             + r_ref[...].astype(jnp.float32))
        o_ref[...] = o.astype(o_ref.dtype)


def pallas_ln_mlp_residual(x2d, gamma, beta, w1, b1, w2, b2, residual, *,
                           eps=1e-5, tm=256, tf=512, out_dtype=None):
    out_dtype = out_dtype or residual.dtype
    M, D = x2d.shape
    F = w1.shape[1]
    N = w2.shape[1]
    tm_eff = min(tm, _round_up(M, 8))
    M_pad = _round_up(M, tm_eff)
    # Tile the intermediate axis only when it splits into lane-dense chunks.
    tf_eff = math.gcd(min(tf, F), F) if F % 128 == 0 else F
    xp = _pad_to(x2d, 0, M_pad)
    rp = _pad_to(residual, 0, M_pad)
    itemsize = x2d.dtype.itemsize
    out = pl.pallas_call(
        functools.partial(_ln_mlp_res_kernel, eps=eps),
        out_shape=jax.ShapeDtypeStruct((M_pad, N), out_dtype),
        grid=(M_pad // tm_eff, F // tf_eff),
        in_specs=[pl.BlockSpec((tm_eff, D), lambda i, j: (i, 0)),
                  pl.BlockSpec((1, D), lambda i, j: (0, 0)),
                  pl.BlockSpec((1, D), lambda i, j: (0, 0)),
                  pl.BlockSpec((D, tf_eff), lambda i, j: (0, j)),
                  pl.BlockSpec((1, tf_eff), lambda i, j: (0, j)),
                  pl.BlockSpec((tf_eff, N), lambda i, j: (j, 0)),
                  pl.BlockSpec((1, N), lambda i, j: (0, 0)),
                  pl.BlockSpec((tm_eff, N), lambda i, j: (i, 0))],
        out_specs=pl.BlockSpec((tm_eff, N), lambda i, j: (i, 0)),
        scratch_shapes=[pltpu.VMEM((tm_eff, D), w1.dtype),
                        pltpu.VMEM((tm_eff, N), jnp.float32)],
        compiler_params=pltpu.CompilerParams(
            dimension_semantics=("parallel", "arbitrary"),
            vmem_limit_bytes=DEFAULT_VMEM_LIMIT),
        cost_estimate=pl.CostEstimate(
            flops=2 * M_pad * (D * F + F * N),
            transcendentals=M_pad * F,
            bytes_accessed=(M_pad * D + D * F + F * N + 2 * M_pad * N) * itemsize),
    )(xp, gamma.reshape(1, D), beta.reshape(1, D), w1, b1.reshape(1, F),
      w2, b2.reshape(1, N), rp)
    return out[:M]


# --------------------------------------------------------------------------
# Kernel 5: flash-style attention with online softmax + key-padding mask
# --------------------------------------------------------------------------

def _flash_attn_kernel(q_ref, k_ref, v_ref, o_ref, m_sc, l_sc, acc_sc, *,
                       scale, seq_len, tkv):
    kv = pl.program_id(2)

    @pl.when(kv == 0)
    def _():
        m_sc[...] = jnp.full_like(m_sc, NEG_INF)
        l_sc[...] = jnp.zeros_like(l_sc)
        acc_sc[...] = jnp.zeros_like(acc_sc)

    s = jax.lax.dot_general(q_ref[...], k_ref[...], (((1,), (1,)), ((), ())),
                            preferred_element_type=jnp.float32) * scale
    kv_pos = kv * tkv + jax.lax.broadcasted_iota(jnp.int32, s.shape, 1)
    s = jnp.where(kv_pos < seq_len, s, NEG_INF)   # mask padded key positions

    m_prev = m_sc[...]
    m_new = jnp.maximum(m_prev, jnp.max(s, axis=-1, keepdims=True))
    alpha = jnp.exp(m_prev - m_new)
    p = jnp.exp(s - m_new)
    l_sc[...] = alpha * l_sc[...] + jnp.sum(p, axis=-1, keepdims=True)
    acc_sc[...] = alpha * acc_sc[...] + jnp.dot(
        p.astype(v_ref.dtype), v_ref[...], preferred_element_type=jnp.float32)
    m_sc[...] = m_new

    @pl.when(kv == pl.num_programs(2) - 1)
    def _():
        o_ref[...] = (acc_sc[...] * pl.reciprocal(l_sc[...], approx=True)
                      ).astype(o_ref.dtype)


def pallas_flash_attention(q, k, v, seq_len, *, tq=128, tkv=128):
    """q, k, v: (B*heads, S_pad, dh); key positions >= seq_len are masked."""
    BH, S, dh = q.shape
    scale = 1.0 / math.sqrt(dh)
    tq_eff = min(tq, S)
    tkv_eff = min(tkv, S)
    assert S % tq_eff == 0 and S % tkv_eff == 0
    grid = (BH, S // tq_eff, S // tkv_eff)
    itemsize = q.dtype.itemsize
    return pl.pallas_call(
        functools.partial(_flash_attn_kernel, scale=scale, seq_len=seq_len,
                          tkv=tkv_eff),
        out_shape=jax.ShapeDtypeStruct((BH, S, dh), q.dtype),
        grid=grid,
        in_specs=[pl.BlockSpec((None, tq_eff, dh), lambda b, qi, ki: (b, qi, 0)),
                  pl.BlockSpec((None, tkv_eff, dh), lambda b, qi, ki: (b, ki, 0)),
                  pl.BlockSpec((None, tkv_eff, dh), lambda b, qi, ki: (b, ki, 0))],
        out_specs=pl.BlockSpec((None, tq_eff, dh), lambda b, qi, ki: (b, qi, 0)),
        scratch_shapes=[pltpu.VMEM((tq_eff, 1), jnp.float32),
                        pltpu.VMEM((tq_eff, 1), jnp.float32),
                        pltpu.VMEM((tq_eff, dh), jnp.float32)],
        compiler_params=pltpu.CompilerParams(
            dimension_semantics=("parallel", "parallel", "arbitrary"),
            vmem_limit_bytes=DEFAULT_VMEM_LIMIT),
        cost_estimate=pl.CostEstimate(
            flops=4 * BH * S * S * dh,
            transcendentals=BH * S * S,
            bytes_accessed=4 * BH * S * dh * itemsize),
    )(q, k, v)


# --------------------------------------------------------------------------
# Parameter initialization (deterministic, synthetic)
# --------------------------------------------------------------------------

def init_params(key, cfg):
    hidden, inner, p = cfg['hidden'], cfg['inner'], cfg['patch_size']
    C, mlp_dim = cfg['in_chans'], cfg['mlp_dim']
    Np1 = (cfg['img_size'] // p) ** 2 + 1
    cdtype = cfg.get('compute_dtype', jnp.bfloat16)
    keys = iter(jax.random.split(key, 128))

    def w(shape, scale=0.02, dtype=cdtype):
        return (scale * jax.random.normal(next(keys), shape)).astype(dtype)

    def zeros(n):
        return jnp.zeros((n,), jnp.float32)

    def ones(n):
        return jnp.ones((n,), jnp.float32)

    params = {
        # separated_conv patchify: (p,1)-conv then (1,p)-conv, both strided.
        'conv1_w': w((inner, C, p, 1)), 'conv1_b': zeros(inner),
        'conv2_w': w((hidden, inner, 1, p)), 'conv2_b': zeros(hidden),
        'cls_token': w((1, 1, hidden)),
        'pos_embed': w((1, Np1, hidden)),
        'lnf_g': ones(hidden), 'lnf_b': zeros(hidden),
        'head_w1': w((hidden, mlp_dim)), 'head_b1': zeros(mlp_dim),
        'head_w2': w((mlp_dim, cfg['num_classes'])),
        'head_b2': zeros(cfg['num_classes']),
        'layers': [],
    }
    for _ in range(cfg['encoder_num']):
        params['layers'].append({
            'ln1_g': ones(hidden), 'ln1_b': zeros(hidden),
            # q/k/v projections stored fused as a single (hidden, 3*hidden) GEMM
            'wqkv': w((hidden, 3 * hidden)), 'bqkv': zeros(3 * hidden),
            'wo': w((hidden, hidden)), 'bo': zeros(hidden),
            'ln2_g': ones(hidden), 'ln2_b': zeros(hidden),
            'w_fc1': w((hidden, mlp_dim)), 'b_fc1': zeros(mlp_dim),
            'w_fc2': w((mlp_dim, hidden)), 'b_fc2': zeros(hidden),
        })
    return params


# --------------------------------------------------------------------------
# Forward pass
# --------------------------------------------------------------------------

def lli_transformer_forward(params, x, cfg):
    cdtype = cfg.get('compute_dtype', jnp.bfloat16)
    B, C, H, W = x.shape
    p = cfg['patch_size']
    Hp, Wp = H // p, W // p
    inner, hidden, heads = cfg['inner'], cfg['hidden'], cfg['heads']
    dh = hidden // heads

    x = x.astype(cdtype)

    # ---- Patchify (separated conv) as im2col + tiled Pallas matmuls ----
    # conv1: kernel (p,1), stride (p,1)
    x1 = x.reshape(B, C, Hp, p, W).transpose(0, 2, 4, 1, 3).reshape(B * Hp * W, C * p)
    w1 = params['conv1_w'].reshape(inner, C * p).T
    y1 = pallas_linear(x1, w1, params['conv1_b']).reshape(B, Hp, W, inner)

    # conv2: kernel (1,p), stride (1,p)
    x2 = y1.reshape(B, Hp, Wp, p, inner).transpose(0, 1, 2, 4, 3).reshape(B * Hp * Wp, inner * p)
    w2 = params['conv2_w'].reshape(hidden, inner * p).T
    tok = pallas_linear(x2, w2, params['conv2_b']).reshape(B, Hp * Wp, hidden)

    # ---- cls token + positional embedding; pad seq to a sublane multiple ----
    cls = jnp.broadcast_to(params['cls_token'].astype(cdtype), (B, 1, hidden))
    seq = jnp.concatenate([cls, tok], axis=1) + params['pos_embed'].astype(cdtype)
    Np1 = seq.shape[1]
    S_pad = _round_up(Np1, 8)
    seq = _pad_to(seq, 1, S_pad)          # padded keys are masked in attention
    M = B * S_pad
    seq2d = seq.reshape(M, hidden)

    # ---- Transformer encoder (pre-norm ViT style) ----
    for lp in params['layers']:
        # fused LN1 + QKV projection (single GEMM, read activation once)
        qkv = pallas_ln_linear(seq2d, lp['ln1_g'], lp['ln1_b'],
                               lp['wqkv'], lp['bqkv'])           # (M, 3*hidden)
        # TODO(synk): head split/merge stays in XLA; dh < 128 here cannot be
        # expressed as a lane-dense per-head BlockSpec at this toy size.
        qkv = qkv.reshape(B, S_pad, 3, heads, dh).transpose(2, 0, 3, 1, 4)
        q = qkv[0].reshape(B * heads, S_pad, dh)
        k = qkv[1].reshape(B * heads, S_pad, dh)
        v = qkv[2].reshape(B * heads, S_pad, dh)

        o = pallas_flash_attention(q, k, v, Np1)
        o = (o.reshape(B, heads, S_pad, dh).transpose(0, 2, 1, 3)
              .reshape(M, hidden))
        # output projection with the residual add fused into the kernel
        seq2d = pallas_linear_residual(o, lp['wo'], lp['bo'], seq2d)

        # fused LN2 + fc1 + GELU + fc2 + residual (F-axis tiled accumulator)
        seq2d = pallas_ln_mlp_residual(seq2d, lp['ln2_g'], lp['ln2_b'],
                                       lp['w_fc1'], lp['b_fc1'],
                                       lp['w_fc2'], lp['b_fc2'], seq2d)

    # ---- classification head on the cls token only (LN fused into fc1) ----
    cls_out = seq2d.reshape(B, S_pad, hidden)[:, 0, :]
    h = pallas_ln_linear(cls_out, params['lnf_g'], params['lnf_b'],
                         params['head_w1'], params['head_b1'])
    # TODO(synk): Dropout(0.1) inside mlp_head is identity at inference.
    logits = pallas_linear(h, params['head_w2'], params['head_b2'],
                           out_dtype=jnp.float32)
    return logits


# --------------------------------------------------------------------------

if __name__ == "__main__":
    cfg = dict(num_classes=10, img_size=16, in_chans=3, patch_size=4,
               inner=8, hidden=32, heads=4, encoder_num=2, mlp_dim=64,
               compute_dtype=jnp.bfloat16)

    key = jax.random.PRNGKey(0)
    pkey, xkey = jax.random.split(key)
    params = init_params(pkey, cfg)
    x = jax.random.normal(xkey,
                          (2, cfg['in_chans'], cfg['img_size'], cfg['img_size']),
                          dtype=jnp.float32)

    fwd = jax.jit(functools.partial(lli_transformer_forward, cfg=cfg))
    out = fwd(params, x)
    jax.block_until_ready(out)
    assert out.shape == (2, cfg['num_classes']), out.shape
    assert bool(jnp.all(jnp.isfinite(out)))
    print("KERNEL_OK")
</pallas_src>

<mosaic_0001>
module attributes {stable_mosaic.version = 11 : i64} {
  func.func @_matmul_kernel(%arg0: i32, %arg1: i32, %arg2: i32, %arg3: memref<128x12xbf16, #tpu.memory_space<vmem>>, %arg4: memref<12x128xbf16, #tpu.memory_space<vmem>>, %arg5: memref<1x128xf32, #tpu.memory_space<vmem>>, %arg6: memref<128x128xbf16, #tpu.memory_space<vmem>>, %arg7: memref<128x128xf32, #tpu.memory_space<vmem>>) attributes {dimension_semantics = [#tpu.dimension_semantics<parallel>, #tpu.dimension_semantics<parallel>, #tpu.dimension_semantics<arbitrary>], iteration_bounds = array<i64: 1, 1, 1>, scalar_prefetch = 0 : i64, scratch_operands = 1 : i64, tpu.core_type = #tpu.core_type<tc>, window_params = [{transform_indices = @transform_0, window_bounds = array<i64: 128, 12>}, {transform_indices = @transform_1, window_bounds = array<i64: 12, 128>}, {transform_indices = @transform_2, window_bounds = array<i64: 1, 128>}, {transform_indices = @transform_3, window_bounds = array<i64: 128, 128>}]} {
    %c0_i32 = arith.constant 0 : i32
    %0 = arith.cmpi eq, %arg2, %c0_i32 : i32
    %1 = arith.extui %0 : i1 to i32
    %c0_i32_0 = arith.constant 0 : i32
    %2 = arith.cmpi ne, %1, %c0_i32_0 : i32
    scf.if %2 {
      %cst_10 = arith.constant 0.000000e+00 : f32
      %12 = vector.broadcast %cst_10 : f32 to vector<128x128xf32>
      %c0_11 = arith.constant 0 : index
      %c0_12 = arith.constant 0 : index
      %13 = vector.load %arg7[%c0_11, %c0_12] : memref<128x128xf32, #tpu.memory_space<vmem>>, vector<128x128xf32>
      tpu.vector_store %arg7[%c0_11, %c0_12], %12 {strides = array<i32>} : memref<128x128xf32, #tpu.memory_space<vmem>>, vector<128x128xf32>,
    } else {
    }
    %c0 = arith.constant 0 : index
    %c0_1 = arith.constant 0 : index
    %3 = vector.load %arg7[%c0, %c0_1] : memref<128x128xf32, #tpu.memory_space<vmem>>, vector<128x128xf32>
    %c0_2 = arith.constant 0 : index
    %c0_3 = arith.constant 0 : index
    %4 = vector.load %arg3[%c0_2, %c0_3] : memref<128x12xbf16, #tpu.memory_space<vmem>>, vector<128x12xbf16>
    %c0_4 = arith.constant 0 : index
    %c0_5 = arith.constant 0 : index
    %5 = vector.load %arg4[%c0_4, %c0_5] : memref<12x128xbf16, #tpu.memory_space<vmem>>, vector<12x128xbf16>
    %cst = arith.constant dense<0.000000e+00> : vector<128x128xf32>
    %6 = tpu.matmul %4, %5, %cst {dimension_numbers = #tpu.dot_dimension_numbers<[1], [0], [0], [1], [0, 0, 1, 1], [], []>} : vector<128x12xbf16>, vector<12x128xbf16>, vector<128x128xf32> -> vector<128x128xf32>
    %7 = arith.addf %3, %6 : vector<128x128xf32>
    %c0_6 = arith.constant 0 : index
    %c0_7 = arith.constant 0 : index
    %8 = vector.load %arg7[%c0_6, %c0_7] : memref<128x128xf32, #tpu.memory_space<vmem>>, vector<128x128xf32>
    tpu.vector_store %arg7[%c0_6, %c0_7], %7 {strides = array<i32>} : memref<128x128xf32, #tpu.memory_space<vmem>>, vector<128x128xf32>,
    %c0_i32_8 = arith.constant 0 : i32
    %9 = arith.cmpi eq, %arg2, %c0_i32_8 : i32
    %10 = arith.extui %9 : i1 to i32
    %c0_i32_9 = arith.constant 0 : i32
    %11 = arith.cmpi ne, %10, %c0_i32_9 : i32
    scf.if %11 {
      %c0_10 = arith.constant 0 : index
      %c0_11 = arith.constant 0 : index
      %12 = vector.load %arg7[%c0_10, %c0_11] : memref<128x128xf32, #tpu.memory_space<vmem>>, vector<128x128xf32>
      %c0_12 = arith.constant 0 : index
      %c0_13 = arith.constant 0 : index
      %13 = vector.load %arg5[%c0_12, %c0_13] : memref<1x128xf32, #tpu.memory_space<vmem>>, vector<1x128xf32>
      %14 = vector.broadcast %13 : vector<1x128xf32> to vector<128x128xf32>
      %15 = arith.addf %12, %14 : vector<128x128xf32>
      %16 = arith.truncf %15 : vector<128x128xf32> to vector<128x128xbf16>
      %c0_14 = arith.constant 0 : index
      %c0_15 = arith.constant 0 : index
      %17 = vector.load %arg6[%c0_14, %c0_15] : memref<128x128xbf16, #tpu.memory_space<vmem>>, vector<128x128xbf16>
      tpu.vector_store %arg6[%c0_14, %c0_15], %16 {strides = array<i32>} : memref<128x128xbf16, #tpu.memory_space<vmem>>, vector<128x128xbf16>,
    } else {
    }
    return
  }
  func.func @transform_0(%arg0: i32, %arg1: i32, %arg2: i32) -> (i32, i32) {
    %c0_i32 = arith.constant 0 : i32
    return %arg0, %arg2 : i32, i32
  }
  func.func @transform_1(%arg0: i32, %arg1: i32, %arg2: i32) -> (i32, i32) {
    %c0_i32 = arith.constant 0 : i32
    return %arg2, %arg1 : i32, i32
  }
  func.func @transform_2(%arg0: i32, %arg1: i32, %arg2: i32) -> (i32, i32) {
    %c0_i32 = arith.constant 0 : i32
    %c0_i32_0 = arith.constant 0 : i32
    return %c0_i32, %arg1 : i32, i32
  }
  func.func @transform_3(%arg0: i32, %arg1: i32, %arg2: i32) -> (i32, i32) {
    %c0_i32 = arith.constant 0 : i32
    return %arg0, %arg1 : i32, i32
  }
}

module attributes {stable_mosaic.version = 11 : i64} {
  func.func @_matmul_kernel(%arg0: i32, %arg1: i32, %arg2: i32, %arg3: memref<32x32xbf16, #tpu.memory_space<vmem>>, %arg4: memref<32x128xbf16, #tpu.memory_space<vmem>>, %arg5: memref<1x128xf32, #tpu.memory_space<vmem>>, %arg6: memref<32x128xbf16, #tpu.memory_space<vmem>>, %arg7: memref<32x128xf32, #tpu.memory_space<vmem>>) attributes {dimension_semantics = [#tpu.dimension_semantics<parallel>, #tpu.dimension_semantics<parallel>, #tpu.dimension_semantics<arbitrary>], iteration_bounds = array<i64: 1, 1, 1>, scalar_prefetch = 0 : i64, scratch_operands = 1 : i64, tpu.core_type = #tpu.core_type<tc>, window_params = [{transform_indices = @transform_0, window_bounds = array<i64: 32, 32>}, {transform_indices = @transform_1, window_bounds = array<i64: 32, 128>}, {transform_indices = @transform_2, window_bounds = array<i64: 1, 128>}, {transform_indices = @transform_3, window_bounds = array<i64: 32, 128>}]} {
    %c0_i32 = arith.constant 0 : i32
    %0 = arith.cmpi eq, %arg2, %c0_i32 : i32
    %1 = arith.extui %0 : i1 to i32
    %c0_i32_0 = arith.constant 0 : i32
    %2 = arith.cmpi ne, %1, %c0_i32_0 : i32
    scf.if %2 {
      %cst_10 = arith.constant 0.000000e+00 : f32
      %12 = vector.broadcast %cst_10 : f32 to vector<32x128xf32>
      %c0_11 = arith.constant 0 : index
      %c0_12 = arith.constant 0 : index
      %13 = vector.load %arg7[%c0_11, %c0_12] : memref<32x128xf32, #tpu.memory_space<vmem>>, vector<32x128xf32>
      tpu.vector_store %arg7[%c0_11, %c0_12], %12 {strides = array<i32>} : memref<32x128xf32, #tpu.memory_space<vmem>>, vector<32x128xf32>,
    } else {
    }
    %c0 = arith.constant 0 : index
    %c0_1 = arith.constant 0 : index
    %3 = vector.load %arg7[%c0, %c0_1] : memref<32x128xf32, #tpu.memory_space<vmem>>, vector<32x128xf32>
    %c0_2 = arith.constant 0 : index
    %c0_3 = arith.constant 0 : index
    %4 = vector.load %arg3[%c0_2, %c0_3] : memref<32x32xbf16, #tpu.memory_space<vmem>>, vector<32x32xbf16>
    %c0_4 = arith.constant 0 : index
    %c0_5 = arith.constant 0 : index
    %5 = vector.load %arg4[%c0_4, %c0_5] : memref<32x128xbf16, #tpu.memory_space<vmem>>, vector<32x128xbf16>
    %cst = arith.constant dense<0.000000e+00> : vector<32x128xf32>
    %6 = tpu.matmul %4, %5, %cst {dimension_numbers = #tpu.dot_dimension_numbers<[1], [0], [0], [1], [0, 0, 1, 1], [], []>} : vector<32x32xbf16>, vector<32x128xbf16>, vector<32x128xf32> -> vector<32x128xf32>
    %7 = arith.addf %3, %6 : vector<32x128xf32>
    %c0_6 = arith.constant 0 : index
    %c0_7 = arith.constant 0 : index
    %8 = vector.load %arg7[%c0_6, %c0_7] : memref<32x128xf32, #tpu.memory_space<vmem>>, vector<32x128xf32>
    tpu.vector_store %arg7[%c0_6, %c0_7], %7 {strides = array<i32>} : memref<32x128xf32, #tpu.memory_space<vmem>>, vector<32x128xf32>,
    %c0_i32_8 = arith.constant 0 : i32
    %9 = arith.cmpi eq, %arg2, %c0_i32_8 : i32
    %10 = arith.extui %9 : i1 to i32
    %c0_i32_9 = arith.constant 0 : i32
    %11 = arith.cmpi ne, %10, %c0_i32_9 : i32
    scf.if %11 {
      %c0_10 = arith.constant 0 : index
      %c0_11 = arith.constant 0 : index
      %12 = vector.load %arg7[%c0_10, %c0_11] : memref<32x128xf32, #tpu.memory_space<vmem>>, vector<32x128xf32>
      %c0_12 = arith.constant 0 : index
      %c0_13 = arith.constant 0 : index
      %13 = vector.load %arg5[%c0_12, %c0_13] : memref<1x128xf32, #tpu.memory_space<vmem>>, vector<1x128xf32>
      %14 = vector.broadcast %13 : vector<1x128xf32> to vector<32x128xf32>
      %15 = arith.addf %12, %14 : vector<32x128xf32>
      %16 = arith.truncf %15 : vector<32x128xf32> to vector<32x128xbf16>
      %c0_14 = arith.constant 0 : index
      %c0_15 = arith.constant 0 : index
      %17 = vector.load %arg6[%c0_14, %c0_15] : memref<32x128xbf16, #tpu.memory_space<vmem>>, vector<32x128xbf16>
      tpu.vector_store %arg6[%c0_14, %c0_15], %16 {strides = array<i32>} : memref<32x128xbf16, #tpu.memory_space<vmem>>, vector<32x128xbf16>,
    } else {
    }
    return
  }
  func.func @transform_0(%arg0: i32, %arg1: i32, %arg2: i32) -> (i32, i32) {
    %c0_i32 = arith.constant 0 : i32
    return %arg0, %arg2 : i32, i32
  }
  func.func @transform_1(%arg0: i32, %arg1: i32, %arg2: i32) -> (i32, i32) {
    %c0_i32 = arith.constant 0 : i32
    return %arg2, %arg1 : i32, i32
  }
  func.func @transform_2(%arg0: i32, %arg1: i32, %arg2: i32) -> (i32, i32) {
    %c0_i32 = arith.constant 0 : i32
    %c0_i32_0 = arith.constant 0 : i32
    return %c0_i32, %arg1 : i32, i32
  }
  func.func @transform_3(%arg0: i32, %arg1: i32, %arg2: i32) -> (i32, i32) {
    %c0_i32 = arith.constant 0 : i32
    return %arg0, %arg1 : i32, i32
  }
}

module attributes {stable_mosaic.version = 11 : i64} {
  func.func @_ln_linear_kernel(%arg0: i32, %arg1: i32, %arg2: memref<48x32xbf16, #tpu.memory_space<vmem>>, %arg3: memref<1x32xf32, #tpu.memory_space<vmem>>, %arg4: memref<1x32xf32, #tpu.memory_space<vmem>>, %arg5: memref<32x128xbf16, #tpu.memory_space<vmem>>, %arg6: memref<1x128xf32, #tpu.memory_space<vmem>>, %arg7: memref<48x128xbf16, #tpu.memory_space<vmem>>, %arg8: memref<48x32xbf16, #tpu.memory_space<vmem>>) attributes {dimension_semantics = [#tpu.dimension_semantics<parallel>, #tpu.dimension_semantics<arbitrary>], iteration_bounds = array<i64: 1, 1>, scalar_prefetch = 0 : i64, scratch_operands = 1 : i64, tpu.core_type = #tpu.core_type<tc>, window_params = [{transform_indices = @transform_0, window_bounds = array<i64: 48, 32>}, {pipeline_mode = #tpu.pipeline_mode<synchronous>, transform_indices = @transform_1, window_bounds = array<i64: 1, 32>}, {pipeline_mode = #tpu.pipeline_mode<synchronous>, transform_indices = @transform_2, window_bounds = array<i64: 1, 32>}, {transform_indices = @transform_3, window_bounds = array<i64: 32, 128>}, {transform_indices = @transform_4, window_bounds = array<i64: 1, 128>}, {transform_indices = @transform_5, window_bounds = array<i64: 48, 128>}]} {
    %c0_i32 = arith.constant 0 : i32
    %0 = arith.cmpi eq, %arg1, %c0_i32 : i32
    %1 = arith.extui %0 : i1 to i32
    %c0_i32_0 = arith.constant 0 : i32
    %2 = arith.cmpi ne, %1, %c0_i32_0 : i32
    scf.if %2 {
      %c0_8 = arith.constant 0 : index
      %c0_9 = arith.constant 0 : index
      %11 = vector.load %arg2[%c0_8, %c0_9] : memref<48x32xbf16, #tpu.memory_space<vmem>>, vector<48x32xbf16>
      %12 = arith.extf %11 : vector<48x32xbf16> to vector<48x32xf32>
      %cst_10 = arith.constant dense<0.000000e+00> : vector<48xf32>
      %13 = vector.multi_reduction <add>, %12, %cst_10 [1] : vector<48x32xf32> to vector<48xf32>
      %14 = vector.shape_cast %13 : vector<48xf32> to vector<48x1xf32>
      %cst_11 = arith.constant 3.200000e+01 : f32
      %15 = vector.broadcast %cst_11 : f32 to vector<48x1xf32>
      %16 = arith.divf %14, %15 : vector<48x1xf32>
      %17 = vector.broadcast %16 : vector<48x1xf32> to vector<48x32xf32>
      %18 = arith.subf %12, %17 : vector<48x32xf32>
      %19 = arith.mulf %18, %18 : vector<48x32xf32>
      %cst_12 = arith.constant dense<0.000000e+00> : vector<48xf32>
      %20 = vector.multi_reduction <add>, %19, %cst_12 [1] : vector<48x32xf32> to vector<48xf32>
      %21 = vector.shape_cast %20 : vector<48xf32> to vector<48x1xf32>
      %cst_13 = arith.constant 3.200000e+01 : f32
      %22 = vector.broadcast %cst_13 : f32 to vector<48x1xf32>
      %23 = arith.divf %21, %22 : vector<48x1xf32>
      %24 = vector.broadcast %16 : vector<48x1xf32> to vector<48x32xf32>
      %25 = arith.subf %12, %24 : vector<48x32xf32>
      %cst_14 = arith.constant 9.99999974E-6 : f32
      %26 = vector.broadcast %cst_14 : f32 to vector<48x1xf32>
      %27 = arith.addf %23, %26 : vector<48x1xf32>
      %28 = math.rsqrt %27 : vector<48x1xf32>
      %29 = vector.broadcast %28 : vector<48x1xf32> to vector<48x32xf32>
      %30 = arith.mulf %25, %29 : vector<48x32xf32>
      %c0_15 = arith.constant 0 : index
      %c0_16 = arith.constant 0 : index
      %31 = vector.load %arg3[%c0_15, %c0_16] : memref<1x32xf32, #tpu.memory_space<vmem>>, vector<1x32xf32>
      %32 = vector.broadcast %31 : vector<1x32xf32> to vector<48x32xf32>
      %33 = arith.mulf %30, %32 : vector<48x32xf32>
      %c0_17 = arith.constant 0 : index
      %c0_18 = arith.constant 0 : index
      %34 = vector.load %arg4[%c0_17, %c0_18] : memref<1x32xf32, #tpu.memory_space<vmem>>, vector<1x32xf32>
      %35 = vector.broadcast %34 : vector<1x32xf32> to vector<48x32xf32>
      %36 = arith.addf %33, %35 : vector<48x32xf32>
      %37 = arith.truncf %36 : vector<48x32xf32> to vector<48x32xbf16>
      %c0_19 = arith.constant 0 : index
      %c0_20 = arith.constant 0 : index
      %38 = vector.load %arg8[%c0_19, %c0_20] : memref<48x32xbf16, #tpu.memory_space<vmem>>, vector<48x32xbf16>
      tpu.vector_store %arg8[%c0_19, %c0_20], %37 {strides = array<i32>} : memref<48x32xbf16, #tpu.memory_space<vmem>>, vector<48x32xbf16>,
    } else {
    }
    %c0 = arith.constant 0 : index
    %c0_1 = arith.constant 0 : index
    %3 = vector.load %arg8[%c0, %c0_1] : memref<48x32xbf16, #tpu.memory_space<vmem>>, vector<48x32xbf16>
    %c0_2 = arith.constant 0 : index
    %c0_3 = arith.constant 0 : index
    %4 = vector.load %arg5[%c0_2, %c0_3] : memref<32x128xbf16, #tpu.memory_space<vmem>>, vector<32x128xbf16>
    %cst = arith.constant dense<0.000000e+00> : vector<48x128xf32>
    %5 = tpu.matmul %3, %4, %cst {dimension_numbers = #tpu.dot_dimension_numbers<[1], [0], [0], [1], [0, 0, 1, 1], [], []>} : vector<48x32xbf16>, vector<32x128xbf16>, vector<48x128xf32> -> vector<48x128xf32>
    %c0_4 = arith.constant 0 : index
    %c0_5 = arith.constant 0 : index
    %6 = vector.load %arg6[%c0_4, %c0_5] : memref<1x128xf32, #tpu.memory_space<vmem>>, vector<1x128xf32>
    %7 = vector.broadcast %6 : vector<1x128xf32> to vector<48x128xf32>
    %8 = arith.addf %5, %7 : vector<48x128xf32>
    %9 = arith.truncf %8 : vector<48x128xf32> to vector<48x128xbf16>
    %c0_6 = arith.constant 0 : index
    %c0_7 = arith.constant 0 : index
    %10 = vector.load %arg7[%c0_6, %c0_7] : memref<48x128xbf16, #tpu.memory_space<vmem>>, vector<48x128xbf16>
    tpu.vector_store %arg7[%c0_6, %c0_7], %9 {strides = array<i32>} : memref<48x128xbf16, #tpu.memory_space<vmem>>, vector<48x128xbf16>,
    return
  }
  func.func @transform_0(%arg0: i32, %arg1: i32) -> (i32, i32) {
    %c0_i32 = arith.constant 0 : i32
    %c0_i32_0 = arith.constant 0 : i32
    return %arg0, %c0_i32 : i32, i32
  }
  func.func @transform_1(%arg0: i32, %arg1: i32) -> (i32, i32) {
    %c0_i32 = arith.constant 0 : i32
    %c0_i32_0 = arith.constant 0 : i32
    %c0_i32_1 = arith.constant 0 : i32
    return %c0_i32, %c0_i32_0 : i32, i32
  }
  func.func @transform_2(%arg0: i32, %arg1: i32) -> (i32, i32) {
    %c0_i32 = arith.constant 0 : i32
    %c0_i32_0 = arith.constant 0 : i32
    %c0_i32_1 = arith.constant 0 : i32
    return %c0_i32, %c0_i32_0 : i32, i32
  }
  func.func @transform_3(%arg0: i32, %arg1: i32) -> (i32, i32) {
    %c0_i32 = arith.constant 0 : i32
    %c0_i32_0 = arith.constant 0 : i32
    return %c0_i32, %arg1 : i32, i32
  }
  func.func @transform_4(%arg0: i32, %arg1: i32) -> (i32, i32) {
    %c0_i32 = arith.constant 0 : i32
    %c0_i32_0 = arith.constant 0 : i32
    return %c0_i32, %arg1 : i32, i32
  }
  func.func @transform_5(%arg0: i32, %arg1: i32) -> (i32, i32) {
    %c0_i32 = arith.constant 0 : i32
    return %arg0, %arg1 : i32, i32
  }
}

module attributes {stable_mosaic.version = 11 : i64} {
  func.func @_flash_attn_kernel(%arg0: i32, %arg1: i32, %arg2: i32, %arg3: memref<1x24x8xbf16, #tpu.memory_space<vmem>>, %arg4: memref<1x24x8xbf16, #tpu.memory_space<vmem>>, %arg5: memref<1x24x8xbf16, #tpu.memory_space<vmem>>, %arg6: memref<1x24x8xbf16, #tpu.memory_space<vmem>>, %arg7: memref<24x1xf32, #tpu.memory_space<vmem>>, %arg8: memref<24x1xf32, #tpu.memory_space<vmem>>, %arg9: memref<24x8xf32, #tpu.memory_space<vmem>>) attributes {dimension_semantics = [#tpu.dimension_semantics<parallel>, #tpu.dimension_semantics<parallel>, #tpu.dimension_semantics<arbitrary>], iteration_bounds = array<i64: 8, 1, 1>, scalar_prefetch = 0 : i64, scratch_operands = 3 : i64, tpu.core_type = #tpu.core_type<tc>, window_params = [{transform_indices = @transform_0, window_bounds = array<i64: 1, 24, 8>}, {transform_indices = @transform_1, window_bounds = array<i64: 1, 24, 8>}, {transform_indices = @transform_2, window_bounds = array<i64: 1, 24, 8>}, {transform_indices = @transform_3, window_bounds = array<i64: 1, 24, 8>}]} {
    %c0_i32 = arith.constant 0 : i32
    %0 = arith.cmpi eq, %arg2, %c0_i32 : i32
    %1 = arith.extui %0 : i1 to i32
    %c0_i32_0 = arith.constant 0 : i32
    %2 = arith.cmpi ne, %1, %c0_i32_0 : i32
    scf.if %2 {
      %cst_28 = arith.constant -1.000000e+30 : f32
      %46 = vector.broadcast %cst_28 : f32 to vector<24x1xf32>
      %c0_29 = arith.constant 0 : index
      %c0_30 = arith.constant 0 : index
      %47 = vector.load %arg7[%c0_29, %c0_30] : memref<24x1xf32, #tpu.memory_space<vmem>>, vector<24x1xf32>
      tpu.vector_store %arg7[%c0_29, %c0_30], %46 {strides = array<i32>} : memref<24x1xf32, #tpu.memory_space<vmem>>, vector<24x1xf32>,
      %cst_31 = arith.constant 0.000000e+00 : f32
      %48 = vector.broadcast %cst_31 : f32 to vector<24x1xf32>
      %c0_32 = arith.constant 0 : index
      %c0_33 = arith.constant 0 : index
      %49 = vector.load %arg8[%c0_32, %c0_33] : memref<24x1xf32, #tpu.memory_space<vmem>>, vector<24x1xf32>
      tpu.vector_store %arg8[%c0_32, %c0_33], %48 {strides = array<i32>} : memref<24x1xf32, #tpu.memory_space<vmem>>, vector<24x1xf32>,
      %cst_34 = arith.constant 0.000000e+00 : f32
      %50 = vector.broadcast %cst_34 : f32 to vector<24x8xf32>
      %c0_35 = arith.constant 0 : index
      %c0_36 = arith.constant 0 : index
      %51 = vector.load %arg9[%c0_35, %c0_36] : memref<24x8xf32, #tpu.memory_space<vmem>>, vector<24x8xf32>
      tpu.vector_store %arg9[%c0_35, %c0_36], %50 {strides = array<i32>} : memref<24x8xf32, #tpu.memory_space<vmem>>, vector<24x8xf32>,
    } else {
    }
    %c0 = arith.constant 0 : index
    %c0_1 = arith.constant 0 : index
    %c0_2 = arith.constant 0 : index
    %3 = vector.load %arg3[%c0, %c0_1, %c0_2] : memref<1x24x8xbf16, #tpu.memory_space<vmem>>, vector<1x24x8xbf16>
    %4 = vector.shape_cast %3 : vector<1x24x8xbf16> to vector<24x8xbf16>
    %c0_3 = arith.constant 0 : index
    %c0_4 = arith.constant 0 : index
    %c0_5 = arith.constant 0 : index
    %5 = vector.load %arg4[%c0_3, %c0_4, %c0_5] : memref<1x24x8xbf16, #tpu.memory_space<vmem>>, vector<1x24x8xbf16>
    %6 = vector.shape_cast %5 : vector<1x24x8xbf16> to vector<24x8xbf16>
    %cst = arith.constant dense<0.000000e+00> : vector<24x24xf32>
    %7 = tpu.matmul %4, %6, %cst {dimension_numbers = #tpu.dot_dimension_numbers<[1], [1], [0], [0], [0, 0, 1, 0], [], []>} : vector<24x8xbf16>, vector<24x8xbf16>, vector<24x24xf32> -> vector<24x24xf32>
    %cst_6 = arith.constant 0.353553385 : f32
    %8 = vector.broadcast %cst_6 : f32 to vector<24x24xf32>
    %9 = arith.mulf %7, %8 : vector<24x24xf32>
    %c24_i32 = arith.constant 24 : i32
    %10 = arith.muli %arg2, %c24_i32 : i32
    %11 = tpu.iota {dimensions = array<i32: 1>} : vector<24x24xi32>
    %12 = vector.broadcast %10 : i32 to vector<24x24xi32>
    %13 = arith.addi %12, %11 : vector<24x24xi32>
    %c17_i32 = arith.constant 17 : i32
    %14 = vector.broadcast %c17_i32 : i32 to vector<24x24xi32>
    %15 = arith.cmpi slt, %13, %14 : vector<24x24xi32>
    %cst_7 = arith.constant -1.000000e+30 : f32
    %16 = vector.broadcast %cst_7 : f32 to vector<24x24xf32>
    %17 = arith.select %15, %9, %16 : vector<24x24xi1>, vector<24x24xf32>
    %c0_8 = arith.constant 0 : index
    %c0_9 = arith.constant 0 : index
    %18 = vector.load %arg7[%c0_8, %c0_9] : memref<24x1xf32, #tpu.memory_space<vmem>>, vector<24x1xf32>
    %cst_10 = arith.constant dense<0xFF800000> : vector<24xf32>
    %19 = vector.multi_reduction <maximumf>, %17, %cst_10 [1] : vector<24x24xf32> to vector<24xf32>
    %20 = vector.shape_cast %19 : vector<24xf32> to vector<24x1xf32>
    %21 = arith.maximumf %18, %20 : vector<24x1xf32>
    %22 = arith.subf %18, %21 : vector<24x1xf32>
    %23 = math.exp %22 : vector<24x1xf32>
    %24 = vector.broadcast %21 : vector<24x1xf32> to vector<24x24xf32>
    %25 = arith.subf %17, %24 : vector<24x24xf32>
    %26 = math.exp %25 : vector<24x24xf32>
    %c0_11 = arith.constant 0 : index
    %c0_12 = arith.constant 0 : index
    %27 = vector.load %arg8[%c0_11, %c0_12] : memref<24x1xf32, #tpu.memory_space<vmem>>, vector<24x1xf32>
    %28 = arith.mulf %23, %27 : vector<24x1xf32>
    %cst_13 = arith.constant dense<0.000000e+00> : vector<24xf32>
    %29 = vector.multi_reduction <add>, %26, %cst_13 [1] : vector<24x24xf32> to vector<24xf32>
    %30 = vector.shape_cast %29 : vector<24xf32> to vector<24x1xf32>
    %31 = arith.addf %28, %30 : vector<24x1xf32>
    %c0_14 = arith.constant 0 : index
    %c0_15 = arith.constant 0 : index
    %32 = vector.load %arg8[%c0_14, %c0_15] : memref<24x1xf32, #tpu.memory_space<vmem>>, vector<24x1xf32>
    tpu.vector_store %arg8[%c0_14, %c0_15], %31 {strides = array<i32>} : memref<24x1xf32, #tpu.memory_space<vmem>>, vector<24x1xf32>,
    %c0_16 = arith.constant 0 : index
    %c0_17 = arith.constant 0 : index
    %33 = vector.load %arg9[%c0_16, %c0_17] : memref<24x8xf32, #tpu.memory_space<vmem>>, vector<24x8xf32>
    %34 = vector.broadcast %23 : vector<24x1xf32> to vector<24x8xf32>
    %35 = arith.mulf %34, %33 : vector<24x8xf32>
    %36 = arith.truncf %26 : vector<24x24xf32> to vector<24x24xbf16>
    %c0_18 = arith.constant 0 : index
    %c0_19 = arith.constant 0 : index
    %c0_20 = arith.constant 0 : index
    %37 = vector.load %arg5[%c0_18, %c0_19, %c0_20] : memref<1x24x8xbf16, #tpu.memory_space<vmem>>, vector<1x24x8xbf16>
    %38 = vector.shape_cast %37 : vector<1x24x8xbf16> to vector<24x8xbf16>
    %cst_21 = arith.constant dense<0.000000e+00> : vector<24x8xf32>
    %39 = tpu.matmul %36, %38, %cst_21 {dimension_numbers = #tpu.dot_dimension_numbers<[1], [0], [0], [1], [0, 0, 1, 1], [], []>} : vector<24x24xbf16>, vector<24x8xbf16>, vector<24x8xf32> -> vector<24x8xf32>
    %40 = arith.addf %35, %39 : vector<24x8xf32>
    %c0_22 = arith.constant 0 : index
    %c0_23 = arith.constant 0 : index
    %41 = vector.load %arg9[%c0_22, %c0_23] : memref<24x8xf32, #tpu.memory_space<vmem>>, vector<24x8xf32>
    tpu.vector_store %arg9[%c0_22, %c0_23], %40 {strides = array<i32>} : memref<24x8xf32, #tpu.memory_space<vmem>>, vector<24x8xf32>,
    %c0_24 = arith.constant 0 : index
    %c0_25 = arith.constant 0 : index
    %42 = vector.load %arg7[%c0_24, %c0_25] : memref<24x1xf32, #tpu.memory_space<vmem>>, vector<24x1xf32>
    tpu.vector_store %arg7[%c0_24, %c0_25], %21 {strides = array<i32>} : memref<24x1xf32, #tpu.memory_space<vmem>>, vector<24x1xf32>,
    %c0_i32_26 = arith.constant 0 : i32
    %43 = arith.cmpi eq, %arg2, %c0_i32_26 : i32
    %44 = arith.extui %43 : i1 to i32
    %c0_i32_27 = arith.constant 0 : i32
    %45 = arith.cmpi ne, %44, %c0_i32_27 : i32
    scf.if %45 {
      %c0_28 = arith.constant 0 : index
      %c0_29 = arith.constant 0 : index
      %46 = vector.load %arg9[%c0_28, %c0_29] : memref<24x8xf32, #tpu.memory_space<vmem>>, vector<24x8xf32>
      %c0_30 = arith.constant 0 : index
      %c0_31 = arith.constant 0 : index
      %47 = vector.load %arg8[%c0_30, %c0_31] : memref<24x1xf32, #tpu.memory_space<vmem>>, vector<24x1xf32>
      %48 = tpu.reciprocal %47 {approx = true} : vector<24x1xf32> -> vector<24x1xf32>
      %49 = vector.broadcast %48 : vector<24x1xf32> to vector<24x8xf32>
      %50 = arith.mulf %46, %49 : vector<24x8xf32>
      %51 = arith.truncf %50 : vector<24x8xf32> to vector<24x8xbf16>
      %c0_32 = arith.constant 0 : index
      %c0_33 = arith.constant 0 : index
      %c0_34 = arith.constant 0 : index
      %52 = vector.load %arg6[%c0_32, %c0_33, %c0_34] : memref<1x24x8xbf16, #tpu.memory_space<vmem>>, vector<1x24x8xbf16>
      %53 = vector.shape_cast %52 : vector<1x24x8xbf16> to vector<24x8xbf16>
      %54 = vector.shape_cast %51 : vector<24x8xbf16> to vector<1x24x8xbf16>
      tpu.vector_store %arg6[%c0_32, %c0_33, %c0_34], %54 {strides = array<i32>} : memref<1x24x8xbf16, #tpu.memory_space<vmem>>, vector<1x24x8xbf16>,
    } else {
    }
    return
  }
  func.func @transform_0(%arg0: i32, %arg1: i32, %arg2: i32) -> (i32, i32, i32) {
    %c0_i32 = arith.constant 0 : i32
    %c0_i32_0 = arith.constant 0 : i32
    return %arg0, %arg1, %c0_i32 : i32, i32, i32
  }
  func.func @transform_1(%arg0: i32, %arg1: i32, %arg2: i32) -> (i32, i32, i32) {
    %c0_i32 = arith.constant 0 : i32
    %c0_i32_0 = arith.constant 0 : i32
    return %arg0, %arg2, %c0_i32 : i32, i32, i32
  }
  func.func @transform_2(%arg0: i32, %arg1: i32, %arg2: i32) -> (i32, i32, i32) {
    %c0_i32 = arith.constant 0 : i32
    %c0_i32_0 = arith.constant 0 : i32
    return %arg0, %arg2, %c0_i32 : i32, i32, i32
  }
  func.func @transform_3(%arg0: i32, %arg1: i32, %arg2: i32) -> (i32, i32, i32) {
    %c0_i32 = arith.constant 0 : i32
    %c0_i32_0 = arith.constant 0 : i32
    return %arg0, %arg1, %c0_i32 : i32, i32, i32
  }
}

module attributes {stable_mosaic.version = 11 : i64} {
  func.func @_linear_res_kernel(%arg0: i32, %arg1: memref<48x32xbf16, #tpu.memory_space<vmem>>, %arg2: memref<32x32xbf16, #tpu.memory_space<vmem>>, %arg3: memref<1x32xf32, #tpu.memory_space<vmem>>, %arg4: memref<48x32xbf16, #tpu.memory_space<vmem>>, %arg5: memref<48x32xbf16, #tpu.memory_space<vmem>>) attributes {dimension_semantics = [#tpu.dimension_semantics<parallel>], iteration_bounds = array<i64: 1>, scalar_prefetch = 0 : i64, scratch_operands = 0 : i64, tpu.core_type = #tpu.core_type<tc>, window_params = [{transform_indices = @transform_0, window_bounds = array<i64: 48, 32>}, {pipeline_mode = #tpu.pipeline_mode<synchronous>, transform_indices = @transform_1, window_bounds = array<i64: 32, 32>}, {pipeline_mode = #tpu.pipeline_mode<synchronous>, transform_indices = @transform_2, window_bounds = array<i64: 1, 32>}, {transform_indices = @transform_3, window_bounds = array<i64: 48, 32>}, {transform_indices = @transform_4, window_bounds = array<i64: 48, 32>}]} {
    %c0 = arith.constant 0 : index
    %c0_0 = arith.constant 0 : index
    %0 = vector.load %arg1[%c0, %c0_0] : memref<48x32xbf16, #tpu.memory_space<vmem>>, vector<48x32xbf16>
    %c0_1 = arith.constant 0 : index
    %c0_2 = arith.constant 0 : index
    %1 = vector.load %arg2[%c0_1, %c0_2] : memref<32x32xbf16, #tpu.memory_space<vmem>>, vector<32x32xbf16>
    %cst = arith.constant dense<0.000000e+00> : vector<48x32xf32>
    %2 = tpu.matmul %0, %1, %cst {dimension_numbers = #tpu.dot_dimension_numbers<[1], [0], [0], [1], [0, 0, 1, 1], [], []>} : vector<48x32xbf16>, vector<32x32xbf16>, vector<48x32xf32> -> vector<48x32xf32>
    %c0_3 = arith.constant 0 : index
    %c0_4 = arith.constant 0 : index
    %3 = vector.load %arg3[%c0_3, %c0_4] : memref<1x32xf32, #tpu.memory_space<vmem>>, vector<1x32xf32>
    %4 = vector.broadcast %3 : vector<1x32xf32> to vector<48x32xf32>
    %5 = arith.addf %2, %4 : vector<48x32xf32>
    %c0_5 = arith.constant 0 : index
    %c0_6 = arith.constant 0 : index
    %6 = vector.load %arg4[%c0_5, %c0_6] : memref<48x32xbf16, #tpu.memory_space<vmem>>, vector<48x32xbf16>
    %7 = arith.extf %6 : vector<48x32xbf16> to vector<48x32xf32>
    %8 = arith.addf %5, %7 : vector<48x32xf32>
    %9 = arith.truncf %8 : vector<48x32xf32> to vector<48x32xbf16>
    %c0_7 = arith.constant 0 : index
    %c0_8 = arith.constant 0 : index
    %10 = vector.load %arg5[%c0_7, %c0_8] : memref<48x32xbf16, #tpu.memory_space<vmem>>, vector<48x32xbf16>
    tpu.vector_store %arg5[%c0_7, %c0_8], %9 {strides = array<i32>} : memref<48x32xbf16, #tpu.memory_space<vmem>>, vector<48x32xbf16>,
    return
  }
  func.func @transform_0(%arg0: i32) -> (i32, i32) {
    %c0_i32 = arith.constant 0 : i32
    %c0_i32_0 = arith.constant 0 : i32
    return %arg0, %c0_i32 : i32, i32
  }
  func.func @transform_1(%arg0: i32) -> (i32, i32) {
    %c0_i32 = arith.constant 0 : i32
    %c0_i32_0 = arith.constant 0 : i32
    %c0_i32_1 = arith.constant 0 : i32
    return %c0_i32, %c0_i32_0 : i32, i32
  }
  func.func @transform_2(%arg0: i32) -> (i32, i32) {
    %c0_i32 = arith.constant 0 : i32
    %c0_i32_0 = arith.constant 0 : i32
    %c0_i32_1 = arith.constant 0 : i32
    return %c0_i32, %c0_i32_0 : i32, i32
  }
  func.func @transform_3(%arg0: i32) -> (i32, i32) {
    %c0_i32 = arith.constant 0 : i32
    %c0_i32_0 = arith.constant 0 : i32
    return %arg0, %c0_i32 : i32, i32
  }
  func.func @transform_4(%arg0: i32) -> (i32, i32) {
    %c0_i32 = arith.constant 0 : i32
    %c0_i32_0 = arith.constant 0 : i32
    return %arg0, %c0_i32 : i32, i32
  }
}

module attributes {stable_mosaic.version = 11 : i64} {
  func.func @_ln_mlp_res_kernel(%arg0: i32, %arg1: i32, %arg2: memref<48x32xbf16, #tpu.memory_space<vmem>>, %arg3: memref<1x32xf32, #tpu.memory_space<vmem>>, %arg4: memref<1x32xf32, #tpu.memory_space<vmem>>, %arg5: memref<32x64xbf16, #tpu.memory_space<vmem>>, %arg6: memref<1x64xf32, #tpu.memory_space<vmem>>, %arg7: memref<64x32xbf16, #tpu.memory_space<vmem>>, %arg8: memref<1x32xf32, #tpu.memory_space<vmem>>, %arg9: memref<48x32xbf16, #tpu.memory_space<vmem>>, %arg10: memref<48x32xbf16, #tpu.memory_space<vmem>>, %arg11: memref<48x32xbf16, #tpu.memory_space<vmem>>, %arg12: memref<48x32xf32, #tpu.memory_space<vmem>>) attributes {dimension_semantics = [#tpu.dimension_semantics<parallel>, #tpu.dimension_semantics<arbitrary>], iteration_bounds = array<i64: 1, 1>, scalar_prefetch = 0 : i64, scratch_operands = 2 : i64, tpu.core_type = #tpu.core_type<tc>, window_params = [{transform_indices = @transform_0, window_bounds = array<i64: 48, 32>}, {pipeline_mode = #tpu.pipeline_mode<synchronous>, transform_indices = @transform_1, window_bounds = array<i64: 1, 32>}, {pipeline_mode = #tpu.pipeline_mode<synchronous>, transform_indices = @transform_2, window_bounds = array<i64: 1, 32>}, {transform_indices = @transform_3, window_bounds = array<i64: 32, 64>}, {transform_indices = @transform_4, window_bounds = array<i64: 1, 64>}, {transform_indices = @transform_5, window_bounds = array<i64: 64, 32>}, {pipeline_mode = #tpu.pipeline_mode<synchronous>, transform_indices = @transform_6, window_bounds = array<i64: 1, 32>}, {transform_indices = @transform_7, window_bounds = array<i64: 48, 32>}, {transform_indices = @transform_8, window_bounds = array<i64: 48, 32>}]} {
    %c0_i32 = arith.constant 0 : i32
    %0 = arith.cmpi eq, %arg1, %c0_i32 : i32
    %1 = arith.extui %0 : i1 to i32
    %c0_i32_0 = arith.constant 0 : i32
    %2 = arith.cmpi ne, %1, %c0_i32_0 : i32
    scf.if %2 {
      %c0_31 = arith.constant 0 : index
      %c0_32 = arith.constant 0 : index
      %59 = vector.load %arg2[%c0_31, %c0_32] : memref<48x32xbf16, #tpu.memory_space<vmem>>, vector<48x32xbf16>
      %60 = arith.extf %59 : vector<48x32xbf16> to vector<48x32xf32>
      %cst_33 = arith.constant dense<0.000000e+00> : vector<48xf32>
      %61 = vector.multi_reduction <add>, %60, %cst_33 [1] : vector<48x32xf32> to vector<48xf32>
      %62 = vector.shape_cast %61 : vector<48xf32> to vector<48x1xf32>
      %cst_34 = arith.constant 3.200000e+01 : f32
      %63 = vector.broadcast %cst_34 : f32 to vector<48x1xf32>
      %64 = arith.divf %62, %63 : vector<48x1xf32>
      %65 = vector.broadcast %64 : vector<48x1xf32> to vector<48x32xf32>
      %66 = arith.subf %60, %65 : vector<48x32xf32>
      %67 = arith.mulf %66, %66 : vector<48x32xf32>
      %cst_35 = arith.constant dense<0.000000e+00> : vector<48xf32>
      %68 = vector.multi_reduction <add>, %67, %cst_35 [1] : vector<48x32xf32> to vector<48xf32>
      %69 = vector.shape_cast %68 : vector<48xf32> to vector<48x1xf32>
      %cst_36 = arith.constant 3.200000e+01 : f32
      %70 = vector.broadcast %cst_36 : f32 to vector<48x1xf32>
      %71 = arith.divf %69, %70 : vector<48x1xf32>
      %72 = vector.broadcast %64 : vector<48x1xf32> to vector<48x32xf32>
      %73 = arith.subf %60, %72 : vector<48x32xf32>
      %cst_37 = arith.constant 9.99999974E-6 : f32
      %74 = vector.broadcast %cst_37 : f32 to vector<48x1xf32>
      %75 = arith.addf %71, %74 : vector<48x1xf32>
      %76 = math.rsqrt %75 : vector<48x1xf32>
      %77 = vector.broadcast %76 : vector<48x1xf32> to vector<48x32xf32>
      %78 = arith.mulf %73, %77 : vector<48x32xf32>
      %c0_38 = arith.constant 0 : index
      %c0_39 = arith.constant 0 : index
      %79 = vector.load %arg3[%c0_38, %c0_39] : memref<1x32xf32, #tpu.memory_space<vmem>>, vector<1x32xf32>
      %80 = vector.broadcast %79 : vector<1x32xf32> to vector<48x32xf32>
      %81 = arith.mulf %78, %80 : vector<48x32xf32>
      %c0_40 = arith.constant 0 : index
      %c0_41 = arith.constant 0 : index
      %82 = vector.load %arg4[%c0_40, %c0_41] : memref<1x32xf32, #tpu.memory_space<vmem>>, vector<1x32xf32>
      %83 = vector.broadcast %82 : vector<1x32xf32> to vector<48x32xf32>
      %84 = arith.addf %81, %83 : vector<48x32xf32>
      %85 = arith.truncf %84 : vector<48x32xf32> to vector<48x32xbf16>
      %c0_42 = arith.constant 0 : index
      %c0_43 = arith.constant 0 : index
      %86 = vector.load %arg11[%c0_42, %c0_43] : memref<48x32xbf16, #tpu.memory_space<vmem>>, vector<48x32xbf16>
      tpu.vector_store %arg11[%c0_42, %c0_43], %85 {strides = array<i32>} : memref<48x32xbf16, #tpu.memory_space<vmem>>, vector<48x32xbf16>,
      %cst_44 = arith.constant 0.000000e+00 : f32
      %87 = vector.broadcast %cst_44 : f32 to vector<48x32xf32>
      %c0_45 = arith.constant 0 : index
      %c0_46 = arith.constant 0 : index
      %88 = vector.load %arg12[%c0_45, %c0_46] : memref<48x32xf32, #tpu.memory_space<vmem>>, vector<48x32xf32>
      tpu.vector_store %arg12[%c0_45, %c0_46], %87 {strides = array<i32>} : memref<48x32xf32, #tpu.memory_space<vmem>>, vector<48x32xf32>,
    } else {
    }
    %c0 = arith.constant 0 : index
    %c0_1 = arith.constant 0 : index
    %3 = vector.load %arg11[%c0, %c0_1] : memref<48x32xbf16, #tpu.memory_space<vmem>>, vector<48x32xbf16>
    %c0_2 = arith.constant 0 : index
    %c0_3 = arith.constant 0 : index
    %4 = vector.load %arg5[%c0_2, %c0_3] : memref<32x64xbf16, #tpu.memory_space<vmem>>, vector<32x64xbf16>
    %cst = arith.constant dense<0.000000e+00> : vector<48x64xf32>
    %5 = tpu.matmul %3, %4, %cst {dimension_numbers = #tpu.dot_dimension_numbers<[1], [0], [0], [1], [0, 0, 1, 1], [], []>} : vector<48x32xbf16>, vector<32x64xbf16>, vector<48x64xf32> -> vector<48x64xf32>
    %c0_4 = arith.constant 0 : index
    %c0_5 = arith.constant 0 : index
    %6 = vector.load %arg6[%c0_4, %c0_5] : memref<1x64xf32, #tpu.memory_space<vmem>>, vector<1x64xf32>
    %7 = vector.broadcast %6 : vector<1x64xf32> to vector<48x64xf32>
    %8 = arith.addf %5, %7 : vector<48x64xf32>
    %cst_6 = arith.constant 5.000000e-01 : f32
    %9 = vector.broadcast %cst_6 : f32 to vector<48x64xf32>
    %10 = arith.mulf %9, %8 : vector<48x64xf32>
    %cst_7 = arith.constant 0.707106769 : f32
    %11 = vector.broadcast %cst_7 : f32 to vector<48x64xf32>
    %12 = arith.mulf %8, %11 : vector<48x64xf32>
    %cst_8 = arith.constant 0.000000e+00 : f32
    %13 = vector.broadcast %cst_8 : f32 to vector<48x64xf32>
    %14 = arith.cmpf oge, %12, %13 : vector<48x64xf32>
    %cst_9 = arith.constant 1.000000e+00 : f32
    %cst_10 = arith.constant -1.000000e+00 : f32
    %15 = vector.broadcast %cst_9 : f32 to vector<48x64xf32>
    %16 = vector.broadcast %cst_10 : f32 to vector<48x64xf32>
    %17 = arith.select %14, %15, %16 : vector<48x64xi1>, vector<48x64xf32>
    %18 = math.absf %12 : vector<48x64xf32>
    %cst_11 = arith.constant 0.327591091 : f32
    %19 = vector.broadcast %cst_11 : f32 to vector<48x64xf32>
    %20 = arith.mulf %19, %18 : vector<48x64xf32>
    %cst_12 = arith.constant 1.000000e+00 : f32
    %21 = vector.broadcast %cst_12 : f32 to vector<48x64xf32>
    %22 = arith.addf %21, %20 : vector<48x64xf32>
    %cst_13 = arith.constant 1.000000e+00 : f32
    %23 = vector.broadcast %cst_13 : f32 to vector<48x64xf32>
    %24 = arith.divf %23, %22 : vector<48x64xf32>
    %cst_14 = arith.constant 1.06140542 : f32
    %25 = vector.broadcast %cst_14 : f32 to vector<48x64xf32>
    %26 = arith.mulf %25, %24 : vector<48x64xf32>
    %cst_15 = arith.constant -1.45315206 : f32
    %27 = vector.broadcast %cst_15 : f32 to vector<48x64xf32>
    %28 = arith.addf %26, %27 : vector<48x64xf32>
    %29 = arith.mulf %28, %24 : vector<48x64xf32>
    %cst_16 = arith.constant 1.42141378 : f32
    %30 = vector.broadcast %cst_16 : f32 to vector<48x64xf32>
    %31 = arith.addf %29, %30 : vector<48x64xf32>
    %32 = arith.mulf %31, %24 : vector<48x64xf32>
    %cst_17 = arith.constant -0.284496725 : f32
    %33 = vector.broadcast %cst_17 : f32 to vector<48x64xf32>
    %34 = arith.addf %32, %33 : vector<48x64xf32>
    %35 = arith.mulf %34, %24 : vector<48x64xf32>
    %cst_18 = arith.constant 0.254829586 : f32
    %36 = vector.broadcast %cst_18 : f32 to vector<48x64xf32>
    %37 = arith.addf %35, %36 : vector<48x64xf32>
    %38 = arith.mulf %37, %24 : vector<48x64xf32>
    %cst_19 = arith.constant 0.000000e+00 : f32
    %39 = vector.broadcast %cst_19 : f32 to vector<48x64xf32>
    %40 = arith.subf %39, %18 : vector<48x64xf32>
    %41 = arith.mulf %40, %18 : vector<48x64xf32>
    %42 = math.exp %41 : vector<48x64xf32>
    %43 = arith.mulf %38, %42 : vector<48x64xf32>
    %cst_20 = arith.constant 1.000000e+00 : f32
    %44 = vector.broadcast %cst_20 : f32 to vector<48x64xf32>
    %45 = arith.subf %44, %43 : vector<48x64xf32>
    %46 = arith.mulf %17, %45 : vector<48x64xf32>
    %cst_21 = arith.constant 1.000000e+00 : f32
    %47 = vector.broadcast %cst_21 : f32 to vector<48x64xf32>
    %48 = arith.addf %47, %46 : vector<48x64xf32>
    %49 = arith.mulf %10, %48 : vector<48x64xf32>
    %c0_22 = arith.constant 0 : index
    %c0_23 = arith.constant 0 : index
    %50 = vector.load %arg12[%c0_22, %c0_23] : memref<48x32xf32, #tpu.memory_space<vmem>>, vector<48x32xf32>
    %51 = arith.truncf %49 : vector<48x64xf32> to vector<48x64xbf16>
    %c0_24 = arith.constant 0 : index
    %c0_25 = arith.constant 0 : index
    %52 = vector.load %arg7[%c0_24, %c0_25] : memref<64x32xbf16, #tpu.memory_space<vmem>>, vector<64x32xbf16>
    %cst_26 = arith.constant dense<0.000000e+00> : vector<48x32xf32>
    %53 = tpu.matmul %51, %52, %cst_26 {dimension_numbers = #tpu.dot_dimension_numbers<[1], [0], [0], [1], [0, 0, 1, 1], [], []>} : vector<48x64xbf16>, vector<64x32xbf16>, vector<48x32xf32> -> vector<48x32xf32>
    %54 = arith.addf %50, %53 : vector<48x32xf32>
    %c0_27 = arith.constant 0 : index
    %c0_28 = arith.constant 0 : index
    %55 = vector.load %arg12[%c0_27, %c0_28] : memref<48x32xf32, #tpu.memory_space<vmem>>, vector<48x32xf32>
    tpu.vector_store %arg12[%c0_27, %c0_28], %54 {strides = array<i32>} : memref<48x32xf32, #tpu.memory_space<vmem>>, vector<48x32xf32>,
    %c0_i32_29 = arith.constant 0 : i32
    %56 = arith.cmpi eq, %arg1, %c0_i32_29 : i32
    %57 = arith.extui %56 : i1 to i32
    %c0_i32_30 = arith.constant 0 : i32
    %58 = arith.cmpi ne, %57, %c0_i32_30 : i32
    scf.if %58 {
      %c0_31 = arith.constant 0 : index
      %c0_32 = arith.constant 0 : index
      %59 = vector.load %arg12[%c0_31, %c0_32] : memref<48x32xf32, #tpu.memory_space<vmem>>, vector<48x32xf32>
      %c0_33 = arith.constant 0 : index
      %c0_34 = arith.constant 0 : index
      %60 = vector.load %arg8[%c0_33, %c0_34] : memref<1x32xf32, #tpu.memory_space<vmem>>, vector<1x32xf32>
      %61 = vector.broadcast %60 : vector<1x32xf32> to vector<48x32xf32>
      %62 = arith.addf %59, %61 : vector<48x32xf32>
      %c0_35 = arith.constant 0 : index
      %c0_36 = arith.constant 0 : index
      %63 = vector.load %arg9[%c0_35, %c0_36] : memref<48x32xbf16, #tpu.memory_space<vmem>>, vector<48x32xbf16>
      %64 = arith.extf %63 : vector<48x32xbf16> to vector<48x32xf32>
      %65 = arith.addf %62, %64 : vector<48x32xf32>
      %66 = arith.truncf %65 : vector<48x32xf32> to vector<48x32xbf16>
      %c0_37 = arith.constant 0 : index
      %c0_38 = arith.constant 0 : index
      %67 = vector.load %arg10[%c0_37, %c0_38] : memref<48x32xbf16, #tpu.memory_space<vmem>>, vector<48x32xbf16>
      tpu.vector_store %arg10[%c0_37, %c0_38], %66 {strides = array<i32>} : memref<48x32xbf16, #tpu.memory_space<vmem>>, vector<48x32xbf16>,
    } else {
    }
    return
  }
  func.func @transform_0(%arg0: i32, %arg1: i32) -> (i32, i32) {
    %c0_i32 = arith.constant 0 : i32
    %c0_i32_0 = arith.constant 0 : i32
    return %arg0, %c0_i32 : i32, i32
  }
  func.func @transform_1(%arg0: i32, %arg1: i32) -> (i32, i32) {
    %c0_i32 = arith.constant 0 : i32
    %c0_i32_0 = arith.constant 0 : i32
    %c0_i32_1 = arith.constant 0 : i32
    return %c0_i32, %c0_i32_0 : i32, i32
  }
  func.func @transform_2(%arg0: i32, %arg1: i32) -> (i32, i32) {
    %c0_i32 = arith.constant 0 : i32
    %c0_i32_0 = arith.constant 0 : i32
    %c0_i32_1 = arith.constant 0 : i32
    return %c0_i32, %c0_i32_0 : i32, i32
  }
  func.func @transform_3(%arg0: i32, %arg1: i32) -> (i32, i32) {
    %c0_i32 = arith.constant 0 : i32
    %c0_i32_0 = arith.constant 0 : i32
    return %c0_i32, %arg1 : i32, i32
  }
  func.func @transform_4(%arg0: i32, %arg1: i32) -> (i32, i32) {
    %c0_i32 = arith.constant 0 : i32
    %c0_i32_0 = arith.constant 0 : i32
    return %c0_i32, %arg1 : i32, i32
  }
  func.func @transform_5(%arg0: i32, %arg1: i32) -> (i32, i32) {
    %c0_i32 = arith.constant 0 : i32
    %c0_i32_0 = arith.constant 0 : i32
    return %arg1, %c0_i32 : i32, i32
  }
  func.func @transform_6(%arg0: i32, %arg1: i32) -> (i32, i32) {
    %c0_i32 = arith.constant 0 : i32
    %c0_i32_0 = arith.constant 0 : i32
    %c0_i32_1 = arith.constant 0 : i32
    return %c0_i32, %c0_i32_0 : i32, i32
  }
  func.func @transform_7(%arg0: i32, %arg1: i32) -> (i32, i32) {
    %c0_i32 = arith.constant 0 : i32
    %c0_i32_0 = arith.constant 0 : i32
    return %arg0, %c0_i32 : i32, i32
  }
  func.func @transform_8(%arg0: i32, %arg1: i32) -> (i32, i32) {
    %c0_i32 = arith.constant 0 : i32
    %c0_i32_0 = arith.constant 0 : i32
    return %arg0, %c0_i32 : i32, i32
  }
}

module attributes {stable_mosaic.version = 11 : i64} {
  func.func @_ln_linear_kernel(%arg0: i32, %arg1: i32, %arg2: memref<8x32xbf16, #tpu.memory_space<vmem>>, %arg3: memref<1x32xf32, #tpu.memory_space<vmem>>, %arg4: memref<1x32xf32, #tpu.memory_space<vmem>>, %arg5: memref<32x128xbf16, #tpu.memory_space<vmem>>, %arg6: memref<1x128xf32, #tpu.memory_space<vmem>>, %arg7: memref<8x128xbf16, #tpu.memory_space<vmem>>, %arg8: memref<8x32xbf16, #tpu.memory_space<vmem>>) attributes {dimension_semantics = [#tpu.dimension_semantics<parallel>, #tpu.dimension_semantics<arbitrary>], iteration_bounds = array<i64: 1, 1>, scalar_prefetch = 0 : i64, scratch_operands = 1 : i64, tpu.core_type = #tpu.core_type<tc>, window_params = [{transform_indices = @transform_0, window_bounds = array<i64: 8, 32>}, {pipeline_mode = #tpu.pipeline_mode<synchronous>, transform_indices = @transform_1, window_bounds = array<i64: 1, 32>}, {pipeline_mode = #tpu.pipeline_mode<synchronous>, transform_indices = @transform_2, window_bounds = array<i64: 1, 32>}, {transform_indices = @transform_3, window_bounds = array<i64: 32, 128>}, {transform_indices = @transform_4, window_bounds = array<i64: 1, 128>}, {transform_indices = @transform_5, window_bounds = array<i64: 8, 128>}]} {
    %c0_i32 = arith.constant 0 : i32
    %0 = arith.cmpi eq, %arg1, %c0_i32 : i32
    %1 = arith.extui %0 : i1 to i32
    %c0_i32_0 = arith.constant 0 : i32
    %2 = arith.cmpi ne, %1, %c0_i32_0 : i32
    scf.if %2 {
      %c0_8 = arith.constant 0 : index
      %c0_9 = arith.constant 0 : index
      %11 = vector.load %arg2[%c0_8, %c0_9] : memref<8x32xbf16, #tpu.memory_space<vmem>>, vector<8x32xbf16>
      %12 = arith.extf %11 : vector<8x32xbf16> to vector<8x32xf32>
      %cst_10 = arith.constant dense<0.000000e+00> : vector<8xf32>
      %13 = vector.multi_reduction <add>, %12, %cst_10 [1] : vector<8x32xf32> to vector<8xf32>
      %14 = vector.shape_cast %13 : vector<8xf32> to vector<8x1xf32>
      %cst_11 = arith.constant 3.200000e+01 : f32
      %15 = vector.broadcast %cst_11 : f32 to vector<8x1xf32>
      %16 = arith.divf %14, %15 : vector<8x1xf32>
      %17 = vector.broadcast %16 : vector<8x1xf32> to vector<8x32xf32>
      %18 = arith.subf %12, %17 : vector<8x32xf32>
      %19 = arith.mulf %18, %18 : vector<8x32xf32>
      %cst_12 = arith.constant dense<0.000000e+00> : vector<8xf32>
      %20 = vector.multi_reduction <add>, %19, %cst_12 [1] : vector<8x32xf32> to vector<8xf32>
      %21 = vector.shape_cast %20 : vector<8xf32> to vector<8x1xf32>
      %cst_13 = arith.constant 3.200000e+01 : f32
      %22 = vector.broadcast %cst_13 : f32 to vector<8x1xf32>
      %23 = arith.divf %21, %22 : vector<8x1xf32>
      %24 = vector.broadcast %16 : vector<8x1xf32> to vector<8x32xf32>
      %25 = arith.subf %12, %24 : vector<8x32xf32>
      %cst_14 = arith.constant 9.99999974E-6 : f32
      %26 = vector.broadcast %cst_14 : f32 to vector<8x1xf32>
      %27 = arith.addf %23, %26 : vector<8x1xf32>
      %28 = math.rsqrt %27 : vector<8x1xf32>
      %29 = vector.broadcast %28 : vector<8x1xf32> to vector<8x32xf32>
      %30 = arith.mulf %25, %29 : vector<8x32xf32>
      %c0_15 = arith.constant 0 : index
      %c0_16 = arith.constant 0 : index
      %31 = vector.load %arg3[%c0_15, %c0_16] : memref<1x32xf32, #tpu.memory_space<vmem>>, vector<1x32xf32>
      %32 = vector.broadcast %31 : vector<1x32xf32> to vector<8x32xf32>
      %33 = arith.mulf %30, %32 : vector<8x32xf32>
      %c0_17 = arith.constant 0 : index
      %c0_18 = arith.constant 0 : index
      %34 = vector.load %arg4[%c0_17, %c0_18] : memref<1x32xf32, #tpu.memory_space<vmem>>, vector<1x32xf32>
      %35 = vector.broadcast %34 : vector<1x32xf32> to vector<8x32xf32>
      %36 = arith.addf %33, %35 : vector<8x32xf32>
      %37 = arith.truncf %36 : vector<8x32xf32> to vector<8x32xbf16>
      %c0_19 = arith.constant 0 : index
      %c0_20 = arith.constant 0 : index
      %38 = vector.load %arg8[%c0_19, %c0_20] : memref<8x32xbf16, #tpu.memory_space<vmem>>, vector<8x32xbf16>
      tpu.vector_store %arg8[%c0_19, %c0_20], %37 {strides = array<i32>} : memref<8x32xbf16, #tpu.memory_space<vmem>>, vector<8x32xbf16>,
    } else {
    }
    %c0 = arith.constant 0 : index
    %c0_1 = arith.constant 0 : index
    %3 = vector.load %arg8[%c0, %c0_1] : memref<8x32xbf16, #tpu.memory_space<vmem>>, vector<8x32xbf16>
    %c0_2 = arith.constant 0 : index
    %c0_3 = arith.constant 0 : index
    %4 = vector.load %arg5[%c0_2, %c0_3] : memref<32x128xbf16, #tpu.memory_space<vmem>>, vector<32x128xbf16>
    %cst = arith.constant dense<0.000000e+00> : vector<8x128xf32>
    %5 = tpu.matmul %3, %4, %cst {dimension_numbers = #tpu.dot_dimension_numbers<[1], [0], [0], [1], [0, 0, 1, 1], [], []>} : vector<8x32xbf16>, vector<32x128xbf16>, vector<8x128xf32> -> vector<8x128xf32>
    %c0_4 = arith.constant 0 : index
    %c0_5 = arith.constant 0 : index
    %6 = vector.load %arg6[%c0_4, %c0_5] : memref<1x128xf32, #tpu.memory_space<vmem>>, vector<1x128xf32>
    %7 = vector.broadcast %6 : vector<1x128xf32> to vector<8x128xf32>
    %8 = arith.addf %5, %7 : vector<8x128xf32>
    %9 = arith.truncf %8 : vector<8x128xf32> to vector<8x128xbf16>
    %c0_6 = arith.constant 0 : index
    %c0_7 = arith.constant 0 : index
    %10 = vector.load %arg7[%c0_6, %c0_7] : memref<8x128xbf16, #tpu.memory_space<vmem>>, vector<8x128xbf16>
    tpu.vector_store %arg7[%c0_6, %c0_7], %9 {strides = array<i32>} : memref<8x128xbf16, #tpu.memory_space<vmem>>, vector<8x128xbf16>,
    return
  }
  func.func @transform_0(%arg0: i32, %arg1: i32) -> (i32, i32) {
    %c0_i32 = arith.constant 0 : i32
    %c0_i32_0 = arith.constant 0 : i32
    return %arg0, %c0_i32 : i32, i32
  }
  func.func @transform_1(%arg0: i32, %arg1: i32) -> (i32, i32) {
    %c0_i32 = arith.constant 0 : i32
    %c0_i32_0 = arith.constant 0 : i32
    %c0_i32_1 = arith.constant 0 : i32
    return %c0_i32, %c0_i32_0 : i32, i32
  }
  func.func @transform_2(%arg0: i32, %arg1: i32) -> (i32, i32) {
    %c0_i32 = arith.constant 0 : i32
    %c0_i32_0 = arith.constant 0 : i32
    %c0_i32_1 = arith.constant 0 : i32
    return %c0_i32, %c0_i32_0 : i32, i32
  }
  func.func @transform_3(%arg0: i32, %arg1: i32) -> (i32, i32) {
    %c0_i32 = arith.constant 0 : i32
    %c0_i32_0 = arith.constant 0 : i32
    return %c0_i32, %arg1 : i32, i32
  }
  func.func @transform_4(%arg0: i32, %arg1: i32) -> (i32, i32) {
    %c0_i32 = arith.constant 0 : i32
    %c0_i32_0 = arith.constant 0 : i32
    return %c0_i32, %arg1 : i32, i32
  }
  func.func @transform_5(%arg0: i32, %arg1: i32) -> (i32, i32) {
    %c0_i32 = arith.constant 0 : i32
    return %arg0, %arg1 : i32, i32
  }
}

module attributes {stable_mosaic.version = 11 : i64} {
  func.func @_matmul_kernel(%arg0: i32, %arg1: i32, %arg2: i32, %arg3: memref<8x64xbf16, #tpu.memory_space<vmem>>, %arg4: memref<64x128xbf16, #tpu.memory_space<vmem>>, %arg5: memref<1x128xf32, #tpu.memory_space<vmem>>, %arg6: memref<8x128xf32, #tpu.memory_space<vmem>>, %arg7: memref<8x128xf32, #tpu.memory_space<vmem>>) attributes {dimension_semantics = [#tpu.dimension_semantics<parallel>, #tpu.dimension_semantics<parallel>, #tpu.dimension_semantics<arbitrary>], iteration_bounds = array<i64: 1, 1, 1>, scalar_prefetch = 0 : i64, scratch_operands = 1 : i64, tpu.core_type = #tpu.core_type<tc>, window_params = [{transform_indices = @transform_0, window_bounds = array<i64: 8, 64>}, {transform_indices = @transform_1, window_bounds = array<i64: 64, 128>}, {transform_indices = @transform_2, window_bounds = array<i64: 1, 128>}, {transform_indices = @transform_3, window_bounds = array<i64: 8, 128>}]} {
    %c0_i32 = arith.constant 0 : i32
    %0 = arith.cmpi eq, %arg2, %c0_i32 : i32
    %1 = arith.extui %0 : i1 to i32
    %c0_i32_0 = arith.constant 0 : i32
    %2 = arith.cmpi ne, %1, %c0_i32_0 : i32
    scf.if %2 {
      %cst_10 = arith.constant 0.000000e+00 : f32
      %12 = vector.broadcast %cst_10 : f32 to vector<8x128xf32>
      %c0_11 = arith.constant 0 : index
      %c0_12 = arith.constant 0 : index
      %13 = vector.load %arg7[%c0_11, %c0_12] : memref<8x128xf32, #tpu.memory_space<vmem>>, vector<8x128xf32>
      tpu.vector_store %arg7[%c0_11, %c0_12], %12 {strides = array<i32>} : memref<8x128xf32, #tpu.memory_space<vmem>>, vector<8x128xf32>,
    } else {
    }
    %c0 = arith.constant 0 : index
    %c0_1 = arith.constant 0 : index
    %3 = vector.load %arg7[%c0, %c0_1] : memref<8x128xf32, #tpu.memory_space<vmem>>, vector<8x128xf32>
    %c0_2 = arith.constant 0 : index
    %c0_3 = arith.constant 0 : index
    %4 = vector.load %arg3[%c0_2, %c0_3] : memref<8x64xbf16, #tpu.memory_space<vmem>>, vector<8x64xbf16>
    %c0_4 = arith.constant 0 : index
    %c0_5 = arith.constant 0 : index
    %5 = vector.load %arg4[%c0_4, %c0_5] : memref<64x128xbf16, #tpu.memory_space<vmem>>, vector<64x128xbf16>
    %cst = arith.constant dense<0.000000e+00> : vector<8x128xf32>
    %6 = tpu.matmul %4, %5, %cst {dimension_numbers = #tpu.dot_dimension_numbers<[1], [0], [0], [1], [0, 0, 1, 1], [], []>} : vector<8x64xbf16>, vector<64x128xbf16>, vector<8x128xf32> -> vector<8x128xf32>
    %7 = arith.addf %3, %6 : vector<8x128xf32>
    %c0_6 = arith.constant 0 : index
    %c0_7 = arith.constant 0 : index
    %8 = vector.load %arg7[%c0_6, %c0_7] : memref<8x128xf32, #tpu.memory_space<vmem>>, vector<8x128xf32>
    tpu.vector_store %arg7[%c0_6, %c0_7], %7 {strides = array<i32>} : memref<8x128xf32, #tpu.memory_space<vmem>>, vector<8x128xf32>,
    %c0_i32_8 = arith.constant 0 : i32
    %9 = arith.cmpi eq, %arg2, %c0_i32_8 : i32
    %10 = arith.extui %9 : i1 to i32
    %c0_i32_9 = arith.constant 0 : i32
    %11 = arith.cmpi ne, %10, %c0_i32_9 : i32
    scf.if %11 {
      %c0_10 = arith.constant 0 : index
      %c0_11 = arith.constant 0 : index
      %12 = vector.load %arg7[%c0_10, %c0_11] : memref<8x128xf32, #tpu.memory_space<vmem>>, vector<8x128xf32>
      %c0_12 = arith.constant 0 : index
      %c0_13 = arith.constant 0 : index
      %13 = vector.load %arg5[%c0_12, %c0_13] : memref<1x128xf32, #tpu.memory_space<vmem>>, vector<1x128xf32>
      %14 = vector.broadcast %13 : vector<1x128xf32> to vector<8x128xf32>
      %15 = arith.addf %12, %14 : vector<8x128xf32>
      %c0_14 = arith.constant 0 : index
      %c0_15 = arith.constant 0 : index
      %16 = vector.load %arg6[%c0_14, %c0_15] : memref<8x128xf32, #tpu.memory_space<vmem>>, vector<8x128xf32>
      tpu.vector_store %arg6[%c0_14, %c0_15], %15 {strides = array<i32>} : memref<8x128xf32, #tpu.memory_space<vmem>>, vector<8x128xf32>,
    } else {
    }
    return
  }
  func.func @transform_0(%arg0: i32, %arg1: i32, %arg2: i32) -> (i32, i32) {
    %c0_i32 = arith.constant 0 : i32
    return %arg0, %arg2 : i32, i32
  }
  func.func @transform_1(%arg0: i32, %arg1: i32, %arg2: i32) -> (i32, i32) {
    %c0_i32 = arith.constant 0 : i32
    return %arg2, %arg1 : i32, i32
  }
  func.func @transform_2(%arg0: i32, %arg1: i32, %arg2: i32) -> (i32, i32) {
    %c0_i32 = arith.constant 0 : i32
    %c0_i32_0 = arith.constant 0 : i32
    return %c0_i32, %arg1 : i32, i32
  }
  func.func @transform_3(%arg0: i32, %arg1: i32, %arg2: i32) -> (i32, i32) {
    %c0_i32 = arith.constant 0 : i32
    return %arg0, %arg1 : i32, i32
  }
}

</mosaic_0001>

<llo_original>
// kernel: lli_transformer_forward.13
$region0: #{lli_transformer_forward.13}
  #allocation0 [shape = 'u32[]', space=smem, size = 0x4, offset = 0x4, fixed_abs, tag = 'smem constant byte address 0x4 - core index']
  #allocation1 [shape = 'u32[144,128]{1,0:T(1,128)}', space=vmem, size = 0x12000, scoped, tag = 'internal scratch']
  #allocation2 [shape = 'f32[32,128]{1,0:T(8,128)}', space=vmem, size = 0x4000, scoped, tag = 'scratch operand']
  %s0 = inlined_call_operand.hbm [shape: bf16[32,32], index: 0, kind: input, shape index: {}]
  %s1 = inlined_call_operand.hbm [shape: bf16[32,128], index: 1, kind: input, shape index: {}]
  %s2 = inlined_call_operand.hbm [shape: f32[1,128], index: 2, kind: input, shape index: {}]
  %s3 = inlined_call_operand.hbm [shape: bf16[32,128], index: 3, kind: output, shape index: {}]
  %s4 = sld [smem:[#allocation0]]
  $region42: #{lli_transformer_forward.13} parent=0
    _
  %s6 = ssub.s32 1, %s4
  %s7 = scalar_select 0, %s6, %s4
  $region1: #{lli_transformer_forward.13} parent=0
    #allocation3 [shape = 'u8[8192]{0}', space=vmem, size = 0x2000, scoped, tag = 'input window, operand 0, single buffered']
    #allocation4 [shape = 's32[1]{0}', space=sflag, size = 0x4, scoped, tag = 'scoped memory for lli_transformer_forward.13']
    #allocation5 [shape = 's32[1]{0}', space=sflag, size = 0x4, scoped, tag = 'scoped memory for lli_transformer_forward.13']
    #allocation6 [shape = 'u8[8192]{0}', space=vmem, size = 0x2000, scoped, tag = 'input window, operand 1, single buffered']
    #allocation7 [shape = 's32[1]{0}', space=sflag, size = 0x4, scoped, tag = 'scoped memory for lli_transformer_forward.13']
    #allocation8 [shape = 'u8[512]{0}', space=vmem, size = 0x400, scoped, tag = 'input window, operand 2, single buffered']
    #allocation9 [shape = 'u8[8192]{0}', space=vmem, size = 0x2000, scoped, tag = 'output window, operand 0, single buffered']
    %8 = vsyncpa [#allocation4], 0
    %9 = vsyncpa [#allocation7], 0
    %10 = vsyncpa [#allocation5], 0
    // Predicated region
    $region2: #{lli_transformer_forward.13} parent=1 // pred_check
      _
    $region3: #{lli_transformer_forward.13} parent=1 // pred_check_branch
      %12 = sbr.rel (0) target = $region5
    $region4: #{lli_transformer_forward.13} parent=1 // pred_region
      %s14 = ssub.s32 256, 256
      %15 = vsyncadd [#allocation4], %s14
      %s16 = sshll.u32 [#allocation3], 4
      %s17 = int_to_ptr.vmem [resolvable:$true] %s16
      %22 = dma.hbm_to_vmem [thread:$0]  %s0, 256, %s17, [#allocation4], 64, 64, 4
    $region5: #{lli_transformer_forward.13} parent=1 // pred_fallthru
      _
    // Predicated region
    $region6: #{lli_transformer_forward.13} parent=1 // pred_check
      _
    $region7: #{lli_transformer_forward.13} parent=1 // pred_check_branch
      %24 = sbr.rel (0) target = $region9
    $region8: #{lli_transformer_forward.13} parent=1 // pred_region
      %s26 = ssub.s32 256, 256
      %27 = vsyncadd [#allocation7], %s26
      %s28 = sshll.u32 [#allocation6], 4
      %s29 = int_to_ptr.vmem [resolvable:$true] %s28
      %34 = dma.hbm_to_vmem [thread:$0]  %s1, 256, %s29, [#allocation7], 64, 64, 4
    $region9: #{lli_transformer_forward.13} parent=1 // pred_fallthru
      _
    // Predicated region
    $region10: #{lli_transformer_forward.13} parent=1 // pred_check
      _
    $region11: #{lli_transformer_forward.13} parent=1 // pred_check_branch
      %36 = sbr.rel (0) target = $region13
    $region12: #{lli_transformer_forward.13} parent=1 // pred_region
      %s38 = ssub.s32 16, 16
      %39 = vsyncadd [#allocation7], %s38
      %s41 = sshll.u32 [#allocation8], 4
      %s42 = int_to_ptr.vmem [resolvable:$true] %s41
      %44 = dma.hbm_to_vmem [thread:$0]  %s2, 16, %s42, [#allocation7]
    $region13: #{lli_transformer_forward.13} parent=1 // pred_fallthru
      _
    // Predicated region
    $region14: #{lli_transformer_forward.13} parent=1 // pred_check
      _
    $region15: #{lli_transformer_forward.13} parent=1 // pred_check_branch
      %46 = sbr.rel (0) target = $region17
    $region16: #{lli_transformer_forward.13} parent=1 // pred_region
      %47 = dma.done [#allocation4], 256
    $region17: #{lli_transformer_forward.13} parent=1 // pred_fallthru
      _
    // Predicated region
    $region18: #{lli_transformer_forward.13} parent=1 // pred_check
      _
    $region19: #{lli_transformer_forward.13} parent=1 // pred_check_branch
      %49 = sbr.rel (0) target = $region21
    $region20: #{lli_transformer_forward.13} parent=1 // pred_region
      %50 = dma.done [#allocation7], 256
    $region21: #{lli_transformer_forward.13} parent=1 // pred_fallthru
      _
    // Predicated region
    $region22: #{lli_transformer_forward.13} parent=1 // pred_check
      _
    $region23: #{lli_transformer_forward.13} parent=1 // pred_check_branch
      %52 = sbr.rel (0) target = $region25
    $region24: #{lli_transformer_forward.13} parent=1 // pred_region
      %53 = dma.done [#allocation7], 16
    $region25: #{lli_transformer_forward.13} parent=1 // pred_fallthru
      _
    %p55 = scmp.eq.s32.totalorder 0, 0
    // Predicated region
    $region26: #{lli_transformer_forward.13} parent=1 // pred_check
      %p56 = pneg %p55
    $region27: #{lli_transformer_forward.13} parent=1 // pred_check_branch
      %58 = sbr.rel (%p56) target = $region29
    $region28: #{lli_transformer_forward.13} parent=1 // pred_region
      %59 = vst [vmem:[#allocation2] sm:$0xff] 0.0
      %60 = vst [vmem:[#allocation2 + $0x8] sm:$0xff] 0.0
      %61 = vst [vmem:[#allocation2 + $0x10] sm:$0xff] 0.0
      %62 = vst [vmem:[#allocation2 + $0x18] sm:$0xff] 0.0
    $region29: #{lli_transformer_forward.13} parent=1 // pred_fallthru
      _
    %v63 = vld [vmem:[#allocation2] sm:$0xff]
    %v64 = vld [vmem:[#allocation2 + $0x8] sm:$0xff]
    %v65 = vld [vmem:[#allocation2 + $0x10] sm:$0xff]
    %v66 = vld [vmem:[#allocation2 + $0x18] sm:$0xff]
    %v67 = vld [vmem:[#allocation3] sm:$0xf]
    %v68 = vld [vmem:[#allocation3 + $0x4] sm:$0xf]
    %v69 = vld [vmem:[#allocation3 + $0x8] sm:$0xf]
    %v70 = vld [vmem:[#allocation3 + $0xc] sm:$0xf]
    %v71 = vld [vmem:[#allocation6] sm:$0xf]
    %v72 = vld [vmem:[#allocation6 + $0x4] sm:$0xf]
    %v73 = vld [vmem:[#allocation6 + $0x8] sm:$0xf]
    %v74 = vld [vmem:[#allocation6 + $0xc] sm:$0xf]
    %v79 = vunpack.c.l.b16 %v67
    %v80 = vunpack.c.l.b16 %v68
    %v81 = vunpack.c.l.b16 %v69
    %v82 = vunpack.c.l.b16 %v70
    %v83 = vpack.c.b16 %v80, %v79
    %v84 = vpack.c.b16 %v82, %v81
    %v89 = vunpack.c.l.b16 %v71
    %v90 = vunpack.c.l.b16 %v72
    %v91 = vunpack.c.l.b16 %v73
    %v92 = vunpack.c.l.b16 %v74
    %v93 = vpack.c.b16 %v90, %v89
    %v94 = vpack.c.b16 %v92, %v91
    %vm97 = vcmask 261120
    %v99 = vsel %vm97, %v83, 0
    %v102 = vsel %vm97, %v84, 0
    %104 = vmatprep.subr.bf16.mxu0 0
    %105 = vmatpush1.bf16.msra.mxu0 %v93
    %106 = vmatprep.subr.bf16.mxu0 0
    %107 = vmatpush1.bf16.msra.mxu0 %v94
    %108 = vmatprep.subr.bf16.mxu0 0
    %109 = vmatpush1.bf16.msra.mxu0 0
    %110 = vmatprep.subr.bf16.mxu0 0
    %111 = vmatpush1.bf16.msra.mxu0 0
    %112 = vmatprep.subr.bf16.mxu0 0
    %113 = vmatpush1.bf16.msra.mxu0 0
    %114 = vmatprep.subr.bf16.mxu0 0
    %115 = vmatpush1.bf16.msra.mxu0 0
    %116 = vmatprep.subr.bf16.mxu0 0
    %117 = vmatpush1.bf16.msra.mxu0 0
    %118 = vmatprep.subr.bf16.mxu0 0
    %119 = vmatpush1.bf16.msra.mxu0 0
    %120 = vmatprep.subr.bf16.mxu0 0
    %121 = vmatpush1.bf16.msra.mxu0 0
    %122 = vmatprep.subr.bf16.mxu0 0
    %123 = vmatpush1.bf16.msra.mxu0 0
    %124 = vmatprep.subr.bf16.mxu0 0
    %125 = vmatpush1.bf16.msra.mxu0 0
    %126 = vmatprep.subr.bf16.mxu0 0
    %127 = vmatpush1.bf16.msra.mxu0 0
    %128 = vmatprep.subr.bf16.mxu0 0
    %129 = vmatpush1.bf16.msra.mxu0 0
    %130 = vmatprep.subr.bf16.mxu0 0
    %131 = vmatpush1.bf16.msra.mxu0 0
    %132 = vmatprep.subr.bf16.mxu0 0
    %133 = vmatpush1.bf16.msra.mxu0 0
    %134 = vmatprep.subr.bf16.mxu0 0
    %135 = vmatpush1.bf16.msra.mxu0 0
    %136 = vmatprep.mubr.bf16.mxu0 0
    %137 = vmatmul.mubr.bf16.gmra.mrb[0].mxu0 %v99
    %v138 = vpop.f32.mrb[0].mxu0
    %v139 = vadd.f32 0.0, %v138
    %v140 = vpop.f32.mrb[0].mxu0
    %v141 = vpop.f32.mrb[0].mxu0
    %v142 = vadd.f32 0.0, %v141
    %v143 = vpop.f32.mrb[0].mxu0
    %144 = vmatprep.mubr.bf16.mxu0 0
    %145 = vmatmul.mubr.bf16.gmra.mrb[0].mxu0 %v102
    %v146 = vpop.f32.mrb[0].mxu0
    %v147 = vadd.f32 0.0, %v146
    %v148 = vpop.f32.mrb[0].mxu0
    %v149 = vpop.f32.mrb[0].mxu0
    %v150 = vadd.f32 0.0, %v149
    %v151 = vpop.f32.mrb[0].mxu0
    %152 = vdwg.mxu0
    %v153 = vadd.f32 %v63, %v139
    %v154 = vadd.f32 %v64, %v142
    %v155 = vadd.f32 %v65, %v147
    %v156 = vadd.f32 %v66, %v150
    %157 = vst [vmem:[#allocation2] sm:$0xff] %v153
    %158 = vst [vmem:[#allocation2 + $0x8] sm:$0xff] %v154
    %159 = vst [vmem:[#allocation2 + $0x10] sm:$0xff] %v155
    %160 = vst [vmem:[#allocation2 + $0x18] sm:$0xff] %v156
    // Predicated region
    $region30: #{lli_transformer_forward.13} parent=1 // pred_check
      %p161 = pneg %p55
    $region31: #{lli_transformer_forward.13} parent=1 // pred_check_branch
      %163 = sbr.rel (%p161) target = $region33
    $region32: #{lli_transformer_forward.13} parent=1 // pred_region
      %v164 = vld [vmem:[#allocation2] sm:$0xff]
      %v165 = vld [vmem:[#allocation2 + $0x8] sm:$0xff]
      %v166 = vld [vmem:[#allocation2 + $0x10] sm:$0xff]
      %v167 = vld [vmem:[#allocation2 + $0x18] sm:$0xff]
      %v168 = vld [vmem:[#allocation8] sm:$0x1]
      %v170 = vlaneseq
      %v171 = vshrl.u32 %v170, 7
      %v172 = vsub.s32 0, %v171
      %v173 = vrot.slane %v168, %v172
      %v175 = vadd.f32 %v164, %v173
      %v176 = vadd.f32 %v165, %v173
      %v177 = vadd.f32 %v166, %v173
      %v178 = vadd.f32 %v167, %v173
      %v179 = vpack.c.bf16 %v176, %v175
      %v180 = vpack.c.bf16 %v178, %v177
      %v183 = vunpack.c.l.b16 %v179
      %v184 = vunpack.c.h.b16 %v179
      %v185 = vunpack.c.l.b16 %v180
      %v186 = vunpack.c.h.b16 %v180
      %v187 = vpack.c.b16 %v183, %v183
      %v188 = vpack.c.b16 %v184, %v184
      %v189 = vpack.c.b16 %v185, %v185
      %v190 = vpack.c.b16 %v186, %v186
      %195 = vst [vmem:[#allocation9] sm:$0xf] %v187
      %196 = vst [vmem:[#allocation9 + $0x4] sm:$0xf] %v188
      %197 = vst [vmem:[#allocation9 + $0x8] sm:$0xf] %v189
      %198 = vst [vmem:[#allocation9 + $0xc] sm:$0xf] %v190
    $region33: #{lli_transformer_forward.13} parent=1 // pred_fallthru
      _
    // Predicated region
    $region34: #{lli_transformer_forward.13} parent=1 // pred_check
      _
    $region35: #{lli_transformer_forward.13} parent=1 // pred_check_branch
      %200 = sbr.rel (0) target = $region37
    $region36: #{lli_transformer_forward.13} parent=1 // pred_region
      %s202 = ssub.s32 256, 256
      %203 = vsyncadd [#allocation5], %s202
      %s204 = sshll.u32 [#allocation9], 4
      %s205 = int_to_ptr.vmem [resolvable:$true] %s204
      %210 = dma.vmem_to_hbm [thread:$0]  %s205, 256, %s3, [#allocation5], 64, 64, 4
    $region37: #{lli_transformer_forward.13} parent=1 // pred_fallthru
      _
    // Predicated region
    $region38: #{lli_transformer_forward.13} parent=1 // pred_check
      _
    $region39: #{lli_transformer_forward.13} parent=1 // pred_check_branch
      %212 = sbr.rel (0) target = $region41
    $region40: #{lli_transformer_forward.13} parent=1 // pred_region
      %213 = dma.done [#allocation5], 256
    $region41: #{lli_transformer_forward.13} parent=1 // pred_fallthru
      _
    %214 = vsyncpa [#allocation4], 1
    %215 = vsyncpa [#allocation7], 1
    %216 = vsyncpa [#allocation5], 1

// kernel: lli_transformer_forward.12
$region0: #{lli_transformer_forward.12}
  #allocation0 [shape = 'u32[]', space=smem, size = 0x4, offset = 0x4, fixed_abs, tag = 'smem constant byte address 0x4 - core index']
  #allocation1 [shape = 'u32[144,128]{1,0:T(1,128)}', space=vmem, size = 0x12000, scoped, tag = 'internal scratch']
  #allocation2 [shape = 'f32[128,128]{1,0:T(8,128)}', space=vmem, size = 0x10000, scoped, tag = 'scratch operand']
  %s0 = inlined_call_operand.hbm [shape: bf16[128,12], index: 0, kind: input, shape index: {}]
  %s1 = inlined_call_operand.hbm [shape: bf16[12,128], index: 1, kind: input, shape index: {}]
  %s2 = inlined_call_operand.hbm [shape: f32[1,128], index: 2, kind: input, shape index: {}]
  %s3 = inlined_call_operand.hbm [shape: bf16[128,128], index: 3, kind: output, shape index: {}]
  %s4 = sld [smem:[#allocation0]]
  $region42: #{lli_transformer_forward.12} parent=0
    _
  %s6 = ssub.s32 1, %s4
  %s7 = scalar_select 0, %s6, %s4
  $region1: #{lli_transformer_forward.12} parent=0
    #allocation3 [shape = 'u8[32768]{0}', space=vmem, size = 0x8000, scoped, tag = 'input window, operand 0, single buffered']
    #allocation4 [shape = 's32[1]{0}', space=sflag, size = 0x4, scoped, tag = 'scoped memory for lli_transformer_forward.12']
    #allocation5 [shape = 's32[1]{0}', space=sflag, size = 0x4, scoped, tag = 'scoped memory for lli_transformer_forward.12']
    #allocation6 [shape = 'u8[4096]{0}', space=vmem, size = 0x1000, scoped, tag = 'input window, operand 1, single buffered']
    #allocation7 [shape = 's32[1]{0}', space=sflag, size = 0x4, scoped, tag = 'scoped memory for lli_transformer_forward.12']
    #allocation8 [shape = 'u8[512]{0}', space=vmem, size = 0x400, scoped, tag = 'input window, operand 2, single buffered']
    #allocation9 [shape = 'u8[32768]{0}', space=vmem, size = 0x8000, scoped, tag = 'output window, operand 0, single buffered']
    %8 = vsyncpa [#allocation4], 0
    %9 = vsyncpa [#allocation7], 0
    %10 = vsyncpa [#allocation5], 0
    // Predicated region
    $region2: #{lli_transformer_forward.12} parent=1 // pred_check
      _
    $region3: #{lli_transformer_forward.12} parent=1 // pred_check_branch
      %12 = sbr.rel (0) target = $region5
    $region4: #{lli_transformer_forward.12} parent=1 // pred_region
      %s14 = ssub.s32 1024, 1024
      %15 = vsyncadd [#allocation4], %s14
      %s16 = sshll.u32 [#allocation3], 4
      %s17 = int_to_ptr.vmem [resolvable:$true] %s16
      %22 = dma.hbm_to_vmem [thread:$0]  %s0, 1024, %s17, [#allocation4], 64, 64, 4
    $region5: #{lli_transformer_forward.12} parent=1 // pred_fallthru
      _
    // Predicated region
    $region6: #{lli_transformer_forward.12} parent=1 // pred_check
      _
    $region7: #{lli_transformer_forward.12} parent=1 // pred_check_branch
      %24 = sbr.rel (0) target = $region9
    $region8: #{lli_transformer_forward.12} parent=1 // pred_region
      %s26 = ssub.s32 128, 128
      %27 = vsyncadd [#allocation7], %s26
      %s28 = sshll.u32 [#allocation6], 4
      %s29 = int_to_ptr.vmem [resolvable:$true] %s28
      %34 = dma.hbm_to_vmem [thread:$0]  %s1, 128, %s29, [#allocation7], 64, 64, 4
    $region9: #{lli_transformer_forward.12} parent=1 // pred_fallthru
      _
    // Predicated region
    $region10: #{lli_transformer_forward.12} parent=1 // pred_check
      _
    $region11: #{lli_transformer_forward.12} parent=1 // pred_check_branch
      %36 = sbr.rel (0) target = $region13
    $region12: #{lli_transformer_forward.12} parent=1 // pred_region
      %s38 = ssub.s32 16, 16
      %39 = vsyncadd [#allocation7], %s38
      %s41 = sshll.u32 [#allocation8], 4
      %s42 = int_to_ptr.vmem [resolvable:$true] %s41
      %44 = dma.hbm_to_vmem [thread:$0]  %s2, 16, %s42, [#allocation7]
    $region13: #{lli_transformer_forward.12} parent=1 // pred_fallthru
      _
    // Predicated region
    $region14: #{lli_transformer_forward.12} parent=1 // pred_check
      _
    $region15: #{lli_transformer_forward.12} parent=1 // pred_check_branch
      %46 = sbr.rel (0) target = $region17
    $region16: #{lli_transformer_forward.12} parent=1 // pred_region
      %47 = dma.done [#allocation4], 1024
    $region17: #{lli_transformer_forward.12} parent=1 // pred_fallthru
      _
    // Predicated region
    $region18: #{lli_transformer_forward.12} parent=1 // pred_check
      _
    $region19: #{lli_transformer_forward.12} parent=1 // pred_check_branch
      %49 = sbr.rel (0) target = $region21
    $region20: #{lli_transformer_forward.12} parent=1 // pred_region
      %50 = dma.done [#allocation7], 128
    $region21: #{lli_transformer_forward.12} parent=1 // pred_fallthru
      _
    // Predicated region
    $region22: #{lli_transformer_forward.12} parent=1 // pred_check
      _
    $region23: #{lli_transformer_forward.12} parent=1 // pred_check_branch
      %52 = sbr.rel (0) target = $region25
    $region24: #{lli_transformer_forward.12} parent=1 // pred_region
      %53 = dma.done [#allocation7], 16
    $region25: #{lli_transformer_forward.12} parent=1 // pred_fallthru
      _
    %p55 = scmp.eq.s32.totalorder 0, 0
    // Predicated region
    $region26: #{lli_transformer_forward.12} parent=1 // pred_check
      %p56 = pneg %p55
    $region27: #{lli_transformer_forward.12} parent=1 // pred_check_branch
      %58 = sbr.rel (%p56) target = $region29
    $region28: #{lli_transformer_forward.12} parent=1 // pred_region
      %59 = vst [vmem:[#allocation2] sm:$0xff] 0.0
      %60 = vst [vmem:[#allocation2 + $0x8] sm:$0xff] 0.0
      %61 = vst [vmem:[#allocation2 + $0x10] sm:$0xff] 0.0
      %62 = vst [vmem:[#allocation2 + $0x18] sm:$0xff] 0.0
      %63 = vst [vmem:[#allocation2 + $0x20] sm:$0xff] 0.0
      %64 = vst [vmem:[#allocation2 + $0x28] sm:$0xff] 0.0
      %65 = vst [vmem:[#allocation2 + $0x30] sm:$0xff] 0.0
      %66 = vst [vmem:[#allocation2 + $0x38] sm:$0xff] 0.0
      %67 = vst [vmem:[#allocation2 + $0x40] sm:$0xff] 0.0
      %68 = vst [vmem:[#allocation2 + $0x48] sm:$0xff] 0.0
      %69 = vst [vmem:[#allocation2 + $0x50] sm:$0xff] 0.0
      %70 = vst [vmem:[#allocation2 + $0x58] sm:$0xff] 0.0
      %71 = vst [vmem:[#allocation2 + $0x60] sm:$0xff] 0.0
      %72 = vst [vmem:[#allocation2 + $0x68] sm:$0xff] 0.0
      %73 = vst [vmem:[#allocation2 + $0x70] sm:$0xff] 0.0
      %74 = vst [vmem:[#allocation2 + $0x78] sm:$0xff] 0.0
    $region29: #{lli_transformer_forward.12} parent=1 // pred_fallthru
      _
    %v75 = vld [vmem:[#allocation2] sm:$0xff]
    %v76 = vld [vmem:[#allocation2 + $0x8] sm:$0xff]
    %v77 = vld [vmem:[#allocation2 + $0x10] sm:$0xff]
    %v78 = vld [vmem:[#allocation2 + $0x18] sm:$0xff]
    %v79 = vld [vmem:[#allocation2 + $0x20] sm:$0xff]
    %v80 = vld [vmem:[#allocation2 + $0x28] sm:$0xff]
    %v81 = vld [vmem:[#allocation2 + $0x30] sm:$0xff]
    %v82 = vld [vmem:[#allocation2 + $0x38] sm:$0xff]
    %v83 = vld [vmem:[#allocation2 + $0x40] sm:$0xff]
    %v84 = vld [vmem:[#allocation2 + $0x48] sm:$0xff]
    %v85 = vld [vmem:[#allocation2 + $0x50] sm:$0xff]
    %v86 = vld [vmem:[#allocation2 + $0x58] sm:$0xff]
    %v87 = vld [vmem:[#allocation2 + $0x60] sm:$0xff]
    %v88 = vld [vmem:[#allocation2 + $0x68] sm:$0xff]
    %v89 = vld [vmem:[#allocation2 + $0x70] sm:$0xff]
    %v90 = vld [vmem:[#allocation2 + $0x78] sm:$0xff]
    %v91 = vld [vmem:[#allocation3] sm:$0xf]
    %v92 = vld [vmem:[#allocation3 + $0x4] sm:$0xf]
    %v93 = vld [vmem:[#allocation3 + $0x8] sm:$0xf]
    %v94 = vld [vmem:[#allocation3 + $0xc] sm:$0xf]
    %v95 = vld [vmem:[#allocation3 + $0x10] sm:$0xf]
    %v96 = vld [vmem:[#allocation3 + $0x14] sm:$0xf]
    %v97 = vld [vmem:[#allocation3 + $0x18] sm:$0xf]
    %v98 = vld [vmem:[#allocation3 + $0x1c] sm:$0xf]
    %v99 = vld [vmem:[#allocation3 + $0x20] sm:$0xf]
    %v100 = vld [vmem:[#allocation3 + $0x24] sm:$0xf]
    %v101 = vld [vmem:[#allocation3 + $0x28] sm:$0xf]
    %v102 = vld [vmem:[#allocation3 + $0x2c] sm:$0xf]
    %v103 = vld [vmem:[#allocation3 + $0x30] sm:$0xf]
    %v104 = vld [vmem:[#allocation3 + $0x34] sm:$0xf]
    %v105 = vld [vmem:[#allocation3 + $0x38] sm:$0xf]
    %v106 = vld [vmem:[#allocation3 + $0x3c] sm:$0xf]
    %v107 = vld [vmem:[#allocation6] sm:$0xf]
    %v108 = vld [vmem:[#allocation6 + $0x4] sm:$0x3]
    %v125 = vunpack.c.l.b16 %v91
    %v126 = vunpack.c.l.b16 %v92
    %v127 = vunpack.c.l.b16 %v93
    %v128 = vunpack.c.l.b16 %v94
    %v129 = vunpack.c.l.b16 %v95
    %v130 = vunpack.c.l.b16 %v96
    %v131 = vunpack.c.l.b16 %v97
    %v132 = vunpack.c.l.b16 %v98
    %v133 = vunpack.c.l.b16 %v99
    %v134 = vunpack.c.l.b16 %v100
    %v135 = vunpack.c.l.b16 %v101
    %v136 = vunpack.c.l.b16 %v102
    %v137 = vunpack.c.l.b16 %v103
    %v138 = vunpack.c.l.b16 %v104
    %v139 = vunpack.c.l.b16 %v105
    %v140 = vunpack.c.l.b16 %v106
    %v141 = vpack.c.b16 %v126, %v125
    %v142 = vpack.c.b16 %v128, %v127
    %v143 = vpack.c.b16 %v130, %v129
    %v144 = vpack.c.b16 %v132, %v131
    %v145 = vpack.c.b16 %v134, %v133
    %v146 = vpack.c.b16 %v136, %v135
    %v147 = vpack.c.b16 %v138, %v137
    %v148 = vpack.c.b16 %v140, %v139
    %v151 = vunpack.c.l.b16 %v107
    %v152 = vunpack.c.l.b16 %v108
    %v153 = vpack.c.b16 %v152, %v151
    %vm154 = vcmask 97280
    %v156 = vsel %vm154, %v141, 0
    %v159 = vsel %vm154, %v142, 0
    %v162 = vsel %vm154, %v143, 0
    %v165 = vsel %vm154, %v144, 0
    %v168 = vsel %vm154, %v145, 0
    %v171 = vsel %vm154, %v146, 0
    %v174 = vsel %vm154, %v147, 0
    %v177 = vsel %vm154, %v148, 0
    %vm179 = vcmask 1045504
    %v181 = vsel %vm179, %v153, 0
    %183 = vmatprep.subr.bf16.mxu0 0
    %184 = vmatpush1.bf16.msra.mxu0 %v181
    %185 = vmatprep.subr.bf16.mxu0 0
    %186 = vmatpush1.bf16.msra.mxu0 0
    %187 = vmatprep.subr.bf16.mxu0 0
    %188 = vmatpush1.bf16.msra.mxu0 0
    %189 = vmatprep.subr.bf16.mxu0 0
    %190 = vmatpush1.bf16.msra.mxu0 0
    %191 = vmatprep.subr.bf16.mxu0 0
    %192 = vmatpush1.bf16.msra.mxu0 0
    %193 = vmatprep.subr.bf16.mxu0 0
    %194 = vmatpush1.bf16.msra.mxu0 0
    %195 = vmatprep.subr.bf16.mxu0 0
    %196 = vmatpush1.bf16.msra.mxu0 0
    %197 = vmatprep.subr.bf16.mxu0 0
    %198 = vmatpush1.bf16.msra.mxu0 0
    %199 = vmatprep.subr.bf16.mxu0 0
    %200 = vmatpush1.bf16.msra.mxu0 0
    %201 = vmatprep.subr.bf16.mxu0 0
    %202 = vmatpush1.bf16.msra.mxu0 0
    %203 = vmatprep.subr.bf16.mxu0 0
    %204 = vmatpush1.bf16.msra.mxu0 0
    %205 = vmatprep.subr.bf16.mxu0 0
    %206 = vmatpush1.bf16.msra.mxu0 0
    %207 = vmatprep.subr.bf16.mxu0 0
    %208 = vmatpush1.bf16.msra.mxu0 0
    %209 = vmatprep.subr.bf16.mxu0 0
    %210 = vmatpush1.bf16.msra.mxu0 0
    %211 = vmatprep.subr.bf16.mxu0 0
    %212 = vmatpush1.bf16.msra.mxu0 0
    %213 = vmatprep.subr.bf16.mxu0 0
    %214 = vmatpush1.bf16.msra.mxu0 0
    %215 = vmatprep.mubr.bf16.mxu0 0
    %216 = vmatmul.mubr.bf16.gmra.mrb[0].mxu0 %v156
    %v217 = vpop.f32.mrb[0].mxu0
    %v218 = vadd.f32 0.0, %v217
    %v219 = vpop.f32.mrb[0].mxu0
    %v220 = vpop.f32.mrb[0].mxu0
    %v221 = vadd.f32 0.0, %v220
    %v222 = vpop.f32.mrb[0].mxu0
    %223 = vmatprep.mubr.bf16.mxu0 0
    %224 = vmatmul.mubr.bf16.gmra.mrb[0].mxu0 %v159
    %v225 = vpop.f32.mrb[0].mxu0
    %v226 = vadd.f32 0.0, %v225
    %v227 = vpop.f32.mrb[0].mxu0
    %v228 = vpop.f32.mrb[0].mxu0
    %v229 = vadd.f32 0.0, %v228
    %v230 = vpop.f32.mrb[0].mxu0
    %231 = vmatprep.mubr.bf16.mxu0 0
    %232 = vmatmul.mubr.bf16.gmra.mrb[0].mxu0 %v162
    %v233 = vpop.f32.mrb[0].mxu0
    %v234 = vadd.f32 0.0, %v233
    %v235 = vpop.f32.mrb[0].mxu0
    %v236 = vpop.f32.mrb[0].mxu0
    %v237 = vadd.f32 0.0, %v236
    %v238 = vpop.f32.mrb[0].mxu0
    %239 = vmatprep.mubr.bf16.mxu0 0
    %240 = vmatmul.mubr.bf16.gmra.mrb[0].mxu0 %v165
    %v241 = vpop.f32.mrb[0].mxu0
    %v242 = vadd.f32 0.0, %v241
    %v243 = vpop.f32.mrb[0].mxu0
    %v244 = vpop.f32.mrb[0].mxu0
    %v245 = vadd.f32 0.0, %v244
    %v246 = vpop.f32.mrb[0].mxu0
    %247 = vmatprep.mubr.bf16.mxu0 0
    %248 = vmatmul.mubr.bf16.gmra.mrb[0].mxu0 %v168
    %v249 = vpop.f32.mrb[0].mxu0
    %v250 = vadd.f32 0.0, %v249
    %v251 = vpop.f32.mrb[0].mxu0
    %v252 = vpop.f32.mrb[0].mxu0
    %v253 = vadd.f32 0.0, %v252
    %v254 = vpop.f32.mrb[0].mxu0
    %255 = vmatprep.mubr.bf16.mxu0 0
    %256 = vmatmul.mubr.bf16.gmra.mrb[0].mxu0 %v171
    %v257 = vpop.f32.mrb[0].mxu0
    %v258 = vadd.f32 0.0, %v257
    %v259 = vpop.f32.mrb[0].mxu0
    %v260 = vpop.f32.mrb[0].mxu0
    %v261 = vadd.f32 0.0, %v260
    %v262 = vpop.f32.mrb[0].mxu0
    %263 = vmatprep.mubr.bf16.mxu0 0
    %264 = vmatmul.mubr.bf16.gmra.mrb[0].mxu0 %v174
    %v265 = vpop.f32.mrb[0].mxu0
    %v266 = vadd.f32 0.0, %v265
    %v267 = vpop.f32.mrb[0].mxu0
    %v268 = vpop.f32.mrb[0].mxu0
    %v269 = vadd.f32 0.0, %v268
    %v270 = vpop.f32.mrb[0].mxu0
    %271 = vmatprep.mubr.bf16.mxu0 0
    %272 = vmatmul.mubr.bf16.gmra.mrb[0].mxu0 %v177
    %v273 = vpop.f32.mrb[0].mxu0
    %v274 = vadd.f32 0.0, %v273
    %v275 = vpop.f32.mrb[0].mxu0
    %v276 = vpop.f32.mrb[0].mxu0
    %v277 = vadd.f32 0.0, %v276
    %v278 = vpop.f32.mrb[0].mxu0
    %279 = vdwg.mxu0
    %v280 = vadd.f32 %v75, %v218
    %v281 = vadd.f32 %v76, %v221
    %v282 = vadd.f32 %v77, %v226
    %v283 = vadd.f32 %v78, %v229
    %v284 = vadd.f32 %v79, %v234
    %v285 = vadd.f32 %v80, %v237
    %v286 = vadd.f32 %v81, %v242
    %v287 = vadd.f32 %v82, %v245
    %v288 = vadd.f32 %v83, %v250
    %v289 = vadd.f32 %v84, %v253
    %v290 = vadd.f32 %v85, %v258
    %v291 = vadd.f32 %v86, %v261
    %v292 = vadd.f32 %v87, %v266
    %v293 = vadd.f32 %v88, %v269
    %v294 = vadd.f32 %v89, %v274
    %v295 = vadd.f32 %v90, %v277
    %296 = vst [vmem:[#allocation2] sm:$0xff] %v280
    %297 = vst [vmem:[#allocation2 + $0x8] sm:$0xff] %v281
    %298 = vst [vmem:[#allocation2 + $0x10] sm:$0xff] %v282
    %299 = vst [vmem:[#allocation2 + $0x18] sm:$0xff] %v283
    %300 = vst [vmem:[#allocation2 + $0x20] sm:$0xff] %v284
    %301 = vst [vmem:[#allocation2 + $0x28] sm:$0xff] %v285
    %302 = vst [vmem:[#allocation2 + $0x30] sm:$0xff] %v286
    %303 = vst [vmem:[#allocation2 + $0x38] sm:$0xff] %v287
    %304 = vst [vmem:[#allocation2 + $0x40] sm:$0xff] %v288
    %305 = vst [vmem:[#allocation2 + $0x48] sm:$0xff] %v289
    %306 = vst [vmem:[#allocation2 + $0x50] sm:$0xff] %v290
    %307 = vst [vmem:[#allocation2 + $0x58] sm:$0xff] %v291
    %308 = vst [vmem:[#allocation2 + $0x60] sm:$0xff] %v292
    %309 = vst [vmem:[#allocation2 + $0x68] sm:$0xff] %v293
    %310 = vst [vmem:[#allocation2 + $0x70] sm:$0xff] %v294
    %311 = vst [vmem:[#allocation2 + $0x78] sm:$0xff] %v295
    // Predicated region
    $region30: #{lli_transformer_forward.12} parent=1 // pred_check
      %p312 = pneg %p55
    $region31: #{lli_transformer_forward.12} parent=1 // pred_check_branch
      %314 = sbr.rel (%p312) target = $region33
    $region32: #{lli_transformer_forward.12} parent=1 // pred_region
      %v315 = vld [vmem:[#allocation2] sm:$0xff]
      %v316 = vld [vmem:[#allocation2 + $0x8] sm:$0xff]
      %v317 = vld [vmem:[#allocation2 + $0x10] sm:$0xff]
      %v318 = vld [vmem:[#allocation2 + $0x18] sm:$0xff]
      %v319 = vld [vmem:[#allocation2 + $0x20] sm:$0xff]
      %v320 = vld [vmem:[#allocation2 + $0x28] sm:$0xff]
      %v321 = vld [vmem:[#allocation2 + $0x30] sm:$0xff]
      %v322 = vld [vmem:[#allocation2 + $0x38] sm:$0xff]
      %v323 = vld [vmem:[#allocation2 + $0x40] sm:$0xff]
      %v324 = vld [vmem:[#allocation2 + $0x48] sm:$0xff]
      %v325 = vld [vmem:[#allocation2 + $0x50] sm:$0xff]
      %v326 = vld [vmem:[#allocation2 + $0x58] sm:$0xff]
      %v327 = vld [vmem:[#allocation2 + $0x60] sm:$0xff]
      %v328 = vld [vmem:[#allocation2 + $0x68] sm:$0xff]
      %v329 = vld [vmem:[#allocation2 + $0x70] sm:$0xff]
      %v330 = vld [vmem:[#allocation2 + $0x78] sm:$0xff]
      %v331 = vld [vmem:[#allocation8] sm:$0x1]
      %v333 = vlaneseq
      %v334 = vshrl.u32 %v333, 7
      %v335 = vsub.s32 0, %v334
      %v336 = vrot.slane %v331, %v335
      %v338 = vadd.f32 %v315, %v336
      %v339 = vadd.f32 %v316, %v336
      %v340 = vadd.f32 %v317, %v336
      %v341 = vadd.f32 %v318, %v336
      %v342 = vadd.f32 %v319, %v336
      %v343 = vadd.f32 %v320, %v336
      %v344 = vadd.f32 %v321, %v336
      %v345 = vadd.f32 %v322, %v336
      %v346 = vadd.f32 %v323, %v336
      %v347 = vadd.f32 %v324, %v336
      %v348 = vadd.f32 %v325, %v336
      %v349 = vadd.f32 %v326, %v336
      %v350 = vadd.f32 %v327, %v336
      %v351 = vadd.f32 %v328, %v336
      %v352 = vadd.f32 %v329, %v336
      %v353 = vadd.f32 %v330, %v336
      %v354 = vpack.c.bf16 %v339, %v338
      %v355 = vpack.c.bf16 %v341, %v340
      %v356 = vpack.c.bf16 %v343, %v342
      %v357 = vpack.c.bf16 %v345, %v344
      %v358 = vpack.c.bf16 %v347, %v346
      %v359 = vpack.c.bf16 %v349, %v348
      %v360 = vpack.c.bf16 %v351, %v350
      %v361 = vpack.c.bf16 %v353, %v352
      %v370 = vunpack.c.l.b16 %v354
      %v371 = vunpack.c.h.b16 %v354
      %v372 = vunpack.c.l.b16 %v355
      %v373 = vunpack.c.h.b16 %v355
      %v374 = vunpack.c.l.b16 %v356
      %v375 = vunpack.c.h.b16 %v356
      %v376 = vunpack.c.l.b16 %v357
      %v377 = vunpack.c.h.b16 %v357
      %v378 = vunpack.c.l.b16 %v358
      %v379 = vunpack.c.h.b16 %v358
      %v380 = vunpack.c.l.b16 %v359
      %v381 = vunpack.c.h.b16 %v359
      %v382 = vunpack.c.l.b16 %v360
      %v383 = vunpack.c.h.b16 %v360
      %v384 = vunpack.c.l.b16 %v361
      %v385 = vunpack.c.h.b16 %v361
      %v386 = vpack.c.b16 %v370, %v370
      %v387 = vpack.c.b16 %v371, %v371
      %v388 = vpack.c.b16 %v372, %v372
      %v389 = vpack.c.b16 %v373, %v373
      %v390 = vpack.c.b16 %v374, %v374
      %v391 = vpack.c.b16 %v375, %v375
      %v392 = vpack.c.b16 %v376, %v376
      %v393 = vpack.c.b16 %v377, %v377
      %v394 = vpack.c.b16 %v378, %v378
      %v395 = vpack.c.b16 %v379, %v379
      %v396 = vpack.c.b16 %v380, %v380
      %v397 = vpack.c.b16 %v381, %v381
      %v398 = vpack.c.b16 %v382, %v382
      %v399 = vpack.c.b16 %v383, %v383
      %v400 = vpack.c.b16 %v384, %v384
      %v401 = vpack.c.b16 %v385, %v385
      %418 = vst [vmem:[#allocation9] sm:$0xf] %v386
      %419 = vst [vmem:[#allocation9 + $0x4] sm:$0xf] %v387
      %420 = vst [vmem:[#allocation9 + $0x8] sm:$0xf] %v388
      %421 = vst [vmem:[#allocation9 + $0xc] sm:$0xf] %v389
      %422 = vst [vmem:[#allocation9 + $0x10] sm:$0xf] %v390
      %423 = vst [vmem:[#allocation9 + $0x14] sm:$0xf] %v391
      %424 = vst [vmem:[#allocation9 + $0x18] sm:$0xf] %v392
      %425 = vst [vmem:[#allocation9 + $0x1c] sm:$0xf] %v393
      %426 = vst [vmem:[#allocation9 + $0x20] sm:$0xf] %v394
      %427 = vst [vmem:[#allocation9 + $0x24] sm:$0xf] %v395
      %428 = vst [vmem:[#allocation9 + $0x28] sm:$0xf] %v396
      %429 = vst [vmem:[#allocation9 + $0x2c] sm:$0xf] %v397
      %430 = vst [vmem:[#allocation9 + $0x30] sm:$0xf] %v398
      %431 = vst [vmem:[#allocation9 + $0x34] sm:$0xf] %v399
      %432 = vst [vmem:[#allocation9 + $0x38] sm:$0xf] %v400
      %433 = vst [vmem:[#allocation9 + $0x3c] sm:$0xf] %v401
    $region33: #{lli_transformer_forward.12} parent=1 // pred_fallthru
      _
    // Predicated region
    $region34: #{lli_transformer_forward.12} parent=1 // pred_check
      _
    $region35: #{lli_transformer_forward.12} parent=1 // pred_check_branch
      %435 = sbr.rel (0) target = $region37
    $region36: #{lli_transformer_forward.12} parent=1 // pred_region
      %s437 = ssub.s32 1024, 1024
      %438 = vsyncadd [#allocation5], %s437
      %s439 = sshll.u32 [#allocation9], 4
      %s440 = int_to_ptr.vmem [resolvable:$true] %s439
      %445 = dma.vmem_to_hbm [thread:$0]  %s440, 1024, %s3, [#allocation5], 64, 64, 4
    $region37: #{lli_transformer_forward.12} parent=1 // pred_fallthru
      _
    // Predicated region
    $region38: #{lli_transformer_forward.12} parent=1 // pred_check
      _
    $region39: #{lli_transformer_forward.12} parent=1 // pred_check_branch
      %447 = sbr.rel (0) target = $region41
    $region40: #{lli_transformer_forward.12} parent=1 // pred_region
      %448 = dma.done [#allocation5], 1024
    $region41: #{lli_transformer_forward.12} parent=1 // pred_fallthru
      _
    %449 = vsyncpa [#allocation4], 1
    %450 = vsyncpa [#allocation7], 1
    %451 = vsyncpa [#allocation5], 1

// kernel: lli_transformer_forward.14
$region0: #{lli_transformer_forward.14}
  #allocation0 [shape = 'u32[]', space=smem, size = 0x4, offset = 0x4, fixed_abs, tag = 'smem constant byte address 0x4 - core index']
  #allocation1 [shape = 'u32[144,128]{1,0:T(1,128)}', space=vmem, size = 0x12000, scoped, tag = 'internal scratch']
  #allocation2 [shape = 'bf16[48,32]{1,0:T(16,128)(2,1)}', space=vmem, size = 0x3000, scoped, tag = 'scratch operand']
  %s0 = inlined_call_operand.hbm [shape: bf16[48,32], index: 0, kind: input, shape index: {}]
  %s1 = inlined_call_operand.hbm [shape: f32[1,32], index: 1, kind: input, shape index: {}]
  %s2 = inlined_call_operand.hbm [shape: f32[1,32], index: 2, kind: input, shape index: {}]
  %s3 = inlined_call_operand.hbm [shape: bf16[32,128], index: 3, kind: input, shape index: {}]
  %s4 = inlined_call_operand.hbm [shape: f32[1,128], index: 4, kind: input, shape index: {}]
  %s5 = inlined_call_operand.hbm [shape: bf16[48,128], index: 5, kind: output, shape index: {}]
  %s6 = sld [smem:[#allocation0]]
  $region54: #{lli_transformer_forward.14} parent=0
    _
  %s8 = ssub.s32 1, %s6
  %s9 = scalar_select 0, %s8, %s6
  $region1: #{lli_transformer_forward.14} parent=0
    #allocation3 [shape = 'u8[12288]{0}', space=vmem, size = 0x3000, scoped, tag = 'input window, operand 0, single buffered']
    #allocation4 [shape = 's32[1]{0}', space=sflag, size = 0x4, scoped, tag = 'scoped memory for lli_transformer_forward.14']
    #allocation5 [shape = 's32[1]{0}', space=sflag, size = 0x4, scoped, tag = 'scoped memory for lli_transformer_forward.14']
    #allocation6 [shape = 'u8[512]{0}', space=vmem, size = 0x400, scoped, tag = 'input window, operand 1, single buffered']
    #allocation7 [shape = 's32[1]{0}', space=sflag, size = 0x4, scoped, tag = 'scoped memory for lli_transformer_forward.14']
    #allocation8 [shape = 'u8[512]{0}', space=vmem, size = 0x400, scoped, tag = 'input window, operand 2, single buffered']
    #allocation9 [shape = 'u8[8192]{0}', space=vmem, size = 0x2000, scoped, tag = 'input window, operand 3, single buffered']
    #allocation10 [shape = 's32[1]{0}', space=sflag, size = 0x4, scoped, tag = 'scoped memory for lli_transformer_forward.14']
    #allocation11 [shape = 'u8[512]{0}', space=vmem, size = 0x400, scoped, tag = 'input window, operand 4, single buffered']
    #allocation12 [shape = 'u8[12288]{0}', space=vmem, size = 0x3000, scoped, tag = 'output window, operand 0, single buffered']
    %10 = vsyncpa [#allocation4], 0
    %11 = vsyncpa [#allocation7], 0
    %12 = vsyncpa [#allocation10], 0
    %13 = vsyncpa [#allocation5], 0
    // Predicated region
    $region2: #{lli_transformer_forward.14} parent=1 // pred_check
      _
    $region3: #{lli_transformer_forward.14} parent=1 // pred_check_branch
      %15 = sbr.rel (0) target = $region5
    $region4: #{lli_transformer_forward.14} parent=1 // pred_region
      %s17 = ssub.s32 384, 384
      %18 = vsyncadd [#allocation4], %s17
      %s19 = sshll.u32 [#allocation3], 4
      %s20 = int_to_ptr.vmem [resolvable:$true] %s19
      %25 = dma.hbm_to_vmem [thread:$0]  %s0, 384, %s20, [#allocation4], 64, 64, 4
    $region5: #{lli_transformer_forward.14} parent=1 // pred_fallthru
      _
    // Predicated region
    $region6: #{lli_transformer_forward.14} parent=1 // pred_check
      _
    $region7: #{lli_transformer_forward.14} parent=1 // pred_check_branch
      %27 = sbr.rel (0) target = $region9
    $region8: #{lli_transformer_forward.14} parent=1 // pred_region
      %s29 = ssub.s32 16, 16
      %30 = vsyncadd [#allocation7], %s29
      %s32 = sshll.u32 [#allocation6], 4
      %s33 = int_to_ptr.vmem [resolvable:$true] %s32
      %35 = dma.hbm_to_vmem [thread:$0]  %s1, 16, %s33, [#allocation7]
    $region9: #{lli_transformer_forward.14} parent=1 // pred_fallthru
      _
    // Predicated region
    $region10: #{lli_transformer_forward.14} parent=1 // pred_check
      _
    $region11: #{lli_transformer_forward.14} parent=1 // pred_check_branch
      %37 = sbr.rel (0) target = $region13
    $region12: #{lli_transformer_forward.14} parent=1 // pred_region
      %s39 = ssub.s32 16, 16
      %40 = vsyncadd [#allocation7], %s39
      %s42 = sshll.u32 [#allocation8], 4
      %s43 = int_to_ptr.vmem [resolvable:$true] %s42
      %45 = dma.hbm_to_vmem [thread:$0]  %s2, 16, %s43, [#allocation7]
    $region13: #{lli_transformer_forward.14} parent=1 // pred_fallthru
      _
    // Predicated region
    $region14: #{lli_transformer_forward.14} parent=1 // pred_check
      _
    $region15: #{lli_transformer_forward.14} parent=1 // pred_check_branch
      %47 = sbr.rel (0) target = $region17
    $region16: #{lli_transformer_forward.14} parent=1 // pred_region
      %s49 = ssub.s32 256, 256
      %50 = vsyncadd [#allocation10], %s49
      %s51 = sshll.u32 [#allocation9], 4
      %s52 = int_to_ptr.vmem [resolvable:$true] %s51
      %57 = dma.hbm_to_vmem [thread:$0]  %s3, 256, %s52, [#allocation10], 64, 64, 4
    $region17: #{lli_transformer_forward.14} parent=1 // pred_fallthru
      _
    // Predicated region
    $region18: #{lli_transformer_forward.14} parent=1 // pred_check
      _
    $region19: #{lli_transformer_forward.14} parent=1 // pred_check_branch
      %59 = sbr.rel (0) target = $region21
    $region20: #{lli_transformer_forward.14} parent=1 // pred_region
      %s61 = ssub.s32 16, 16
      %62 = vsyncadd [#allocation10], %s61
      %s64 = sshll.u32 [#allocation11], 4
      %s65 = int_to_ptr.vmem [resolvable:$true] %s64
      %67 = dma.hbm_to_vmem [thread:$0]  %s4, 16, %s65, [#allocation10]
    $region21: #{lli_transformer_forward.14} parent=1 // pred_fallthru
      _
    // Predicated region
    $region22: #{lli_transformer_forward.14} parent=1 // pred_check
      _
    $region23: #{lli_transformer_forward.14} parent=1 // pred_check_branch
      %69 = sbr.rel (0) target = $region25
    $region24: #{lli_transformer_forward.14} parent=1 // pred_region
      %70 = dma.done [#allocation4], 384
    $region25: #{lli_transformer_forward.14} parent=1 // pred_fallthru
      _
    // Predicated region
    $region26: #{lli_transformer_forward.14} parent=1 // pred_check
      _
    $region27: #{lli_transformer_forward.14} parent=1 // pred_check_branch
      %72 = sbr.rel (0) target = $region29
    $region28: #{lli_transformer_forward.14} parent=1 // pred_region
      %73 = dma.done [#allocation7], 16
    $region29: #{lli_transformer_forward.14} parent=1 // pred_fallthru
      _
    // Predicated region
    $region30: #{lli_transformer_forward.14} parent=1 // pred_check
      _
    $region31: #{lli_transformer_forward.14} parent=1 // pred_check_branch
      %75 = sbr.rel (0) target = $region33
    $region32: #{lli_transformer_forward.14} parent=1 // pred_region
      %76 = dma.done [#allocation7], 16
    $region33: #{lli_transformer_forward.14} parent=1 // pred_fallthru
      _
    // Predicated region
    $region34: #{lli_transformer_forward.14} parent=1 // pred_check
      _
    $region35: #{lli_transformer_forward.14} parent=1 // pred_check_branch
      %78 = sbr.rel (0) target = $region37
    $region36: #{lli_transformer_forward.14} parent=1 // pred_region
      %79 = dma.done [#allocation10], 256
    $region37: #{lli_transformer_forward.14} parent=1 // pred_fallthru
      _
    // Predicated region
    $region38: #{lli_transformer_forward.14} parent=1 // pred_check
      _
    $region39: #{lli_transformer_forward.14} parent=1 // pred_check_branch
      %81 = sbr.rel (0) target = $region41
    $region40: #{lli_transformer_forward.14} parent=1 // pred_region
      %82 = dma.done [#allocation10], 16
    $region41: #{lli_transformer_forward.14} parent=1 // pred_fallthru
      _
    %p84 = scmp.eq.s32.totalorder 0, 0
    // Predicated region
    $region42: #{lli_transformer_forward.14} parent=1 // pred_check
      %p85 = pneg %p84
    $region43: #{lli_transformer_forward.14} parent=1 // pred_check_branch
      %87 = sbr.rel (%p85) target = $region45
    $region44: #{lli_transformer_forward.14} parent=1 // pred_region
      %v88 = vld [vmem:[#allocation3] sm:$0xf]
      %v89 = vld [vmem:[#allocation3 + $0x4] sm:$0xf]
      %v90 = vld [vmem:[#allocation3 + $0x8] sm:$0xf]
      %v91 = vld [vmem:[#allocation3 + $0xc] sm:$0xf]
      %v92 = vld [vmem:[#allocation3 + $0x10] sm:$0xf]
      %v93 = vld [vmem:[#allocation3 + $0x14] sm:$0xf]
      %v94 = vunpack.c.l.bf16 %v88
      %v95 = vunpack.c.l.bf16 %v89
      %v96 = vunpack.c.l.bf16 %v90
      %v97 = vunpack.c.l.bf16 %v91
      %v98 = vunpack.c.l.bf16 %v92
      %v99 = vunpack.c.l.bf16 %v93
      %vm100 = vcmask 261120
      %v101 = vsel %vm100, %v94, 0.0
      %102 = vadd.xlane.f32.xlu0 %v101
      %v103 = vpop.xlane.xlu0 %102
      %v104 = vsel %vm100, %v95, 0.0
      %105 = vadd.xlane.f32.xlu0 %v104
      %v106 = vpop.xlane.xlu0 %105
      %v107 = vsel %vm100, %v96, 0.0
      %108 = vadd.xlane.f32.xlu0 %v107
      %v109 = vpop.xlane.xlu0 %108
      %v110 = vsel %vm100, %v97, 0.0
      %111 = vadd.xlane.f32.xlu0 %v110
      %v112 = vpop.xlane.xlu0 %111
      %v113 = vsel %vm100, %v98, 0.0
      %114 = vadd.xlane.f32.xlu0 %v113
      %v115 = vpop.xlane.xlu0 %114
      %v116 = vsel %vm100, %v99, 0.0
      %117 = vadd.xlane.f32.xlu0 %v116
      %v118 = vpop.xlane.xlu0 %117
      %v119 = vrcp.pop 32.0
      %v120 = vmul.f32 %v103, %v119
      %v121 = vmul.f32 %v106, %v119
      %v122 = vmul.f32 %v109, %v119
      %v123 = vmul.f32 %v112, %v119
      %v124 = vmul.f32 %v115, %v119
      %v125 = vmul.f32 %v118, %v119
      %v126 = vsub.f32 %v94, %v120
      %v127 = vsub.f32 %v95, %v121
      %v128 = vsub.f32 %v96, %v122
      %v129 = vsub.f32 %v97, %v123
      %v130 = vsub.f32 %v98, %v124
      %v131 = vsub.f32 %v99, %v125
      %v132 = vmul.f32 %v126, %v126
      %v133 = vmul.f32 %v127, %v127
      %v134 = vmul.f32 %v128, %v128
      %v135 = vmul.f32 %v129, %v129
      %v136 = vmul.f32 %v130, %v130
      %v137 = vmul.f32 %v131, %v131
      %v138 = vsel %vm100, %v132, 0.0
      %139 = vadd.xlane.f32.xlu0 %v138
      %v140 = vpop.xlane.xlu0 %139
      %v141 = vsel %vm100, %v133, 0.0
      %142 = vadd.xlane.f32.xlu0 %v141
      %v143 = vpop.xlane.xlu0 %142
      %v144 = vsel %vm100, %v134, 0.0
      %145 = vadd.xlane.f32.xlu0 %v144
      %v146 = vpop.xlane.xlu0 %145
      %v147 = vsel %vm100, %v135, 0.0
      %148 = vadd.xlane.f32.xlu0 %v147
      %v149 = vpop.xlane.xlu0 %148
      %v150 = vsel %vm100, %v136, 0.0
      %151 = vadd.xlane.f32.xlu0 %v150
      %v152 = vpop.xlane.xlu0 %151
      %v153 = vsel %vm100, %v137, 0.0
      %154 = vadd.xlane.f32.xlu0 %v153
      %v155 = vpop.xlane.xlu0 %154
      %v156 = vmul.f32 %v140, %v119
      %v157 = vmul.f32 %v143, %v119
      %v158 = vmul.f32 %v146, %v119
      %v159 = vmul.f32 %v149, %v119
      %v160 = vmul.f32 %v152, %v119
      %v161 = vmul.f32 %v155, %v119
      %v162 = vadd.f32 %v156, 1e-05
      %v163 = vadd.f32 %v157, 1e-05
      %v164 = vadd.f32 %v158, 1e-05
      %v165 = vadd.f32 %v159, 1e-05
      %v166 = vadd.f32 %v160, 1e-05
      %v167 = vadd.f32 %v161, 1e-05
      %v168 = vrsqrt.pop %v162
      %v169 = vrsqrt.pop %v163
      %v170 = vrsqrt.pop %v164
      %v171 = vrsqrt.pop %v165
      %v172 = vrsqrt.pop %v166
      %v173 = vrsqrt.pop %v167
      %v174 = vmul.f32 %v126, %v168
      %v175 = vmul.f32 %v127, %v169
      %v176 = vmul.f32 %v128, %v170
      %v177 = vmul.f32 %v129, %v171
      %v178 = vmul.f32 %v130, %v172
      %v179 = vmul.f32 %v131, %v173
      %v180 = vld [vmem:[#allocation6] sm:$0x1]
      %v182 = vlaneseq
      %v183 = vshrl.u32 %v182, 7
      %v184 = vsub.s32 0, %v183
      %v185 = vrot.slane %v180, %v184
      %v187 = vmul.f32 %v174, %v185
      %v188 = vmul.f32 %v175, %v185
      %v189 = vmul.f32 %v176, %v185
      %v190 = vmul.f32 %v177, %v185
      %v191 = vmul.f32 %v178, %v185
      %v192 = vmul.f32 %v179, %v185
      %v193 = vld [vmem:[#allocation8] sm:$0x1]
      %v195 = vlaneseq
      %v196 = vshrl.u32 %v195, 7
      %v197 = vsub.s32 0, %v196
      %v198 = vrot.slane %v193, %v197
      %v200 = vadd.f32 %v187, %v198
      %v201 = vadd.f32 %v188, %v198
      %v202 = vadd.f32 %v189, %v198
      %v203 = vadd.f32 %v190, %v198
      %v204 = vadd.f32 %v191, %v198
      %v205 = vadd.f32 %v192, %v198
      %v206 = vpack.c.bf16 %v201, %v200
      %v207 = vpack.c.bf16 %v203, %v202
      %v208 = vpack.c.bf16 %v205, %v204
      %209 = vst.msk [vmem:[#allocation2] sm:$0xff] %vm100, %v206
      %210 = vst.msk [vmem:[#allocation2 + $0x8] sm:$0xff] %vm100, %v207
      %211 = vst.msk [vmem:[#allocation2 + $0x10] sm:$0xff] %vm100, %v208
    $region45: #{lli_transformer_forward.14} parent=1 // pred_fallthru
      _
    %v212 = vld [vmem:[#allocation2] sm:$0xff]
    %v213 = vld [vmem:[#allocation2 + $0x8] sm:$0xff]
    %v214 = vld [vmem:[#allocation2 + $0x10] sm:$0xff]
    %v215 = vld [vmem:[#allocation9] sm:$0xf]
    %v216 = vld [vmem:[#allocation9 + $0x4] sm:$0xf]
    %v217 = vld [vmem:[#allocation9 + $0x8] sm:$0xf]
    %v218 = vld [vmem:[#allocation9 + $0xc] sm:$0xf]
    %v219 = vld [vmem:[#allocation11] sm:$0x1]
    %v221 = vlaneseq
    %v222 = vshrl.u32 %v221, 7
    %v223 = vsub.s32 0, %v222
    %v224 = vrot.slane %v219, %v223
    %v230 = vunpack.c.l.b16 %v215
    %v231 = vunpack.c.l.b16 %v216
    %v232 = vunpack.c.l.b16 %v217
    %v233 = vunpack.c.l.b16 %v218
    %v234 = vpack.c.b16 %v231, %v230
    %v235 = vpack.c.b16 %v233, %v232
    %vm238 = vcmask 261120
    %v240 = vsel %vm238, %v212, 0
    %v243 = vsel %vm238, %v213, 0
    %v246 = vsel %vm238, %v214, 0
    %248 = vmatprep.subr.bf16.mxu0 0
    %249 = vmatpush1.bf16.msra.mxu0 %v234
    %250 = vmatprep.subr.bf16.mxu0 0
    %251 = vmatpush1.bf16.msra.mxu0 %v235
    %252 = vmatprep.subr.bf16.mxu0 0
    %253 = vmatpush1.bf16.msra.mxu0 0
    %254 = vmatprep.subr.bf16.mxu0 0
    %255 = vmatpush1.bf16.msra.mxu0 0
    %256 = vmatprep.subr.bf16.mxu0 0
    %257 = vmatpush1.bf16.msra.mxu0 0
    %258 = vmatprep.subr.bf16.mxu0 0
    %259 = vmatpush1.bf16.msra.mxu0 0
    %260 = vmatprep.subr.bf16.mxu0 0
    %261 = vmatpush1.bf16.msra.mxu0 0
    %262 = vmatprep.subr.bf16.mxu0 0
    %263 = vmatpush1.bf16.msra.mxu0 0
    %264 = vmatprep.subr.bf16.mxu0 0
    %265 = vmatpush1.bf16.msra.mxu0 0
    %266 = vmatprep.subr.bf16.mxu0 0
    %267 = vmatpush1.bf16.msra.mxu0 0
    %268 = vmatprep.subr.bf16.mxu0 0
    %269 = vmatpush1.bf16.msra.mxu0 0
    %270 = vmatprep.subr.bf16.mxu0 0
    %271 = vmatpush1.bf16.msra.mxu0 0
    %272 = vmatprep.subr.bf16.mxu0 0
    %273 = vmatpush1.bf16.msra.mxu0 0
    %274 = vmatprep.subr.bf16.mxu0 0
    %275 = vmatpush1.bf16.msra.mxu0 0
    %276 = vmatprep.subr.bf16.mxu0 0
    %277 = vmatpush1.bf16.msra.mxu0 0
    %278 = vmatprep.subr.bf16.mxu0 0
    %279 = vmatpush1.bf16.msra.mxu0 0
    %280 = vmatprep.mubr.bf16.mxu0 0
    %281 = vmatmul.mubr.bf16.gmra.mrb[0].mxu0 %v240
    %v282 = vpop.f32.mrb[0].mxu0
    %v283 = vadd.f32 %v224, %v282
    %v284 = vpop.f32.mrb[0].mxu0
    %v285 = vpop.f32.mrb[0].mxu0
    %v286 = vadd.f32 %v224, %v285
    %v287 = vpop.f32.mrb[0].mxu0
    %288 = vmatprep.mubr.bf16.mxu0 0
    %289 = vmatmul.mubr.bf16.gmra.mrb[0].mxu0 %v243
    %v290 = vpop.f32.mrb[0].mxu0
    %v291 = vadd.f32 %v224, %v290
    %v292 = vpop.f32.mrb[0].mxu0
    %v293 = vpop.f32.mrb[0].mxu0
    %v294 = vadd.f32 %v224, %v293
    %v295 = vpop.f32.mrb[0].mxu0
    %296 = vmatprep.mubr.bf16.mxu0 0
    %297 = vmatmul.mubr.bf16.gmra.mrb[0].mxu0 %v246
    %v298 = vpop.f32.mrb[0].mxu0
    %v299 = vadd.f32 %v224, %v298
    %v300 = vpop.f32.mrb[0].mxu0
    %v301 = vpop.f32.mrb[0].mxu0
    %v302 = vadd.f32 %v224, %v301
    %v303 = vpop.f32.mrb[0].mxu0
    %304 = vdwg.mxu0
    %v305 = vpack.c.bf16 %v286, %v283
    %v306 = vpack.c.bf16 %v294, %v291
    %v307 = vpack.c.bf16 %v302, %v299
    %v311 = vunpack.c.l.b16 %v305
    %v312 = vunpack.c.h.b16 %v305
    %v313 = vunpack.c.l.b16 %v306
    %v314 = vunpack.c.h.b16 %v306
    %v315 = vunpack.c.l.b16 %v307
    %v316 = vunpack.c.h.b16 %v307
    %v317 = vpack.c.b16 %v311, %v311
    %v318 = vpack.c.b16 %v312, %v312
    %v319 = vpack.c.b16 %v313, %v313
    %v320 = vpack.c.b16 %v314, %v314
    %v321 = vpack.c.b16 %v315, %v315
    %v322 = vpack.c.b16 %v316, %v316
    %329 = vst [vmem:[#allocation12] sm:$0xf] %v317
    %330 = vst [vmem:[#allocation12 + $0x4] sm:$0xf] %v318
    %331 = vst [vmem:[#allocation12 + $0x8] sm:$0xf] %v319
    %332 = vst [vmem:[#allocation12 + $0xc] sm:$0xf] %v320
    %333 = vst [vmem:[#allocation12 + $0x10] sm:$0xf] %v321
    %334 = vst [vmem:[#allocation12 + $0x14] sm:$0xf] %v322
    // Predicated region
    $region46: #{lli_transformer_forward.14} parent=1 // pred_check
      _
    $region47: #{lli_transformer_forward.14} parent=1 // pred_check_branch
      %336 = sbr.rel (0) target = $region49
    $region48: #{lli_transformer_forward.14} parent=1 // pred_region
      %s338 = ssub.s32 384, 384
      %339 = vsyncadd [#allocation5], %s338
      %s340 = sshll.u32 [#allocation12], 4
      %s341 = int_to_ptr.vmem [resolvable:$true] %s340
      %346 = dma.vmem_to_hbm [thread:$0]  %s341, 384, %s5, [#allocation5], 64, 64, 4
    $region49: #{lli_transformer_forward.14} parent=1 // pred_fallthru
      _
    // Predicated region
    $region50: #{lli_transformer_forward.14} parent=1 // pred_check
      _
    $region51: #{lli_transformer_forward.14} parent=1 // pred_check_branch
      %348 = sbr.rel (0) target = $region53
    $region52: #{lli_transformer_forward.14} parent=1 // pred_region
      %349 = dma.done [#allocation5], 384
    $region53: #{lli_transformer_forward.14} parent=1 // pred_fallthru
      _
    %350 = vsyncpa [#allocation4], 1
    %351 = vsyncpa [#allocation7], 1
    %352 = vsyncpa [#allocation10], 1
    %353 = vsyncpa [#allocation5], 1

// kernel: lli_transformer_forward.16
$region0: #{lli_transformer_forward.16}
  #allocation0 [shape = 'u32[]', space=smem, size = 0x4, offset = 0x4, fixed_abs, tag = 'smem constant byte address 0x4 - core index']
  #allocation1 [shape = 'u32[144,128]{1,0:T(1,128)}', space=vmem, size = 0x12000, scoped, tag = 'internal scratch']
  %s0 = inlined_call_operand.hbm [shape: bf16[48,32], index: 0, kind: input, shape index: {}]
  %s1 = inlined_call_operand.hbm [shape: bf16[32,32], index: 1, kind: input, shape index: {}]
  %s2 = inlined_call_operand.hbm [shape: f32[1,32], index: 2, kind: input, shape index: {}]
  %s3 = inlined_call_operand.hbm [shape: bf16[48,32], index: 3, kind: input, shape index: {}]
  %s4 = inlined_call_operand.hbm [shape: bf16[48,32], index: 4, kind: output, shape index: {}]
  %s5 = sld [smem:[#allocation0]]
  $region42: #{lli_transformer_forward.16} parent=0
    _
  %s7 = ssub.s32 1, %s5
  %s8 = scalar_select 0, %s7, %s5
  $region1: #{lli_transformer_forward.16} parent=0
    #allocation2 [shape = 'u8[12288]{0}', space=vmem, size = 0x3000, scoped, tag = 'input window, operand 0, single buffered']
    #allocation3 [shape = 's32[1]{0}', space=sflag, size = 0x4, scoped, tag = 'scoped memory for lli_transformer_forward.16']
    #allocation4 [shape = 's32[1]{0}', space=sflag, size = 0x4, scoped, tag = 'scoped memory for lli_transformer_forward.16']
    #allocation5 [shape = 'u8[8192]{0}', space=vmem, size = 0x2000, scoped, tag = 'input window, operand 1, single buffered']
    #allocation6 [shape = 's32[1]{0}', space=sflag, size = 0x4, scoped, tag = 'scoped memory for lli_transformer_forward.16']
    #allocation7 [shape = 'u8[512]{0}', space=vmem, size = 0x400, scoped, tag = 'input window, operand 2, single buffered']
    #allocation8 [shape = 'u8[12288]{0}', space=vmem, size = 0x3000, scoped, tag = 'input window, operand 3, single buffered']
    #allocation9 [shape = 's32[1]{0}', space=sflag, size = 0x4, scoped, tag = 'scoped memory for lli_transformer_forward.16']
    #allocation10 [shape = 'u8[12288]{0}', space=vmem, size = 0x3000, scoped, tag = 'output window, operand 0, single buffered']
    %9 = vsyncpa [#allocation3], 0
    %10 = vsyncpa [#allocation6], 0
    %11 = vsyncpa [#allocation9], 0
    %12 = vsyncpa [#allocation4], 0
    // Predicated region
    $region2: #{lli_transformer_forward.16} parent=1 // pred_check
      _
    $region3: #{lli_transformer_forward.16} parent=1 // pred_check_branch
      %14 = sbr.rel (0) target = $region5
    $region4: #{lli_transformer_forward.16} parent=1 // pred_region
      %s16 = ssub.s32 384, 384
      %17 = vsyncadd [#allocation3], %s16
      %s18 = sshll.u32 [#allocation2], 4
      %s19 = int_to_ptr.vmem [resolvable:$true] %s18
      %24 = dma.hbm_to_vmem [thread:$0]  %s0, 384, %s19, [#allocation3], 64, 64, 4
    $region5: #{lli_transformer_forward.16} parent=1 // pred_fallthru
      _
    // Predicated region
    $region6: #{lli_transformer_forward.16} parent=1 // pred_check
      _
    $region7: #{lli_transformer_forward.16} parent=1 // pred_check_branch
      %26 = sbr.rel (0) target = $region9
    $region8: #{lli_transformer_forward.16} parent=1 // pred_region
      %s28 = ssub.s32 256, 256
      %29 = vsyncadd [#allocation6], %s28
      %s30 = sshll.u32 [#allocation5], 4
      %s31 = int_to_ptr.vmem [resolvable:$true] %s30
      %36 = dma.hbm_to_vmem [thread:$0]  %s1, 256, %s31, [#allocation6], 64, 64, 4
    $region9: #{lli_transformer_forward.16} parent=1 // pred_fallthru
      _
    // Predicated region
    $region10: #{lli_transformer_forward.16} parent=1 // pred_check
      _
    $region11: #{lli_transformer_forward.16} parent=1 // pred_check_branch
      %38 = sbr.rel (0) target = $region13
    $region12: #{lli_transformer_forward.16} parent=1 // pred_region
      %s40 = ssub.s32 16, 16
      %41 = vsyncadd [#allocation6], %s40
      %s43 = sshll.u32 [#allocation7], 4
      %s44 = int_to_ptr.vmem [resolvable:$true] %s43
      %46 = dma.hbm_to_vmem [thread:$0]  %s2, 16, %s44, [#allocation6]
    $region13: #{lli_transformer_forward.16} parent=1 // pred_fallthru
      _
    // Predicated region
    $region14: #{lli_transformer_forward.16} parent=1 // pred_check
      _
    $region15: #{lli_transformer_forward.16} parent=1 // pred_check_branch
      %48 = sbr.rel (0) target = $region17
    $region16: #{lli_transformer_forward.16} parent=1 // pred_region
      %s50 = ssub.s32 384, 384
      %51 = vsyncadd [#allocation9], %s50
      %s52 = sshll.u32 [#allocation8], 4
      %s53 = int_to_ptr.vmem [resolvable:$true] %s52
      %58 = dma.hbm_to_vmem [thread:$0]  %s3, 384, %s53, [#allocation9], 64, 64, 4
    $region17: #{lli_transformer_forward.16} parent=1 // pred_fallthru
      _
    // Predicated region
    $region18: #{lli_transformer_forward.16} parent=1 // pred_check
      _
    $region19: #{lli_transformer_forward.16} parent=1 // pred_check_branch
      %60 = sbr.rel (0) target = $region21
    $region20: #{lli_transformer_forward.16} parent=1 // pred_region
      %61 = dma.done [#allocation3], 384
    $region21: #{lli_transformer_forward.16} parent=1 // pred_fallthru
      _
    // Predicated region
    $region22: #{lli_transformer_forward.16} parent=1 // pred_check
      _
    $region23: #{lli_transformer_forward.16} parent=1 // pred_check_branch
      %63 = sbr.rel (0) target = $region25
    $region24: #{lli_transformer_forward.16} parent=1 // pred_region
      %64 = dma.done [#allocation6], 256
    $region25: #{lli_transformer_forward.16} parent=1 // pred_fallthru
      _
    // Predicated region
    $region26: #{lli_transformer_forward.16} parent=1 // pred_check
      _
    $region27: #{lli_transformer_forward.16} parent=1 // pred_check_branch
      %66 = sbr.rel (0) target = $region29
    $region28: #{lli_transformer_forward.16} parent=1 // pred_region
      %67 = dma.done [#allocation6], 16
    $region29: #{lli_transformer_forward.16} parent=1 // pred_fallthru
      _
    // Predicated region
    $region30: #{lli_transformer_forward.16} parent=1 // pred_check
      _
    $region31: #{lli_transformer_forward.16} parent=1 // pred_check_branch
      %69 = sbr.rel (0) target = $region33
    $region32: #{lli_transformer_forward.16} parent=1 // pred_region
      %70 = dma.done [#allocation9], 384
    $region33: #{lli_transformer_forward.16} parent=1 // pred_fallthru
      _
    %v72 = vld [vmem:[#allocation2] sm:$0xf]
    %v73 = vld [vmem:[#allocation2 + $0x4] sm:$0xf]
    %v74 = vld [vmem:[#allocation2 + $0x8] sm:$0xf]
    %v75 = vld [vmem:[#allocation2 + $0xc] sm:$0xf]
    %v76 = vld [vmem:[#allocation2 + $0x10] sm:$0xf]
    %v77 = vld [vmem:[#allocation2 + $0x14] sm:$0xf]
    %v78 = vld [vmem:[#allocation5] sm:$0xf]
    %v79 = vld [vmem:[#allocation5 + $0x4] sm:$0xf]
    %v80 = vld [vmem:[#allocation5 + $0x8] sm:$0xf]
    %v81 = vld [vmem:[#allocation5 + $0xc] sm:$0xf]
    %v82 = vld [vmem:[#allocation7] sm:$0x1]
    %v84 = vlaneseq
    %v85 = vshrl.u32 %v84, 7
    %v86 = vsub.s32 0, %v85
    %v87 = vrot.slane %v82, %v86
    %v95 = vunpack.c.l.b16 %v72
    %v96 = vunpack.c.l.b16 %v73
    %v97 = vunpack.c.l.b16 %v74
    %v98 = vunpack.c.l.b16 %v75
    %v99 = vunpack.c.l.b16 %v76
    %v100 = vunpack.c.l.b16 %v77
    %v101 = vpack.c.b16 %v96, %v95
    %v102 = vpack.c.b16 %v98, %v97
    %v103 = vpack.c.b16 %v100, %v99
    %v108 = vunpack.c.l.b16 %v78
    %v109 = vunpack.c.l.b16 %v79
    %v110 = vunpack.c.l.b16 %v80
    %v111 = vunpack.c.l.b16 %v81
    %v112 = vpack.c.b16 %v109, %v108
    %v113 = vpack.c.b16 %v111, %v110
    %vm116 = vcmask 261120
    %v118 = vsel %vm116, %v101, 0
    %v121 = vsel %vm116, %v102, 0
    %v124 = vsel %vm116, %v103, 0
    %126 = vmatprep.subr.bf16.mxu0 0
    %127 = vmatpush1.bf16.msra.mxu0 %v112
    %128 = vmatprep.subr.bf16.mxu0 0
    %129 = vmatpush1.bf16.msra.mxu0 %v113
    %130 = vmatprep.subr.bf16.mxu0 0
    %131 = vmatpush1.bf16.msra.mxu0 0
    %132 = vmatprep.subr.bf16.mxu0 0
    %133 = vmatpush1.bf16.msra.mxu0 0
    %134 = vmatprep.subr.bf16.mxu0 0
    %135 = vmatpush1.bf16.msra.mxu0 0
    %136 = vmatprep.subr.bf16.mxu0 0
    %137 = vmatpush1.bf16.msra.mxu0 0
    %138 = vmatprep.subr.bf16.mxu0 0
    %139 = vmatpush1.bf16.msra.mxu0 0
    %140 = vmatprep.subr.bf16.mxu0 0
    %141 = vmatpush1.bf16.msra.mxu0 0
    %142 = vmatprep.subr.bf16.mxu0 0
    %143 = vmatpush1.bf16.msra.mxu0 0
    %144 = vmatprep.subr.bf16.mxu0 0
    %145 = vmatpush1.bf16.msra.mxu0 0
    %146 = vmatprep.subr.bf16.mxu0 0
    %147 = vmatpush1.bf16.msra.mxu0 0
    %148 = vmatprep.subr.bf16.mxu0 0
    %149 = vmatpush1.bf16.msra.mxu0 0
    %150 = vmatprep.subr.bf16.mxu0 0
    %151 = vmatpush1.bf16.msra.mxu0 0
    %152 = vmatprep.subr.bf16.mxu0 0
    %153 = vmatpush1.bf16.msra.mxu0 0
    %154 = vmatprep.subr.bf16.mxu0 0
    %155 = vmatpush1.bf16.msra.mxu0 0
    %156 = vmatprep.subr.bf16.mxu0 0
    %157 = vmatpush1.bf16.msra.mxu0 0
    %158 = vmatprep.mubr.bf16.mxu0 0
    %159 = vmatmul.mubr.bf16.gmra.mrb[0].mxu0 %v118
    %v160 = vpop.f32.mrb[0].mxu0
    %v161 = vadd.f32 %v87, %v160
    %v162 = vpop.f32.mrb[0].mxu0
    %v163 = vpop.f32.mrb[0].mxu0
    %v164 = vadd.f32 %v87, %v163
    %v165 = vpop.f32.mrb[0].mxu0
    %166 = vmatprep.mubr.bf16.mxu0 0
    %167 = vmatmul.mubr.bf16.gmra.mrb[0].mxu0 %v121
    %v168 = vpop.f32.mrb[0].mxu0
    %v169 = vadd.f32 %v87, %v168
    %v170 = vpop.f32.mrb[0].mxu0
    %v171 = vpop.f32.mrb[0].mxu0
    %v172 = vadd.f32 %v87, %v171
    %v173 = vpop.f32.mrb[0].mxu0
    %174 = vmatprep.mubr.bf16.mxu0 0
    %175 = vmatmul.mubr.bf16.gmra.mrb[0].mxu0 %v124
    %v176 = vpop.f32.mrb[0].mxu0
    %v177 = vadd.f32 %v87, %v176
    %v178 = vpop.f32.mrb[0].mxu0
    %v179 = vpop.f32.mrb[0].mxu0
    %v180 = vadd.f32 %v87, %v179
    %v181 = vpop.f32.mrb[0].mxu0
    %182 = vdwg.mxu0
    %v183 = vld [vmem:[#allocation8] sm:$0xf]
    %v184 = vld [vmem:[#allocation8 + $0x4] sm:$0xf]
    %v185 = vld [vmem:[#allocation8 + $0x8] sm:$0xf]
    %v186 = vld [vmem:[#allocation8 + $0xc] sm:$0xf]
    %v187 = vld [vmem:[#allocation8 + $0x10] sm:$0xf]
    %v188 = vld [vmem:[#allocation8 + $0x14] sm:$0xf]
    %v189 = vunpack.c.l.bf16 %v183
    %v190 = vunpack.c.l.bf16 %v184
    %v191 = vunpack.c.l.bf16 %v185
    %v192 = vunpack.c.l.bf16 %v186
    %v193 = vunpack.c.l.bf16 %v187
    %v194 = vunpack.c.l.bf16 %v188
    %v195 = vadd.f32 %v161, %v189
    %v196 = vadd.f32 %v164, %v190
    %v197 = vadd.f32 %v169, %v191
    %v198 = vadd.f32 %v172, %v192
    %v199 = vadd.f32 %v177, %v193
    %v200 = vadd.f32 %v180, %v194
    %v201 = vpack.c.bf16 %v196, %v195
    %v202 = vpack.c.bf16 %v198, %v197
    %v203 = vpack.c.bf16 %v200, %v199
    %v207 = vunpack.c.l.b16 %v201
    %v208 = vunpack.c.h.b16 %v201
    %v209 = vunpack.c.l.b16 %v202
    %v210 = vunpack.c.h.b16 %v202
    %v211 = vunpack.c.l.b16 %v203
    %v212 = vunpack.c.h.b16 %v203
    %v213 = vpack.c.b16 %v207, %v207
    %v214 = vpack.c.b16 %v208, %v208
    %v215 = vpack.c.b16 %v209, %v209
    %v216 = vpack.c.b16 %v210, %v210
    %v217 = vpack.c.b16 %v211, %v211
    %v218 = vpack.c.b16 %v212, %v212
    %vm225 = vcmask 257024
    %226 = vst.msk [vmem:[#allocation10] sm:$0xf] %vm225, %v213
    %227 = vst.msk [vmem:[#allocation10 + $0x4] sm:$0xf] %vm225, %v214
    %228 = vst.msk [vmem:[#allocation10 + $0x8] sm:$0xf] %vm225, %v215
    %229 = vst.msk [vmem:[#allocation10 + $0xc] sm:$0xf] %vm225, %v216
    %230 = vst.msk [vmem:[#allocation10 + $0x10] sm:$0xf] %vm225, %v217
    %231 = vst.msk [vmem:[#allocation10 + $0x14] sm:$0xf] %vm225, %v218
    // Predicated region
    $region34: #{lli_transformer_forward.16} parent=1 // pred_check
      _
    $region35: #{lli_transformer_forward.16} parent=1 // pred_check_branch
      %233 = sbr.rel (0) target = $region37
    $region36: #{lli_transformer_forward.16} parent=1 // pred_region
      %s235 = ssub.s32 384, 384
      %236 = vsyncadd [#allocation4], %s235
      %s237 = sshll.u32 [#allocation10], 4
      %s238 = int_to_ptr.vmem [resolvable:$true] %s237
      %243 = dma.vmem_to_hbm [thread:$0]  %s238, 384, %s4, [#allocation4], 64, 64, 4
    $region37: #{lli_transformer_forward.16} parent=1 // pred_fallthru
      _
    // Predicated region
    $region38: #{lli_transformer_forward.16} parent=1 // pred_check
      _
    $region39: #{lli_transformer_forward.16} parent=1 // pred_check_branch
      %245 = sbr.rel (0) target = $region41
    $region40: #{lli_transformer_forward.16} parent=1 // pred_region
      %246 = dma.done [#allocation4], 384
    $region41: #{lli_transformer_forward.16} parent=1 // pred_fallthru
      _
    %247 = vsyncpa [#allocation3], 1
    %248 = vsyncpa [#allocation6], 1
    %249 = vsyncpa [#allocation9], 1
    %250 = vsyncpa [#allocation4], 1

// kernel: lli_transformer_forward.15
$region0: #{lli_transformer_forward.15}
  #allocation0 [shape = 'u32[]', space=smem, size = 0x4, offset = 0x4, fixed_abs, tag = 'smem constant byte address 0x4 - core index']
  #allocation1 [shape = 'u32[144,128]{1,0:T(1,128)}', space=vmem, size = 0x12000, scoped, tag = 'internal scratch']
  #allocation2 [shape = 'f32[24,1]{1,0:T(8,128)}', space=vmem, size = 0x3000, scoped, tag = 'scratch operand']
  #allocation3 [shape = 'f32[24,1]{1,0:T(8,128)}', space=vmem, size = 0x3000, scoped, tag = 'scratch operand']
  #allocation4 [shape = 'f32[24,8]{1,0:T(8,128)}', space=vmem, size = 0x3000, scoped, tag = 'scratch operand']
  %s0 = inlined_call_operand.hbm [shape: bf16[8,24,8], index: 0, kind: input, shape index: {}]
  %s1 = inlined_call_operand.hbm [shape: bf16[8,24,8], index: 1, kind: input, shape index: {}]
  %s2 = inlined_call_operand.hbm [shape: bf16[8,24,8], index: 2, kind: input, shape index: {}]
  %s3 = inlined_call_operand.hbm [shape: bf16[8,24,8], index: 3, kind: output, shape index: {}]
  %s4 = sld [smem:[#allocation0]]
  $region65: #{lli_transformer_forward.15} parent=0
    _
  %s6 = ssub.s32 1, %s4
  %s7 = scalar_select 0, %s6, %s4
  $region1: #{lli_transformer_forward.15} parent=0
    #allocation5 [shape = 'u8[12288]{0}', space=vmem, size = 0x3000, scoped, tag = 'input window, operand 0']
    #allocation6 [shape = 's32[2]{0}', space=sflag, size = 0x8, scoped, tag = 'scoped memory for lli_transformer_forward.15']
    #allocation7 [shape = 's32[2]{0}', space=sflag, size = 0x8, scoped, tag = 'scoped memory for lli_transformer_forward.15']
    #allocation8 [shape = 'u8[12288]{0}', space=vmem, size = 0x3000, scoped, tag = 'input window, operand 1']
    #allocation9 [shape = 's32[2]{0}', space=sflag, size = 0x8, scoped, tag = 'scoped memory for lli_transformer_forward.15']
    #allocation10 [shape = 'u8[12288]{0}', space=vmem, size = 0x3000, scoped, tag = 'input window, operand 2']
    #allocation11 [shape = 'u8[12288]{0}', space=vmem, size = 0x3000, scoped, tag = 'output window, operand 0']
    %8 = vsyncpa [#allocation6], 0
    %s9 = scalar_lea.sflag [#allocation6], 1
    %10 = vsyncpa %s9, 0
    %11 = vsyncpa [#allocation9], 0
    %s12 = scalar_lea.sflag [#allocation9], 1
    %13 = vsyncpa %s12, 0
    %14 = vsyncpa [#allocation7], 0
    %s15 = scalar_lea.sflag [#allocation7], 1
    %16 = vsyncpa %s15, 0
    loop: start=0, step=1, limit=10
    $region2: #{lli_transformer_forward.15} parent=1 // loop_pre_header
      _
    $region3: #{lli_transformer_forward.15} parent=1 // loop_header
      %s18 = sphi 0, %s22
      %p19 = scmp.ge.s32.totalorder %s18, 10
      %s25 = sphi 0, %s44
      %s26 = sphi 0, %s40
      %s27 = sphi 0, %s36
      %s28 = sphi 0, %s25
      %s29 = sphi 0, %s26
      %s30 = sphi 0, %s27
      %s31 = sphi 0, %s28
      %s32 = sphi 0, %s29
      %s33 = sphi 0, %s30
      %s49 = sphi 0, %s51
      %s52 = sphi 0, %s49
      %s53 = sphi 0, %s52
      %s69 = sphi 0, %s53
      %s77 = sphi 0, %s79
      %s80 = sphi 0, %s77
      %s81 = sphi 0, %s80
      %s97 = sphi 0, %s81
      %s105 = sphi 0, %s107
      %s108 = sphi 0, %s105
      %s109 = sphi 0, %s108
      %s125 = sphi 0, %s109
      %s133 = sphi 0, %s135
      %s136 = sphi 0, %s133
      %s137 = sphi 0, %s136
      %s153 = sphi 0, %s137
    $region4: #{lli_transformer_forward.15} parent=1 // loop_header_branch
      %21 = sbr.rel (%p19) target = $region8
    $region5: #{lli_transformer_forward.15} parent=1 // loop_body
      %s23 = ssub.s32 %s18, 1
      %s24 = ssub.s32 %s18, 2
      %s34 = sadd.s32 1, %s27
      %p35 = scmp.ge.s32.totalorder %s34, 1
      %s36 = scalar_select %p35, 0, %s34
      %s37 = sadd.s32 1, %s26
      %s38 = scalar_select %p35, %s37, %s26
      %p39 = scmp.ge.s32.totalorder %s38, 1
      %s40 = scalar_select %p39, 0, %s38
      %s41 = sadd.s32 1, %s25
      %s42 = scalar_select %p39, %s41, %s25
      %p43 = scmp.ge.s32.totalorder %s42, 8
      %s44 = scalar_select %p43, 0, %s42
      %s45 = ssub.s32 %s25, %s44
      %s46 = ssub.s32 %s26, %s40
      %s47 = sor.u32 %s45, %s46
      %p48 = scmp.eq.s32.totalorder %s47, 0
      %s50 = sadd.s32 %s49, 1
      %s51 = scalar_select %p48, %s49, %s50
      %p54 = pneg %p48
      %p55 = scmp.eq.s32.totalorder %s18, 7
      %p56 = por %p54, %p55
      %p57 = scmp.ne.s32.totalorder %s49, %s52
      %p58 = scmp.eq.s32.totalorder %s18, 0
      %p59 = por %p57, %p58
      %p60 = scmp.ne.s32.totalorder %s49, %s52
      %p61 = scmp.eq.s32.totalorder %s23, 7
      %p62 = por %p60, %p61
      %p63 = scmp.ne.s32.totalorder %s52, %s53
      %p64 = scmp.eq.s32.totalorder %s23, 0
      %p65 = por %p63, %p64
      %p66 = scmp.ne.s32.totalorder %s52, %s53
      %p67 = scmp.eq.s32.totalorder %s24, 7
      %p68 = por %p66, %p67
      %p70 = scmp.ne.s32.totalorder %s53, %s69
      %p71 = scmp.eq.s32.totalorder %s24, 0
      %p72 = por %p70, %p71
      %s73 = ssub.s32 %s25, %s44
      %s74 = ssub.s32 %s27, %s36
      %s75 = sor.u32 %s73, %s74
      %p76 = scmp.eq.s32.totalorder %s75, 0
      %s78 = sadd.s32 %s77, 1
      %s79 = scalar_select %p76, %s77, %s78
      %p82 = pneg %p76
      %p83 = scmp.eq.s32.totalorder %s18, 7
      %p84 = por %p82, %p83
      %p85 = scmp.ne.s32.totalorder %s77, %s80
      %p86 = scmp.eq.s32.totalorder %s18, 0
      %p87 = por %p85, %p86
      %p88 = scmp.ne.s32.totalorder %s77, %s80
      %p89 = scmp.eq.s32.totalorder %s23, 7
      %p90 = por %p88, %p89
      %p91 = scmp.ne.s32.totalorder %s80, %s81
      %p92 = scmp.eq.s32.totalorder %s23, 0
      %p93 = por %p91, %p92
      %p94 = scmp.ne.s32.totalorder %s80, %s81
      %p95 = scmp.eq.s32.totalorder %s24, 7
      %p96 = por %p94, %p95
      %p98 = scmp.ne.s32.totalorder %s81, %s97
      %p99 = scmp.eq.s32.totalorder %s24, 0
      %p100 = por %p98, %p99
      %s101 = ssub.s32 %s25, %s44
      %s102 = ssub.s32 %s27, %s36
      %s103 = sor.u32 %s101, %s102
      %p104 = scmp.eq.s32.totalorder %s103, 0
      %s106 = sadd.s32 %s105, 1
      %s107 = scalar_select %p104, %s105, %s106
      %p110 = pneg %p104
      %p111 = scmp.eq.s32.totalorder %s18, 7
      %p112 = por %p110, %p111
      %p113 = scmp.ne.s32.totalorder %s105, %s108
      %p114 = scmp.eq.s32.totalorder %s18, 0
      %p115 = por %p113, %p114
      %p116 = scmp.ne.s32.totalorder %s105, %s108
      %p117 = scmp.eq.s32.totalorder %s23, 7
      %p118 = por %p116, %p117
      %p119 = scmp.ne.s32.totalorder %s108, %s109
      %p120 = scmp.eq.s32.totalorder %s23, 0
      %p121 = por %p119, %p120
      %p122 = scmp.ne.s32.totalorder %s108, %s109
      %p123 = scmp.eq.s32.totalorder %s24, 7
      %p124 = por %p122, %p123
      %p126 = scmp.ne.s32.totalorder %s109, %s125
      %p127 = scmp.eq.s32.totalorder %s24, 0
      %p128 = por %p126, %p127
      %s129 = ssub.s32 %s25, %s44
      %s130 = ssub.s32 %s26, %s40
      %s131 = sor.u32 %s129, %s130
      %p132 = scmp.eq.s32.totalorder %s131, 0
      %s134 = sadd.s32 %s133, 1
      %s135 = scalar_select %p132, %s133, %s134
      %p138 = pneg %p132
      %p139 = scmp.eq.s32.totalorder %s18, 7
      %p140 = por %p138, %p139
      %p141 = scmp.ne.s32.totalorder %s133, %s136
      %p142 = scmp.eq.s32.totalorder %s18, 0
      %p143 = por %p141, %p142
      %p144 = scmp.ne.s32.totalorder %s133, %s136
      %p145 = scmp.eq.s32.totalorder %s23, 7
      %p146 = por %p144, %p145
      %p147 = scmp.ne.s32.totalorder %s136, %s137
      %p148 = scmp.eq.s32.totalorder %s23, 0
      %p149 = por %p147, %p148
      %p150 = scmp.ne.s32.totalorder %s136, %s137
      %p151 = scmp.eq.s32.totalorder %s24, 7
      %p152 = por %p150, %p151
      %p154 = scmp.ne.s32.totalorder %s137, %s153
      %p155 = scmp.eq.s32.totalorder %s24, 0
      %p156 = por %p154, %p155
      %p157 = scmp.le.s32.totalorder 1, %s18
      %p158 = scmp.lt.s32.totalorder %s18, 9
      %p159 = pnand %p157, %p158
      %p160 = pneg %p159
      // Predicated region
      $region9: #{lli_transformer_forward.15} parent=5 // pred_check
        _
      $region10: #{lli_transformer_forward.15} parent=5 // pred_check_branch
        %162 = sbr.rel (%p159) target = $region12
      $region11: #{lli_transformer_forward.15} parent=5 // pred_region
        %s163 = ssub.s32 %s18, 1
      $region12: #{lli_transformer_forward.15} parent=5 // pred_fallthru
        _
      %p164 = scmp.lt.s32.totalorder %s18, 8
      // Predicated region
      $region13: #{lli_transformer_forward.15} parent=5 // pred_check
        %p165 = pneg %p164
      $region14: #{lli_transformer_forward.15} parent=5 // pred_check_branch
        %167 = sbr.rel (%p165) target = $region16
      $region15: #{lli_transformer_forward.15} parent=5 // pred_region
        // Predicated region
        $region17: #{lli_transformer_forward.15} parent=15 // pred_check
          %p168 = pneg %p59
        $region18: #{lli_transformer_forward.15} parent=15 // pred_check_branch
          %170 = sbr.rel (%p168) target = $region20
        $region19: #{lli_transformer_forward.15} parent=15 // pred_region
          %s171 = sand.u32 %s49, 1
          %s172 = scalar_lea.sflag [#allocation6], %s171
          %s173 = sand.u32 %s49, 1
          %s174 = smul.addr %s173, 12
          %s175 = scalar_lea.vmem [#allocation5], %s174
          %s176 = smul.u32 3, %s26
          %s178 = ssub.s32 192, 192
          %179 = vsyncadd %s172, %s178
          %s180 = smul.addr %s25, 3
          %s181 = sadd.s32 %s176, %s180
          %s182 = smul.addr %s181, 64
          %s183 = scalar_lea.hbm %s0, %s182
          %s184 = sshll.u32 %s175, 4
          %s185 = int_to_ptr.vmem [resolvable:$true] %s184
          %190 = dma.hbm_to_vmem [thread:$0]  %s183, 192, %s185, %s172, 64, 64, 4
        $region20: #{lli_transformer_forward.15} parent=15 // pred_fallthru
          _
        // Predicated region
        $region21: #{lli_transformer_forward.15} parent=15 // pred_check
          %p191 = pneg %p87
        $region22: #{lli_transformer_forward.15} parent=15 // pred_check_branch
          %193 = sbr.rel (%p191) target = $region24
        $region23: #{lli_transformer_forward.15} parent=15 // pred_region
          %s194 = sand.u32 %s18, 1
          %s195 = scalar_lea.sflag [#allocation9], %s194
          %s196 = sand.u32 %s77, 1
          %s197 = smul.addr %s196, 12
          %s198 = scalar_lea.vmem [#allocation8], %s197
          %s199 = smul.u32 3, %s27
          %s201 = ssub.s32 192, 192
          %202 = vsyncadd %s195, %s201
          %s203 = smul.addr %s25, 3
          %s204 = sadd.s32 %s199, %s203
          %s205 = smul.addr %s204, 64
          %s206 = scalar_lea.hbm %s1, %s205
          %s207 = sshll.u32 %s198, 4
          %s208 = int_to_ptr.vmem [resolvable:$true] %s207
          %213 = dma.hbm_to_vmem [thread:$0]  %s206, 192, %s208, %s195, 64, 64, 4
        $region24: #{lli_transformer_forward.15} parent=15 // pred_fallthru
          _
        // Predicated region
        $region25: #{lli_transformer_forward.15} parent=15 // pred_check
          %p214 = pneg %p115
        $region26: #{lli_transformer_forward.15} parent=15 // pred_check_branch
          %216 = sbr.rel (%p214) target = $region28
        $region27: #{lli_transformer_forward.15} parent=15 // pred_region
          %s217 = sand.u32 %s18, 1
          %s218 = scalar_lea.sflag [#allocation9], %s217
          %s219 = sand.u32 %s105, 1
          %s220 = smul.addr %s219, 12
          %s221 = scalar_lea.vmem [#allocation10], %s220
          %s222 = smul.u32 3, %s27
          %s224 = ssub.s32 192, 192
          %225 = vsyncadd %s218, %s224
          %s226 = smul.addr %s25, 3
          %s227 = sadd.s32 %s222, %s226
          %s228 = smul.addr %s227, 64
          %s229 = scalar_lea.hbm %s2, %s228
          %s230 = sshll.u32 %s221, 4
          %s231 = int_to_ptr.vmem [resolvable:$true] %s230
          %236 = dma.hbm_to_vmem [thread:$0]  %s229, 192, %s231, %s218, 64, 64, 4
        $region28: #{lli_transformer_forward.15} parent=15 // pred_fallthru
          _
      $region16: #{lli_transformer_forward.15} parent=5 // pred_fallthru
        _
      %p237 = scmp.le.s32.totalorder 1, %s18
      %p238 = scmp.lt.s32.totalorder %s18, 9
      %p239 = pnand %p237, %p238
      %p240 = pneg %p239
      // Predicated region
      $region29: #{lli_transformer_forward.15} parent=5 // pred_check
        _
      $region30: #{lli_transformer_forward.15} parent=5 // pred_check_branch
        %242 = sbr.rel (%p239) target = $region32
      $region31: #{lli_transformer_forward.15} parent=5 // pred_region
        %s243 = ssub.s32 %s18, 1
        %s244 = sand.u32 %s52, 1
        %s245 = scalar_lea.sflag [#allocation6], %s244
        %s246 = sand.u32 %s52, 1
        %s247 = smul.addr %s246, 12
        %s248 = scalar_lea.vmem [#allocation5], %s247
        // Predicated region
        $region33: #{lli_transformer_forward.15} parent=31 // pred_check
          %p249 = pneg %p65
        $region34: #{lli_transformer_forward.15} parent=31 // pred_check_branch
          %251 = sbr.rel (%p249) target = $region36
        $region35: #{lli_transformer_forward.15} parent=31 // pred_region
          %252 = dma.done %s245, 192
        $region36: #{lli_transformer_forward.15} parent=31 // pred_fallthru
          _
        %s253 = sand.u32 %s23, 1
        %s254 = scalar_lea.sflag [#allocation9], %s253
        %s255 = sand.u32 %s80, 1
        %s256 = smul.addr %s255, 12
        %s257 = scalar_lea.vmem [#allocation8], %s256
        // Predicated region
        $region37: #{lli_transformer_forward.15} parent=31 // pred_check
          %p258 = pneg %p93
        $region38: #{lli_transformer_forward.15} parent=31 // pred_check_branch
          %260 = sbr.rel (%p258) target = $region40
        $region39: #{lli_transformer_forward.15} parent=31 // pred_region
          %261 = dma.done %s254, 192
        $region40: #{lli_transformer_forward.15} parent=31 // pred_fallthru
          _
        %s262 = sand.u32 %s23, 1
        %s263 = scalar_lea.sflag [#allocation9], %s262
        %s264 = sand.u32 %s108, 1
        %s265 = smul.addr %s264, 12
        %s266 = scalar_lea.vmem [#allocation10], %s265
        // Predicated region
        $region41: #{lli_transformer_forward.15} parent=31 // pred_check
          %p267 = pneg %p121
        $region42: #{lli_transformer_forward.15} parent=31 // pred_check_branch
          %269 = sbr.rel (%p267) target = $region44
        $region43: #{lli_transformer_forward.15} parent=31 // pred_region
          %270 = dma.done %s263, 192
        $region44: #{lli_transformer_forward.15} parent=31 // pred_fallthru
          _
        %s271 = sand.u32 %s52, 1
        %s272 = scalar_lea.sflag [#allocation6], %s271
        %s273 = sand.u32 %s52, 1
        %s274 = smul.addr %s273, 12
        %s275 = scalar_lea.vmem [#allocation5], %s274
        %p276 = pneg %p65
        %p277 = pneg %p62
        %s278 = sand.u32 %s23, 1
        %s279 = scalar_lea.sflag [#allocation9], %s278
        %s280 = sand.u32 %s80, 1
        %s281 = smul.addr %s280, 12
        %s282 = scalar_lea.vmem [#allocation8], %s281
        %p283 = pneg %p93
        %p284 = pneg %p90
        %s285 = sand.u32 %s23, 1
        %s286 = scalar_lea.sflag [#allocation9], %s285
        %s287 = sand.u32 %s108, 1
        %s288 = smul.addr %s287, 12
        %s289 = scalar_lea.vmem [#allocation10], %s288
        %p290 = pneg %p121
        %p291 = pneg %p118
        %p292 = pneg %p149
        %p293 = pneg %p146
        %s294 = sand.u32 %s136, 1
        %s295 = scalar_lea.sflag [#allocation7], %s294
        %s296 = sand.u32 %s136, 1
        %s297 = smul.addr %s296, 12
        %s298 = scalar_lea.vmem [#allocation11], %s297
        %s299 = smul.u32 3, %s29
        %s300 = smul.u32 3, %s30
        %s301 = smul.u32 3, %s30
        %s302 = smul.u32 3, %s29
        %p304 = scmp.eq.s32.totalorder %s30, 0
        // Predicated region
        $region45: #{lli_transformer_forward.15} parent=31 // pred_check
          %p305 = pneg %p304
        $region46: #{lli_transformer_forward.15} parent=31 // pred_check_branch
          %307 = sbr.rel (%p305) target = $region48
        $region47: #{lli_transformer_forward.15} parent=31 // pred_region
          %vm308 = vcmask 7168
          %309 = vst.msk [vmem:[#allocation2] sm:$0xff] %vm308, -1e+30
          %310 = vst.msk [vmem:[#allocation2 + $0x8] sm:$0xff] %vm308, -1e+30
          %311 = vst.msk [vmem:[#allocation2 + $0x10] sm:$0xff] %vm308, -1e+30
          %312 = vst.msk [vmem:[#allocation3] sm:$0xff] %vm308, 0.0
          %313 = vst.msk [vmem:[#allocation3 + $0x8] sm:$0xff] %vm308, 0.0
          %314 = vst.msk [vmem:[#allocation3 + $0x10] sm:$0xff] %vm308, 0.0
          %vm315 = vcmask 64512
          %316 = vst.msk [vmem:[#allocation4] sm:$0xff] %vm315, 0.0
          %317 = vst.msk [vmem:[#allocation4 + $0x8] sm:$0xff] %vm315, 0.0
          %318 = vst.msk [vmem:[#allocation4 + $0x10] sm:$0xff] %vm315, 0.0
        $region48: #{lli_transformer_forward.15} parent=31 // pred_fallthru
          _
        %v319 = vld [vmem:[%s248] sm:$0xf]
        %v320 = vld [vmem:[%s248 + $0x4] sm:$0xf]
        %v321 = vld [vmem:[%s248 + $0x8] sm:$0xf]
        %v322 = vld [vmem:[%s257] sm:$0xf]
        %v323 = vld [vmem:[%s257 + $0x4] sm:$0xf]
        %v324 = vld [vmem:[%s257 + $0x8] sm:$0xf]
        %v328 = vunpack.c.l.b16 %v319
        %v329 = vunpack.c.l.b16 %v320
        %v330 = vunpack.c.l.b16 %v321
        %v331 = vpack.c.b16 %v329, %v328
        %v332 = vpack.c.b16 %v330, %v330
        %v336 = vunpack.c.l.b16 %v322
        %v337 = vunpack.c.l.b16 %v323
        %v338 = vunpack.c.l.b16 %v324
        %v339 = vpack.c.b16 %v337, %v336
        %v340 = vpack.c.b16 %v338, %v338
        %vm341 = vcmask 64512
        %v343 = vsel %vm341, %v331, 0
        %v346 = vsel %vm341, %v332, 0
        %v349 = vsel %vm341, %v339, 0
        %v352 = vsel %vm341, %v340, 0
        %354 = vmatprep.subr.bf16.mxu0 0
        %355 = vmatpush1.bf16.xpose.msra.mxu0 %v349
        %356 = vmatprep.subr.bf16.mxu0 0
        %357 = vmatpush1.bf16.xpose.msra.mxu0 %v352
        %358 = vmatprep.subr.bf16.mxu0 0
        %359 = vmatpush1.bf16.xpose.msra.mxu0 0
        %360 = vmatprep.subr.bf16.mxu0 0
        %361 = vmatpush1.bf16.xpose.msra.mxu0 0
        %362 = vmatprep.subr.bf16.mxu0 0
        %363 = vmatpush1.bf16.xpose.msra.mxu0 0
        %364 = vmatprep.subr.bf16.mxu0 0
        %365 = vmatpush1.bf16.xpose.msra.mxu0 0
        %366 = vmatprep.subr.bf16.mxu0 0
        %367 = vmatpush1.bf16.xpose.msra.mxu0 0
        %368 = vmatprep.subr.bf16.mxu0 0
        %369 = vmatpush1.bf16.xpose.msra.mxu0 0
        %370 = vmatprep.subr.bf16.mxu0 0
        %371 = vmatpush1.bf16.xpose.msra.mxu0 0
        %372 = vmatprep.subr.bf16.mxu0 0
        %373 = vmatpush1.bf16.xpose.msra.mxu0 0
        %374 = vmatprep.subr.bf16.mxu0 0
        %375 = vmatpush1.bf16.xpose.msra.mxu0 0
        %376 = vmatprep.subr.bf16.mxu0 0
        %377 = vmatpush1.bf16.xpose.msra.mxu0 0
        %378 = vmatprep.subr.bf16.mxu0 0
        %379 = vmatpush1.bf16.xpose.msra.mxu0 0
        %380 = vmatprep.subr.bf16.mxu0 0
        %381 = vmatpush1.bf16.xpose.msra.mxu0 0
        %382 = vmatprep.subr.bf16.mxu0 0
        %383 = vmatpush1.bf16.xpose.msra.mxu0 0
        %384 = vmatprep.subr.bf16.mxu0 0
        %385 = vmatpush1.bf16.xpose.msra.mxu0 0
        %386 = vmatprep.mubr.bf16.mxu0 0
        %387 = vmatmul.mubr.bf16.gmra.mrb[0].mxu0 %v343
        %v388 = vpop.f32.mrb[0].mxu0
        %v389 = vadd.f32 0.0, %v388
        %v390 = vpop.f32.mrb[0].mxu0
        %v391 = vpop.f32.mrb[0].mxu0
        %v392 = vadd.f32 0.0, %v391
        %v393 = vpop.f32.mrb[0].mxu0
        %394 = vmatprep.mubr.bf16.mxu0 0
        %395 = vmatmul.mubr.bf16.gmra.mrb[0].mxu0 %v346
        %v396 = vpop.f32.mrb[0].mxu0
        %v397 = vadd.f32 0.0, %v396
        %v398 = vpop.f32.mrb[0].mxu0
        %v399 = vpop.f32.mrb[0].mxu0
        %v400 = vpop.f32.mrb[0].mxu0
        %401 = vdwg.mxu0
        %v402 = vmul.f32 %v389, 0.35355338
        %v403 = vmul.f32 %v392, 0.35355338
        %v404 = vmul.f32 %v397, 0.35355338
        %s405 = smul.u32 %s30, 24
        %v406 = vlaneseq
        %v407 = vand.u32 %v406, 127
        %v408 = vstv %s405
        %v409 = vadd.s32 %v408, %v407
        %vm410 = vcmp.lt.s32.totalorder %v409, 17
        %v411 = vsel %vm410, %v402, -1e+30
        %v412 = vsel %vm410, %v403, -1e+30
        %v413 = vsel %vm410, %v404, -1e+30
        %v414 = vld [vmem:[#allocation2] sm:$0xff]
        %v415 = vld [vmem:[#allocation2 + $0x8] sm:$0xff]
        %v416 = vld [vmem:[#allocation2 + $0x10] sm:$0xff]
        %vm417 = vcmask 195584
        %v418 = vsel %vm417, %v411, -inf
        %419 = vmax.xlane.f32.xlu0 %v418
        %v420 = vpop.xlane.xlu0 %419
        %v421 = vsel %vm417, %v412, -inf
        %422 = vmax.xlane.f32.xlu0 %v421
        %v423 = vpop.xlane.xlu0 %422
        %v424 = vsel %vm417, %v413, -inf
        %425 = vmax.xlane.f32.xlu0 %v424
        %v426 = vpop.xlane.xlu0 %425
        %v427 = vmax.f32 %v414, %v420
        %v428 = vmax.f32 %v415, %v423
        %v429 = vmax.f32 %v416, %v426
        %v430 = vsub.f32 %v414, %v427
        %v431 = vsub.f32 %v415, %v428
        %v432 = vsub.f32 %v416, %v429
        %v433 = vmul.f32 %v430, 1.442695
        %v434 = vpow.pop %v433
        %v435 = vmul.f32 %v431, 1.442695
        %v436 = vpow.pop %v435
        %v437 = vmul.f32 %v432, 1.442695
        %v438 = vpow.pop %v437
        %440 = vset.pattern.permute.xlu0 0
        %441 = vperm.xlu0 %440, %v427
        %v442 = vpop.permute.xlu0 %441
        %445 = vset.pattern.permute.xlu0 0
        %446 = vperm.xlu0 %445, %v428
        %v447 = vpop.permute.xlu0 %446
        %450 = vset.pattern.permute.xlu0 0
        %451 = vperm.xlu0 %450, %v429
        %v452 = vpop.permute.xlu0 %451
        %v454 = vsub.f32 %v411, %v442
        %v455 = vsub.f32 %v412, %v447
        %v456 = vsub.f32 %v413, %v452
        %v457 = vmul.f32 %v454, 1.442695
        %v458 = vpow.pop %v457
        %v459 = vmul.f32 %v455, 1.442695
        %v460 = vpow.pop %v459
        %v461 = vmul.f32 %v456, 1.442695
        %v462 = vpow.pop %v461
        %v463 = vld [vmem:[#allocation3] sm:$0xff]
        %v464 = vld [vmem:[#allocation3 + $0x8] sm:$0xff]
        %v465 = vld [vmem:[#allocation3 + $0x10] sm:$0xff]
        %v466 = vmul.f32 %v434, %v463
        %v467 = vmul.f32 %v436, %v464
        %v468 = vmul.f32 %v438, %v465
        %v469 = vsel %vm417, %v458, 0.0
        %470 = vadd.xlane.f32.xlu0 %v469
        %v471 = vpop.xlane.xlu0 %470
        %v472 = vsel %vm417, %v460, 0.0
        %473 = vadd.xlane.f32.xlu0 %v472
        %v474 = vpop.xlane.xlu0 %473
        %v475 = vsel %vm417, %v462, 0.0
        %476 = vadd.xlane.f32.xlu0 %v475
        %v477 = vpop.xlane.xlu0 %476
        %v478 = vadd.f32 %v466, %v471
        %v479 = vadd.f32 %v467, %v474
        %v480 = vadd.f32 %v468, %v477
        %vm481 = vcmask 7168
        %482 = vst.msk [vmem:[#allocation3] sm:$0xff] %vm481, %v478
        %483 = vst.msk [vmem:[#allocation3 + $0x8] sm:$0xff] %vm481, %v479
        %484 = vst.msk [vmem:[#allocation3 + $0x10] sm:$0xff] %vm481, %v480
        %v485 = vld [vmem:[#allocation4] sm:$0xff]
        %v486 = vld [vmem:[#allocation4 + $0x8] sm:$0xff]
        %v487 = vld [vmem:[#allocation4 + $0x10] sm:$0xff]
        %489 = vset.pattern.permute.xlu0 0
        %490 = vperm.xlu0 %489, %v434
        %v491 = vpop.permute.xlu0 %490
        %494 = vset.pattern.permute.xlu0 0
        %495 = vperm.xlu0 %494, %v436
        %v496 = vpop.permute.xlu0 %495
        %499 = vset.pattern.permute.xlu0 0
        %500 = vperm.xlu0 %499, %v438
        %v501 = vpop.permute.xlu0 %500
        %v503 = vmul.f32 %v491, %v485
        %v504 = vmul.f32 %v496, %v486
        %v505 = vmul.f32 %v501, %v487
        %v506 = vpack.c.bf16 %v460, %v458
        %v507 = vpack.c.bf16 %v462, %v462
        %v508 = vld [vmem:[%s266] sm:$0xf]
        %v509 = vld [vmem:[%s266 + $0x4] sm:$0xf]
        %v510 = vld [vmem:[%s266 + $0x8] sm:$0xf]
        %v514 = vunpack.c.l.b16 %v508
        %v515 = vunpack.c.l.b16 %v509
        %v516 = vunpack.c.l.b16 %v510
        %v517 = vpack.c.b16 %v515, %v514
        %v518 = vpack.c.b16 %v516, %v516
        %v521 = vsel %vm417, %v506, 0
        %v524 = vsel %vm417, %v507, 0
        %vm526 = vcmask 1043456
        %v528 = vsel %vm526, %v518, 0
        %530 = vmatprep.subr.bf16.mxu0 0
        %531 = vmatpush1.bf16.msra.mxu0 %v517
        %532 = vmatprep.subr.bf16.mxu0 0
        %533 = vmatpush1.bf16.msra.mxu0 %v528
        %534 = vmatprep.subr.bf16.mxu0 0
        %535 = vmatpush1.bf16.msra.mxu0 0
        %536 = vmatprep.subr.bf16.mxu0 0
        %537 = vmatpush1.bf16.msra.mxu0 0
        %538 = vmatprep.subr.bf16.mxu0 0
        %539 = vmatpush1.bf16.msra.mxu0 0
        %540 = vmatprep.subr.bf16.mxu0 0
        %541 = vmatpush1.bf16.msra.mxu0 0
        %542 = vmatprep.subr.bf16.mxu0 0
        %543 = vmatpush1.bf16.msra.mxu0 0
        %544 = vmatprep.subr.bf16.mxu0 0
        %545 = vmatpush1.bf16.msra.mxu0 0
        %546 = vmatprep.subr.bf16.mxu0 0
        %547 = vmatpush1.bf16.msra.mxu0 0
        %548 = vmatprep.subr.bf16.mxu0 0
        %549 = vmatpush1.bf16.msra.mxu0 0
        %550 = vmatprep.subr.bf16.mxu0 0
        %551 = vmatpush1.bf16.msra.mxu0 0
        %552 = vmatprep.subr.bf16.mxu0 0
        %553 = vmatpush1.bf16.msra.mxu0 0
        %554 = vmatprep.subr.bf16.mxu0 0
        %555 = vmatpush1.bf16.msra.mxu0 0
        %556 = vmatprep.subr.bf16.mxu0 0
        %557 = vmatpush1.bf16.msra.mxu0 0
        %558 = vmatprep.subr.bf16.mxu0 0
        %559 = vmatpush1.bf16.msra.mxu0 0
        %560 = vmatprep.subr.bf16.mxu0 0
        %561 = vmatpush1.bf16.msra.mxu0 0
        %562 = vmatprep.mubr.bf16.mxu0 0
        %563 = vmatmul.mubr.bf16.gmra.mrb[0].mxu0 %v521
        %v564 = vpop.f32.mrb[0].mxu0
        %v565 = vadd.f32 0.0, %v564
        %v566 = vpop.f32.mrb[0].mxu0
        %v567 = vpop.f32.mrb[0].mxu0
        %v568 = vadd.f32 0.0, %v567
        %v569 = vpop.f32.mrb[0].mxu0
        %570 = vmatprep.mubr.bf16.mxu0 0
        %571 = vmatmul.mubr.bf16.gmra.mrb[0].mxu0 %v524
        %v572 = vpop.f32.mrb[0].mxu0
        %v573 = vadd.f32 0.0, %v572
        %v574 = vpop.f32.mrb[0].mxu0
        %v575 = vpop.f32.mrb[0].mxu0
        %v576 = vpop.f32.mrb[0].mxu0
        %577 = vdwg.mxu0
        %v578 = vadd.f32 %v503, %v565
        %v579 = vadd.f32 %v504, %v568
        %v580 = vadd.f32 %v505, %v573
        %581 = vst.msk [vmem:[#allocation4] sm:$0xff] %vm341, %v578
        %582 = vst.msk [vmem:[#allocation4 + $0x8] sm:$0xff] %vm341, %v579
        %583 = vst.msk [vmem:[#allocation4 + $0x10] sm:$0xff] %vm341, %v580
        %584 = vst.msk [vmem:[#allocation2] sm:$0xff] %vm481, %v427
        %585 = vst.msk [vmem:[#allocation2 + $0x8] sm:$0xff] %vm481, %v428
        %586 = vst.msk [vmem:[#allocation2 + $0x10] sm:$0xff] %vm481, %v429
        // Predicated region
        $region49: #{lli_transformer_forward.15} parent=31 // pred_check
          %p587 = pneg %p304
        $region50: #{lli_transformer_forward.15} parent=31 // pred_check_branch
          %589 = sbr.rel (%p587) target = $region52
        $region51: #{lli_transformer_forward.15} parent=31 // pred_region
          %v590 = vld [vmem:[#allocation4] sm:$0xff]
          %v591 = vld [vmem:[#allocation4 + $0x8] sm:$0xff]
          %v592 = vld [vmem:[#allocation4 + $0x10] sm:$0xff]
          %v593 = vld [vmem:[#allocation3] sm:$0xff]
          %v594 = vld [vmem:[#allocation3 + $0x8] sm:$0xff]
          %v595 = vld [vmem:[#allocation3 + $0x10] sm:$0xff]
          %v596 = vrcp.pop %v593
          %v597 = vrcp.pop %v594
          %v598 = vrcp.pop %v595
          %600 = vset.pattern.permute.xlu0 0
          %601 = vperm.xlu0 %600, %v596
          %v602 = vpop.permute.xlu0 %601
          %605 = vset.pattern.permute.xlu0 0
          %606 = vperm.xlu0 %605, %v597
          %v607 = vpop.permute.xlu0 %606
          %610 = vset.pattern.permute.xlu0 0
          %611 = vperm.xlu0 %610, %v598
          %v612 = vpop.permute.xlu0 %611
          %v614 = vmul.f32 %v590, %v602
          %v615 = vmul.f32 %v591, %v607
          %v616 = vmul.f32 %v592, %v612
          %v617 = vpack.c.bf16 %v615, %v614
          %v618 = vpack.c.bf16 %v616, %v616
          %v621 = vunpack.c.l.b16 %v617
          %v622 = vunpack.c.h.b16 %v617
          %v623 = vunpack.c.l.b16 %v618
          %v624 = vpack.c.b16 %v621, %v621
          %v625 = vpack.c.b16 %v622, %v622
          %v626 = vpack.c.b16 %v623, %v623
          %vm630 = vcmask 60416
          %631 = vst.msk [vmem:[%s298] sm:$0xf] %vm630, %v624
          %632 = vst.msk [vmem:[%s298 + $0x4] sm:$0xf] %vm630, %v625
          %633 = vst.msk [vmem:[%s298 + $0x8] sm:$0xf] %vm630, %v626
        $region52: #{lli_transformer_forward.15} parent=31 // pred_fallthru
          _
        %s634 = sand.u32 %s136, 1
        %s635 = scalar_lea.sflag [#allocation7], %s634
        %s636 = sand.u32 %s136, 1
        %s637 = smul.addr %s636, 12
        %s638 = scalar_lea.vmem [#allocation11], %s637
        // Predicated region
        $region53: #{lli_transformer_forward.15} parent=31 // pred_check
          %p639 = pneg %p146
        $region54: #{lli_transformer_forward.15} parent=31 // pred_check_branch
          %641 = sbr.rel (%p639) target = $region56
        $region55: #{lli_transformer_forward.15} parent=31 // pred_region
          %s642 = smul.u32 3, %s29
          %s644 = ssub.s32 192, 192
          %645 = vsyncadd %s635, %s644
          %s646 = smul.addr %s28, 3
          %s647 = sadd.s32 %s642, %s646
          %s648 = smul.addr %s647, 64
          %s649 = scalar_lea.hbm %s3, %s648
          %s650 = sshll.u32 %s638, 4
          %s651 = int_to_ptr.vmem [resolvable:$true] %s650
          %656 = dma.vmem_to_hbm [thread:$0]  %s651, 192, %s649, %s635, 64, 64, 4
        $region56: #{lli_transformer_forward.15} parent=31 // pred_fallthru
          _
      $region32: #{lli_transformer_forward.15} parent=5 // pred_fallthru
        _
      %p657 = scmp.le.s32.totalorder 2, %s18
      // Predicated region
      $region57: #{lli_transformer_forward.15} parent=5 // pred_check
        %p658 = pneg %p657
      $region58: #{lli_transformer_forward.15} parent=5 // pred_check_branch
        %660 = sbr.rel (%p658) target = $region60
      $region59: #{lli_transformer_forward.15} parent=5 // pred_region
        %s661 = ssub.s32 %s18, 2
        // Predicated region
        $region61: #{lli_transformer_forward.15} parent=59 // pred_check
          %p662 = pneg %p152
        $region62: #{lli_transformer_forward.15} parent=59 // pred_check_branch
          %664 = sbr.rel (%p662) target = $region64
        $region63: #{lli_transformer_forward.15} parent=59 // pred_region
          %s665 = sand.u32 %s137, 1
          %s666 = scalar_lea.sflag [#allocation7], %s665
          %s667 = sand.u32 %s137, 1
          %s668 = smul.addr %s667, 12
          %s669 = scalar_lea.vmem [#allocation11], %s668
          %670 = dma.done %s666, 192
        $region64: #{lli_transformer_forward.15} parent=59 // pred_fallthru
          _
      $region60: #{lli_transformer_forward.15} parent=5 // pred_fallthru
        _
    $region6: #{lli_transformer_forward.15} parent=1 // loop_footer
      %s22 = sadd.s32 1, %s18
    $region7: #{lli_transformer_forward.15} parent=1 // loop_footer_branch
      %17 = sbr.rel target = $region3
    $region8: #{lli_transformer_forward.15} parent=1 // loop_exit
      _
    %671 = vsyncpa [#allocation6], 1
    %s672 = scalar_lea.sflag [#allocation6], 1
    %673 = vsyncpa %s672, 1
    %674 = vsyncpa [#allocation9], 1
    %s675 = scalar_lea.sflag [#allocation9], 1
    %676 = vsyncpa %s675, 1
    %677 = vsyncpa [#allocation7], 1
    %s678 = scalar_lea.sflag [#allocation7], 1
    %679 = vsyncpa %s678, 1

// kernel: lli_transformer_forward.17
$region0: #{lli_transformer_forward.17}
  #allocation0 [shape = 'u32[]', space=smem, size = 0x4, offset = 0x4, fixed_abs, tag = 'smem constant byte address 0x4 - core index']
  #allocation1 [shape = 'u32[144,128]{1,0:T(1,128)}', space=vmem, size = 0x12000, scoped, tag = 'internal scratch']
  #allocation2 [shape = 'bf16[48,32]{1,0:T(16,128)(2,1)}', space=vmem, size = 0x3000, scoped, tag = 'scratch operand']
  #allocation3 [shape = 'f32[48,32]{1,0:T(8,128)}', space=vmem, size = 0x6000, scoped, tag = 'scratch operand']
  %s0 = inlined_call_operand.hbm [shape: bf16[48,32], index: 0, kind: input, shape index: {}, may-alias: {0,7}]
  %s1 = inlined_call_operand.hbm [shape: f32[1,32], index: 1, kind: input, shape index: {}]
  %s2 = inlined_call_operand.hbm [shape: f32[1,32], index: 2, kind: input, shape index: {}]
  %s3 = inlined_call_operand.hbm [shape: bf16[32,64], index: 3, kind: input, shape index: {}]
  %s4 = inlined_call_operand.hbm [shape: f32[1,64], index: 4, kind: input, shape index: {}]
  %s5 = inlined_call_operand.hbm [shape: bf16[64,32], index: 5, kind: input, shape index: {}]
  %s6 = inlined_call_operand.hbm [shape: f32[1,32], index: 6, kind: input, shape index: {}]
  %s7 = inlined_call_operand.hbm [shape: bf16[48,32], index: 7, kind: input, shape index: {}, may-alias: {0,7}]
  %s8 = inlined_call_operand.hbm [shape: bf16[48,32], index: 8, kind: output, shape index: {}]
  %s9 = sld [smem:[#allocation0]]
  $region82: #{lli_transformer_forward.17} parent=0
    _
  %s11 = ssub.s32 1, %s9
  %s12 = scalar_select 0, %s11, %s9
  $region1: #{lli_transformer_forward.17} parent=0
    #allocation4 [shape = 'u8[12288]{0}', space=vmem, size = 0x3000, scoped, tag = 'input window, operand 0, single buffered']
    #allocation5 [shape = 's32[1]{0}', space=sflag, size = 0x4, scoped, tag = 'scoped memory for lli_transformer_forward.17']
    #allocation6 [shape = 's32[1]{0}', space=sflag, size = 0x4, scoped, tag = 'scoped memory for lli_transformer_forward.17']
    #allocation7 [shape = 'u8[512]{0}', space=vmem, size = 0x400, scoped, tag = 'input window, operand 1, single buffered']
    #allocation8 [shape = 's32[1]{0}', space=sflag, size = 0x4, scoped, tag = 'scoped memory for lli_transformer_forward.17']
    #allocation9 [shape = 'u8[512]{0}', space=vmem, size = 0x400, scoped, tag = 'input window, operand 2, single buffered']
    #allocation10 [shape = 'u8[8192]{0}', space=vmem, size = 0x2000, scoped, tag = 'input window, operand 3, single buffered']
    #allocation11 [shape = 's32[1]{0}', space=sflag, size = 0x4, scoped, tag = 'scoped memory for lli_transformer_forward.17']
    #allocation12 [shape = 'u8[512]{0}', space=vmem, size = 0x400, scoped, tag = 'input window, operand 4, single buffered']
    #allocation13 [shape = 'u8[16384]{0}', space=vmem, size = 0x4000, scoped, tag = 'input window, operand 5, single buffered']
    #allocation14 [shape = 's32[1]{0}', space=sflag, size = 0x4, scoped, tag = 'scoped memory for lli_transformer_forward.17']
    #allocation15 [shape = 'u8[512]{0}', space=vmem, size = 0x400, scoped, tag = 'input window, operand 6, single buffered']
    #allocation16 [shape = 'u8[12288]{0}', space=vmem, size = 0x3000, scoped, tag = 'input window, operand 7, single buffered']
    #allocation17 [shape = 's32[1]{0}', space=sflag, size = 0x4, scoped, tag = 'scoped memory for lli_transformer_forward.17']
    #allocation18 [shape = 'u8[12288]{0}', space=vmem, size = 0x3000, scoped, tag = 'output window, operand 0, single buffered']
    %13 = vsyncpa [#allocation5], 0
    %14 = vsyncpa [#allocation8], 0
    %15 = vsyncpa [#allocation11], 0
    %16 = vsyncpa [#allocation14], 0
    %17 = vsyncpa [#allocation17], 0
    %18 = vsyncpa [#allocation6], 0
    // Predicated region
    $region2: #{lli_transformer_forward.17} parent=1 // pred_check
      _
    $region3: #{lli_transformer_forward.17} parent=1 // pred_check_branch
      %20 = sbr.rel (0) target = $region5
    $region4: #{lli_transformer_forward.17} parent=1 // pred_region
      %s22 = ssub.s32 384, 384
      %23 = vsyncadd [#allocation5], %s22
      %s24 = sshll.u32 [#allocation4], 4
      %s25 = int_to_ptr.vmem [resolvable:$true] %s24
      %30 = dma.hbm_to_vmem [thread:$0]  %s0, 384, %s25, [#allocation5], 64, 64, 4
    $region5: #{lli_transformer_forward.17} parent=1 // pred_fallthru
      _
    // Predicated region
    $region6: #{lli_transformer_forward.17} parent=1 // pred_check
      _
    $region7: #{lli_transformer_forward.17} parent=1 // pred_check_branch
      %32 = sbr.rel (0) target = $region9
    $region8: #{lli_transformer_forward.17} parent=1 // pred_region
      %s34 = ssub.s32 16, 16
      %35 = vsyncadd [#allocation8], %s34
      %s37 = sshll.u32 [#allocation7], 4
      %s38 = int_to_ptr.vmem [resolvable:$true] %s37
      %40 = dma.hbm_to_vmem [thread:$0]  %s1, 16, %s38, [#allocation8]
    $region9: #{lli_transformer_forward.17} parent=1 // pred_fallthru
      _
    // Predicated region
    $region10: #{lli_transformer_forward.17} parent=1 // pred_check
      _
    $region11: #{lli_transformer_forward.17} parent=1 // pred_check_branch
      %42 = sbr.rel (0) target = $region13
    $region12: #{lli_transformer_forward.17} parent=1 // pred_region
      %s44 = ssub.s32 16, 16
      %45 = vsyncadd [#allocation8], %s44
      %s47 = sshll.u32 [#allocation9], 4
      %s48 = int_to_ptr.vmem [resolvable:$true] %s47
      %50 = dma.hbm_to_vmem [thread:$0]  %s2, 16, %s48, [#allocation8]
    $region13: #{lli_transformer_forward.17} parent=1 // pred_fallthru
      _
    // Predicated region
    $region14: #{lli_transformer_forward.17} parent=1 // pred_check
      _
    $region15: #{lli_transformer_forward.17} parent=1 // pred_check_branch
      %52 = sbr.rel (0) target = $region17
    $region16: #{lli_transformer_forward.17} parent=1 // pred_region
      %s54 = ssub.s32 256, 256
      %55 = vsyncadd [#allocation11], %s54
      %s56 = sshll.u32 [#allocation10], 4
      %s57 = int_to_ptr.vmem [resolvable:$true] %s56
      %62 = dma.hbm_to_vmem [thread:$0]  %s3, 256, %s57, [#allocation11], 64, 64, 4
    $region17: #{lli_transformer_forward.17} parent=1 // pred_fallthru
      _
    // Predicated region
    $region18: #{lli_transformer_forward.17} parent=1 // pred_check
      _
    $region19: #{lli_transformer_forward.17} parent=1 // pred_check_branch
      %64 = sbr.rel (0) target = $region21
    $region20: #{lli_transformer_forward.17} parent=1 // pred_region
      %s66 = ssub.s32 16, 16
      %67 = vsyncadd [#allocation11], %s66
      %s69 = sshll.u32 [#allocation12], 4
      %s70 = int_to_ptr.vmem [resolvable:$true] %s69
      %72 = dma.hbm_to_vmem [thread:$0]  %s4, 16, %s70, [#allocation11]
    $region21: #{lli_transformer_forward.17} parent=1 // pred_fallthru
      _
    // Predicated region
    $region22: #{lli_transformer_forward.17} parent=1 // pred_check
      _
    $region23: #{lli_transformer_forward.17} parent=1 // pred_check_branch
      %74 = sbr.rel (0) target = $region25
    $region24: #{lli_transformer_forward.17} parent=1 // pred_region
      %s76 = ssub.s32 512, 512
      %77 = vsyncadd [#allocation14], %s76
      %s78 = sshll.u32 [#allocation13], 4
      %s79 = int_to_ptr.vmem [resolvable:$true] %s78
      %84 = dma.hbm_to_vmem [thread:$0]  %s5, 512, %s79, [#allocation14], 64, 64, 4
    $region25: #{lli_transformer_forward.17} parent=1 // pred_fallthru
      _
    // Predicated region
    $region26: #{lli_transformer_forward.17} parent=1 // pred_check
      _
    $region27: #{lli_transformer_forward.17} parent=1 // pred_check_branch
      %86 = sbr.rel (0) target = $region29
    $region28: #{lli_transformer_forward.17} parent=1 // pred_region
      %s88 = ssub.s32 16, 16
      %89 = vsyncadd [#allocation14], %s88
      %s91 = sshll.u32 [#allocation15], 4
      %s92 = int_to_ptr.vmem [resolvable:$true] %s91
      %94 = dma.hbm_to_vmem [thread:$0]  %s6, 16, %s92, [#allocation14]
    $region29: #{lli_transformer_forward.17} parent=1 // pred_fallthru
      _
    // Predicated region
    $region30: #{lli_transformer_forward.17} parent=1 // pred_check
      _
    $region31: #{lli_transformer_forward.17} parent=1 // pred_check_branch
      %96 = sbr.rel (0) target = $region33
    $region32: #{lli_transformer_forward.17} parent=1 // pred_region
      %s98 = ssub.s32 384, 384
      %99 = vsyncadd [#allocation17], %s98
      %s100 = sshll.u32 [#allocation16], 4
      %s101 = int_to_ptr.vmem [resolvable:$true] %s100
      %106 = dma.hbm_to_vmem [thread:$0]  %s7, 384, %s101, [#allocation17], 64, 64, 4
    $region33: #{lli_transformer_forward.17} parent=1 // pred_fallthru
      _
    // Predicated region
    $region34: #{lli_transformer_forward.17} parent=1 // pred_check
      _
    $region35: #{lli_transformer_forward.17} parent=1 // pred_check_branch
      %108 = sbr.rel (0) target = $region37
    $region36: #{lli_transformer_forward.17} parent=1 // pred_region
      %109 = dma.done [#allocation5], 384
    $region37: #{lli_transformer_forward.17} parent=1 // pred_fallthru
      _
    // Predicated region
    $region38: #{lli_transformer_forward.17} parent=1 // pred_check
      _
    $region39: #{lli_transformer_forward.17} parent=1 // pred_check_branch
      %111 = sbr.rel (0) target = $region41
    $region40: #{lli_transformer_forward.17} parent=1 // pred_region
      %112 = dma.done [#allocation8], 16
    $region41: #{lli_transformer_forward.17} parent=1 // pred_fallthru
      _
    // Predicated region
    $region42: #{lli_transformer_forward.17} parent=1 // pred_check
      _
    $region43: #{lli_transformer_forward.17} parent=1 // pred_check_branch
      %114 = sbr.rel (0) target = $region45
    $region44: #{lli_transformer_forward.17} parent=1 // pred_region
      %115 = dma.done [#allocation8], 16
    $region45: #{lli_transformer_forward.17} parent=1 // pred_fallthru
      _
    // Predicated region
    $region46: #{lli_transformer_forward.17} parent=1 // pred_check
      _
    $region47: #{lli_transformer_forward.17} parent=1 // pred_check_branch
      %117 = sbr.rel (0) target = $region49
    $region48: #{lli_transformer_forward.17} parent=1 // pred_region
      %118 = dma.done [#allocation11], 256
    $region49: #{lli_transformer_forward.17} parent=1 // pred_fallthru
      _
    // Predicated region
    $region50: #{lli_transformer_forward.17} parent=1 // pred_check
      _
    $region51: #{lli_transformer_forward.17} parent=1 // pred_check_branch
      %120 = sbr.rel (0) target = $region53
    $region52: #{lli_transformer_forward.17} parent=1 // pred_region
      %121 = dma.done [#allocation11], 16
    $region53: #{lli_transformer_forward.17} parent=1 // pred_fallthru
      _
    // Predicated region
    $region54: #{lli_transformer_forward.17} parent=1 // pred_check
      _
    $region55: #{lli_transformer_forward.17} parent=1 // pred_check_branch
      %123 = sbr.rel (0) target = $region57
    $region56: #{lli_transformer_forward.17} parent=1 // pred_region
      %124 = dma.done [#allocation14], 512
    $region57: #{lli_transformer_forward.17} parent=1 // pred_fallthru
      _
    // Predicated region
    $region58: #{lli_transformer_forward.17} parent=1 // pred_check
      _
    $region59: #{lli_transformer_forward.17} parent=1 // pred_check_branch
      %126 = sbr.rel (0) target = $region61
    $region60: #{lli_transformer_forward.17} parent=1 // pred_region
      %127 = dma.done [#allocation14], 16
    $region61: #{lli_transformer_forward.17} parent=1 // pred_fallthru
      _
    // Predicated region
    $region62: #{lli_transformer_forward.17} parent=1 // pred_check
      _
    $region63: #{lli_transformer_forward.17} parent=1 // pred_check_branch
      %129 = sbr.rel (0) target = $region65
    $region64: #{lli_transformer_forward.17} parent=1 // pred_region
      %130 = dma.done [#allocation17], 384
    $region65: #{lli_transformer_forward.17} parent=1 // pred_fallthru
      _
    %p132 = scmp.eq.s32.totalorder 0, 0
    // Predicated region
    $region66: #{lli_transformer_forward.17} parent=1 // pred_check
      %p133 = pneg %p132
    $region67: #{lli_transformer_forward.17} parent=1 // pred_check_branch
      %135 = sbr.rel (%p133) target = $region69
    $region68: #{lli_transformer_forward.17} parent=1 // pred_region
      %v136 = vld [vmem:[#allocation4] sm:$0xf]
      %v137 = vld [vmem:[#allocation4 + $0x4] sm:$0xf]
      %v138 = vld [vmem:[#allocation4 + $0x8] sm:$0xf]
      %v139 = vld [vmem:[#allocation4 + $0xc] sm:$0xf]
      %v140 = vld [vmem:[#allocation4 + $0x10] sm:$0xf]
      %v141 = vld [vmem:[#allocation4 + $0x14] sm:$0xf]
      %v142 = vunpack.c.l.bf16 %v136
      %v143 = vunpack.c.l.bf16 %v137
      %v144 = vunpack.c.l.bf16 %v138
      %v145 = vunpack.c.l.bf16 %v139
      %v146 = vunpack.c.l.bf16 %v140
      %v147 = vunpack.c.l.bf16 %v141
      %vm148 = vcmask 261120
      %v149 = vsel %vm148, %v142, 0.0
      %150 = vadd.xlane.f32.xlu0 %v149
      %v151 = vpop.xlane.xlu0 %150
      %v152 = vsel %vm148, %v143, 0.0
      %153 = vadd.xlane.f32.xlu0 %v152
      %v154 = vpop.xlane.xlu0 %153
      %v155 = vsel %vm148, %v144, 0.0
      %156 = vadd.xlane.f32.xlu0 %v155
      %v157 = vpop.xlane.xlu0 %156
      %v158 = vsel %vm148, %v145, 0.0
      %159 = vadd.xlane.f32.xlu0 %v158
      %v160 = vpop.xlane.xlu0 %159
      %v161 = vsel %vm148, %v146, 0.0
      %162 = vadd.xlane.f32.xlu0 %v161
      %v163 = vpop.xlane.xlu0 %162
      %v164 = vsel %vm148, %v147, 0.0
      %165 = vadd.xlane.f32.xlu0 %v164
      %v166 = vpop.xlane.xlu0 %165
      %v167 = vrcp.pop 32.0
      %v168 = vmul.f32 %v151, %v167
      %v169 = vmul.f32 %v154, %v167
      %v170 = vmul.f32 %v157, %v167
      %v171 = vmul.f32 %v160, %v167
      %v172 = vmul.f32 %v163, %v167
      %v173 = vmul.f32 %v166, %v167
      %v174 = vsub.f32 %v142, %v168
      %v175 = vsub.f32 %v143, %v169
      %v176 = vsub.f32 %v144, %v170
      %v177 = vsub.f32 %v145, %v171
      %v178 = vsub.f32 %v146, %v172
      %v179 = vsub.f32 %v147, %v173
      %v180 = vmul.f32 %v174, %v174
      %v181 = vmul.f32 %v175, %v175
      %v182 = vmul.f32 %v176, %v176
      %v183 = vmul.f32 %v177, %v177
      %v184 = vmul.f32 %v178, %v178
      %v185 = vmul.f32 %v179, %v179
      %v186 = vsel %vm148, %v180, 0.0
      %187 = vadd.xlane.f32.xlu0 %v186
      %v188 = vpop.xlane.xlu0 %187
      %v189 = vsel %vm148, %v181, 0.0
      %190 = vadd.xlane.f32.xlu0 %v189
      %v191 = vpop.xlane.xlu0 %190
      %v192 = vsel %vm148, %v182, 0.0
      %193 = vadd.xlane.f32.xlu0 %v192
      %v194 = vpop.xlane.xlu0 %193
      %v195 = vsel %vm148, %v183, 0.0
      %196 = vadd.xlane.f32.xlu0 %v195
      %v197 = vpop.xlane.xlu0 %196
      %v198 = vsel %vm148, %v184, 0.0
      %199 = vadd.xlane.f32.xlu0 %v198
      %v200 = vpop.xlane.xlu0 %199
      %v201 = vsel %vm148, %v185, 0.0
      %202 = vadd.xlane.f32.xlu0 %v201
      %v203 = vpop.xlane.xlu0 %202
      %v204 = vmul.f32 %v188, %v167
      %v205 = vmul.f32 %v191, %v167
      %v206 = vmul.f32 %v194, %v167
      %v207 = vmul.f32 %v197, %v167
      %v208 = vmul.f32 %v200, %v167
      %v209 = vmul.f32 %v203, %v167
      %v210 = vadd.f32 %v204, 1e-05
      %v211 = vadd.f32 %v205, 1e-05
      %v212 = vadd.f32 %v206, 1e-05
      %v213 = vadd.f32 %v207, 1e-05
      %v214 = vadd.f32 %v208, 1e-05
      %v215 = vadd.f32 %v209, 1e-05
      %v216 = vrsqrt.pop %v210
      %v217 = vrsqrt.pop %v211
      %v218 = vrsqrt.pop %v212
      %v219 = vrsqrt.pop %v213
      %v220 = vrsqrt.pop %v214
      %v221 = vrsqrt.pop %v215
      %v222 = vmul.f32 %v174, %v216
      %v223 = vmul.f32 %v175, %v217
      %v224 = vmul.f32 %v176, %v218
      %v225 = vmul.f32 %v177, %v219
      %v226 = vmul.f32 %v178, %v220
      %v227 = vmul.f32 %v179, %v221
      %v228 = vld [vmem:[#allocation7] sm:$0x1]
      %v230 = vlaneseq
      %v231 = vshrl.u32 %v230, 7
      %v232 = vsub.s32 0, %v231
      %v233 = vrot.slane %v228, %v232
      %v235 = vmul.f32 %v222, %v233
      %v236 = vmul.f32 %v223, %v233
      %v237 = vmul.f32 %v224, %v233
      %v238 = vmul.f32 %v225, %v233
      %v239 = vmul.f32 %v226, %v233
      %v240 = vmul.f32 %v227, %v233
      %v241 = vld [vmem:[#allocation9] sm:$0x1]
      %v243 = vlaneseq
      %v244 = vshrl.u32 %v243, 7
      %v245 = vsub.s32 0, %v244
      %v246 = vrot.slane %v241, %v245
      %v248 = vadd.f32 %v235, %v246
      %v249 = vadd.f32 %v236, %v246
      %v250 = vadd.f32 %v237, %v246
      %v251 = vadd.f32 %v238, %v246
      %v252 = vadd.f32 %v239, %v246
      %v253 = vadd.f32 %v240, %v246
      %v254 = vpack.c.bf16 %v249, %v248
      %v255 = vpack.c.bf16 %v251, %v250
      %v256 = vpack.c.bf16 %v253, %v252
      %257 = vst.msk [vmem:[#allocation2] sm:$0xff] %vm148, %v254
      %258 = vst.msk [vmem:[#allocation2 + $0x8] sm:$0xff] %vm148, %v255
      %259 = vst.msk [vmem:[#allocation2 + $0x10] sm:$0xff] %vm148, %v256
      %260 = vst.msk [vmem:[#allocation3] sm:$0xff] %vm148, 0.0
      %261 = vst.msk [vmem:[#allocation3 + $0x8] sm:$0xff] %vm148, 0.0
      %262 = vst.msk [vmem:[#allocation3 + $0x10] sm:$0xff] %vm148, 0.0
      %263 = vst.msk [vmem:[#allocation3 + $0x18] sm:$0xff] %vm148, 0.0
      %264 = vst.msk [vmem:[#allocation3 + $0x20] sm:$0xff] %vm148, 0.0
      %265 = vst.msk [vmem:[#allocation3 + $0x28] sm:$0xff] %vm148, 0.0
    $region69: #{lli_transformer_forward.17} parent=1 // pred_fallthru
      _
    %v266 = vld [vmem:[#allocation2] sm:$0xff]
    %v267 = vld [vmem:[#allocation2 + $0x8] sm:$0xff]
    %v268 = vld [vmem:[#allocation2 + $0x10] sm:$0xff]
    %v269 = vld [vmem:[#allocation10] sm:$0xf]
    %v270 = vld [vmem:[#allocation10 + $0x4] sm:$0xf]
    %v271 = vld [vmem:[#allocation10 + $0x8] sm:$0xf]
    %v272 = vld [vmem:[#allocation10 + $0xc] sm:$0xf]
    %v273 = vld [vmem:[#allocation12] sm:$0x1]
    %v275 = vlaneseq
    %v276 = vshrl.u32 %v275, 7
    %v277 = vsub.s32 0, %v276
    %v278 = vrot.slane %v273, %v277
    %v284 = vunpack.c.l.b16 %v269
    %v285 = vunpack.c.l.b16 %v270
    %v286 = vunpack.c.l.b16 %v271
    %v287 = vunpack.c.l.b16 %v272
    %v288 = vpack.c.b16 %v285, %v284
    %v289 = vpack.c.b16 %v287, %v286
    %vm292 = vcmask 261120
    %v294 = vsel %vm292, %v266, 0
    %v297 = vsel %vm292, %v267, 0
    %v300 = vsel %vm292, %v268, 0
    %302 = vmatprep.subr.bf16.mxu0 0
    %303 = vmatpush1.bf16.msra.mxu0 %v288
    %304 = vmatprep.subr.bf16.mxu0 0
    %305 = vmatpush1.bf16.msra.mxu0 %v289
    %306 = vmatprep.subr.bf16.mxu0 0
    %307 = vmatpush1.bf16.msra.mxu0 0
    %308 = vmatprep.subr.bf16.mxu0 0
    %309 = vmatpush1.bf16.msra.mxu0 0
    %310 = vmatprep.subr.bf16.mxu0 0
    %311 = vmatpush1.bf16.msra.mxu0 0
    %312 = vmatprep.subr.bf16.mxu0 0
    %313 = vmatpush1.bf16.msra.mxu0 0
    %314 = vmatprep.subr.bf16.mxu0 0
    %315 = vmatpush1.bf16.msra.mxu0 0
    %316 = vmatprep.subr.bf16.mxu0 0
    %317 = vmatpush1.bf16.msra.mxu0 0
    %318 = vmatprep.subr.bf16.mxu0 0
    %319 = vmatpush1.bf16.msra.mxu0 0
    %320 = vmatprep.subr.bf16.mxu0 0
    %321 = vmatpush1.bf16.msra.mxu0 0
    %322 = vmatprep.subr.bf16.mxu0 0
    %323 = vmatpush1.bf16.msra.mxu0 0
    %324 = vmatprep.subr.bf16.mxu0 0
    %325 = vmatpush1.bf16.msra.mxu0 0
    %326 = vmatprep.subr.bf16.mxu0 0
    %327 = vmatpush1.bf16.msra.mxu0 0
    %328 = vmatprep.subr.bf16.mxu0 0
    %329 = vmatpush1.bf16.msra.mxu0 0
    %330 = vmatprep.subr.bf16.mxu0 0
    %331 = vmatpush1.bf16.msra.mxu0 0
    %332 = vmatprep.subr.bf16.mxu0 0
    %333 = vmatpush1.bf16.msra.mxu0 0
    %334 = vmatprep.mubr.bf16.mxu0 0
    %335 = vmatmul.mubr.bf16.gmra.mrb[0].mxu0 %v294
    %v336 = vpop.f32.mrb[0].mxu0
    %v337 = vadd.f32 %v278, %v336
    %v338 = vpop.f32.mrb[0].mxu0
    %v339 = vpop.f32.mrb[0].mxu0
    %v340 = vadd.f32 %v278, %v339
    %v341 = vpop.f32.mrb[0].mxu0
    %342 = vmatprep.mubr.bf16.mxu0 0
    %343 = vmatmul.mubr.bf16.gmra.mrb[0].mxu0 %v297
    %v344 = vpop.f32.mrb[0].mxu0
    %v345 = vadd.f32 %v278, %v344
    %v346 = vpop.f32.mrb[0].mxu0
    %v347 = vpop.f32.mrb[0].mxu0
    %v348 = vadd.f32 %v278, %v347
    %v349 = vpop.f32.mrb[0].mxu0
    %350 = vmatprep.mubr.bf16.mxu0 0
    %351 = vmatmul.mubr.bf16.gmra.mrb[0].mxu0 %v300
    %v352 = vpop.f32.mrb[0].mxu0
    %v353 = vadd.f32 %v278, %v352
    %v354 = vpop.f32.mrb[0].mxu0
    %v355 = vpop.f32.mrb[0].mxu0
    %v356 = vadd.f32 %v278, %v355
    %v357 = vpop.f32.mrb[0].mxu0
    %358 = vdwg.mxu0
    %v359 = vmul.f32 %v337, 0.5
    %v360 = vmul.f32 %v340, 0.5
    %v361 = vmul.f32 %v345, 0.5
    %v362 = vmul.f32 %v348, 0.5
    %v363 = vmul.f32 %v353, 0.5
    %v364 = vmul.f32 %v356, 0.5
    %v365 = vmul.f32 %v337, 0.70710677
    %v366 = vmul.f32 %v340, 0.70710677
    %v367 = vmul.f32 %v345, 0.70710677
    %v368 = vmul.f32 %v348, 0.70710677
    %v369 = vmul.f32 %v353, 0.70710677
    %v370 = vmul.f32 %v356, 0.70710677
    %vm371 = vcmp.ge.f32.partialorder %v365, 0.0
    %vm372 = vcmp.ge.f32.partialorder %v366, 0.0
    %vm373 = vcmp.ge.f32.partialorder %v367, 0.0
    %vm374 = vcmp.ge.f32.partialorder %v368, 0.0
    %vm375 = vcmp.ge.f32.partialorder %v369, 0.0
    %vm376 = vcmp.ge.f32.partialorder %v370, 0.0
    %v377 = vsel %vm371, 1.0, -1.0
    %v378 = vsel %vm372, 1.0, -1.0
    %v379 = vsel %vm373, 1.0, -1.0
    %v380 = vsel %vm374, 1.0, -1.0
    %v381 = vsel %vm375, 1.0, -1.0
    %v382 = vsel %vm376, 1.0, -1.0
    %v383 = vand.u32 2147483647, %v365
    %v384 = vand.u32 2147483647, %v366
    %v385 = vand.u32 2147483647, %v367
    %v386 = vand.u32 2147483647, %v368
    %v387 = vand.u32 2147483647, %v369
    %v388 = vand.u32 2147483647, %v370
    %v389 = vmul.f32 %v383, 0.3275911
    %v390 = vmul.f32 %v384, 0.3275911
    %v391 = vmul.f32 %v385, 0.3275911
    %v392 = vmul.f32 %v386, 0.3275911
    %v393 = vmul.f32 %v387, 0.3275911
    %v394 = vmul.f32 %v388, 0.3275911
    %v395 = vadd.f32 %v389, 1.0
    %v396 = vadd.f32 %v390, 1.0
    %v397 = vadd.f32 %v391, 1.0
    %v398 = vadd.f32 %v392, 1.0
    %v399 = vadd.f32 %v393, 1.0
    %v400 = vadd.f32 %v394, 1.0
    %v401 = vrcp.pop %v395
    %v402 = vmul.f32 1.0, %v401
    %v403 = vrcp.pop %v396
    %v404 = vmul.f32 1.0, %v403
    %v405 = vrcp.pop %v397
    %v406 = vmul.f32 1.0, %v405
    %v407 = vrcp.pop %v398
    %v408 = vmul.f32 1.0, %v407
    %v409 = vrcp.pop %v399
    %v410 = vmul.f32 1.0, %v409
    %v411 = vrcp.pop %v400
    %v412 = vmul.f32 1.0, %v411
    %v413 = vmul.f32 %v402, 1.0614054
    %v414 = vmul.f32 %v404, 1.0614054
    %v415 = vmul.f32 %v406, 1.0614054
    %v416 = vmul.f32 %v408, 1.0614054
    %v417 = vmul.f32 %v410, 1.0614054
    %v418 = vmul.f32 %v412, 1.0614054
    %v419 = vadd.f32 %v413, -1.4531521
    %v420 = vadd.f32 %v414, -1.4531521
    %v421 = vadd.f32 %v415, -1.4531521
    %v422 = vadd.f32 %v416, -1.4531521
    %v423 = vadd.f32 %v417, -1.4531521
    %v424 = vadd.f32 %v418, -1.4531521
    %v425 = vmul.f32 %v419, %v402
    %v426 = vmul.f32 %v420, %v404
    %v427 = vmul.f32 %v421, %v406
    %v428 = vmul.f32 %v422, %v408
    %v429 = vmul.f32 %v423, %v410
    %v430 = vmul.f32 %v424, %v412
    %v431 = vadd.f32 %v425, 1.4214138
    %v432 = vadd.f32 %v426, 1.4214138
    %v433 = vadd.f32 %v427, 1.4214138
    %v434 = vadd.f32 %v428, 1.4214138
    %v435 = vadd.f32 %v429, 1.4214138
    %v436 = vadd.f32 %v430, 1.4214138
    %v437 = vmul.f32 %v431, %v402
    %v438 = vmul.f32 %v432, %v404
    %v439 = vmul.f32 %v433, %v406
    %v440 = vmul.f32 %v434, %v408
    %v441 = vmul.f32 %v435, %v410
    %v442 = vmul.f32 %v436, %v412
    %v443 = vadd.f32 %v437, -0.28449672
    %v444 = vadd.f32 %v438, -0.28449672
    %v445 = vadd.f32 %v439, -0.28449672
    %v446 = vadd.f32 %v440, -0.28449672
    %v447 = vadd.f32 %v441, -0.28449672
    %v448 = vadd.f32 %v442, -0.28449672
    %v449 = vmul.f32 %v443, %v402
    %v450 = vmul.f32 %v444, %v404
    %v451 = vmul.f32 %v445, %v406
    %v452 = vmul.f32 %v446, %v408
    %v453 = vmul.f32 %v447, %v410
    %v454 = vmul.f32 %v448, %v412
    %v455 = vadd.f32 %v449, 0.2548296
    %v456 = vadd.f32 %v450, 0.2548296
    %v457 = vadd.f32 %v451, 0.2548296
    %v458 = vadd.f32 %v452, 0.2548296
    %v459 = vadd.f32 %v453, 0.2548296
    %v460 = vadd.f32 %v454, 0.2548296
    %v461 = vmul.f32 %v455, %v402
    %v462 = vmul.f32 %v456, %v404
    %v463 = vmul.f32 %v457, %v406
    %v464 = vmul.f32 %v458, %v408
    %v465 = vmul.f32 %v459, %v410
    %v466 = vmul.f32 %v460, %v412
    %v467 = vsub.f32 0.0, %v383
    %v468 = vsub.f32 0.0, %v384
    %v469 = vsub.f32 0.0, %v385
    %v470 = vsub.f32 0.0, %v386
    %v471 = vsub.f32 0.0, %v387
    %v472 = vsub.f32 0.0, %v388
    %v473 = vmul.f32 %v467, %v383
    %v474 = vmul.f32 %v468, %v384
    %v475 = vmul.f32 %v469, %v385
    %v476 = vmul.f32 %v470, %v386
    %v477 = vmul.f32 %v471, %v387
    %v478 = vmul.f32 %v472, %v388
    %v479 = vmul.f32 %v473, 1.442695
    %v480 = vpow.pop %v479
    %v481 = vmul.f32 %v474, 1.442695
    %v482 = vpow.pop %v481
    %v483 = vmul.f32 %v475, 1.442695
    %v484 = vpow.pop %v483
    %v485 = vmul.f32 %v476, 1.442695
    %v486 = vpow.pop %v485
    %v487 = vmul.f32 %v477, 1.442695
    %v488 = vpow.pop %v487
    %v489 = vmul.f32 %v478, 1.442695
    %v490 = vpow.pop %v489
    %v491 = vmul.f32 %v461, %v480
    %v492 = vmul.f32 %v462, %v482
    %v493 = vmul.f32 %v463, %v484
    %v494 = vmul.f32 %v464, %v486
    %v495 = vmul.f32 %v465, %v488
    %v496 = vmul.f32 %v466, %v490
    %v497 = vsub.f32 1.0, %v491
    %v498 = vsub.f32 1.0, %v492
    %v499 = vsub.f32 1.0, %v493
    %v500 = vsub.f32 1.0, %v494
    %v501 = vsub.f32 1.0, %v495
    %v502 = vsub.f32 1.0, %v496
    %v503 = vmul.f32 %v377, %v497
    %v504 = vmul.f32 %v378, %v498
    %v505 = vmul.f32 %v379, %v499
    %v506 = vmul.f32 %v380, %v500
    %v507 = vmul.f32 %v381, %v501
    %v508 = vmul.f32 %v382, %v502
    %v509 = vadd.f32 %v503, 1.0
    %v510 = vadd.f32 %v504, 1.0
    %v511 = vadd.f32 %v505, 1.0
    %v512 = vadd.f32 %v506, 1.0
    %v513 = vadd.f32 %v507, 1.0
    %v514 = vadd.f32 %v508, 1.0
    %v515 = vmul.f32 %v359, %v509
    %v516 = vmul.f32 %v360, %v510
    %v517 = vmul.f32 %v361, %v511
    %v518 = vmul.f32 %v362, %v512
    %v519 = vmul.f32 %v363, %v513
    %v520 = vmul.f32 %v364, %v514
    %v521 = vld [vmem:[#allocation3] sm:$0xff]
    %v522 = vld [vmem:[#allocation3 + $0x8] sm:$0xff]
    %v523 = vld [vmem:[#allocation3 + $0x10] sm:$0xff]
    %v524 = vld [vmem:[#allocation3 + $0x18] sm:$0xff]
    %v525 = vld [vmem:[#allocation3 + $0x20] sm:$0xff]
    %v526 = vld [vmem:[#allocation3 + $0x28] sm:$0xff]
    %v527 = vpack.c.bf16 %v516, %v515
    %v528 = vpack.c.bf16 %v518, %v517
    %v529 = vpack.c.bf16 %v520, %v519
    %v530 = vld [vmem:[#allocation13] sm:$0xf]
    %v531 = vld [vmem:[#allocation13 + $0x4] sm:$0xf]
    %v532 = vld [vmem:[#allocation13 + $0x8] sm:$0xf]
    %v533 = vld [vmem:[#allocation13 + $0xc] sm:$0xf]
    %v534 = vld [vmem:[#allocation13 + $0x10] sm:$0xf]
    %v535 = vld [vmem:[#allocation13 + $0x14] sm:$0xf]
    %v536 = vld [vmem:[#allocation13 + $0x18] sm:$0xf]
    %v537 = vld [vmem:[#allocation13 + $0x1c] sm:$0xf]
    %v546 = vunpack.c.l.b16 %v530
    %v547 = vunpack.c.l.b16 %v531
    %v548 = vunpack.c.l.b16 %v532
    %v549 = vunpack.c.l.b16 %v533
    %v550 = vunpack.c.l.b16 %v534
    %v551 = vunpack.c.l.b16 %v535
    %v552 = vunpack.c.l.b16 %v536
    %v553 = vunpack.c.l.b16 %v537
    %v554 = vpack.c.b16 %v547, %v546
    %v555 = vpack.c.b16 %v549, %v548
    %v556 = vpack.c.b16 %v551, %v550
    %v557 = vpack.c.b16 %v553, %v552
    %vm562 = vcmask 523264
    %v564 = vsel %vm562, %v527, 0
    %v567 = vsel %vm562, %v528, 0
    %v570 = vsel %vm562, %v529, 0
    %572 = vmatprep.subr.bf16.mxu0 0
    %573 = vmatpush1.bf16.msra.mxu0 %v554
    %574 = vmatprep.subr.bf16.mxu0 0
    %575 = vmatpush1.bf16.msra.mxu0 %v555
    %576 = vmatprep.subr.bf16.mxu0 0
    %577 = vmatpush1.bf16.msra.mxu0 %v556
    %578 = vmatprep.subr.bf16.mxu0 0
    %579 = vmatpush1.bf16.msra.mxu0 %v557
    %580 = vmatprep.subr.bf16.mxu0 0
    %581 = vmatpush1.bf16.msra.mxu0 0
    %582 = vmatprep.subr.bf16.mxu0 0
    %583 = vmatpush1.bf16.msra.mxu0 0
    %584 = vmatprep.subr.bf16.mxu0 0
    %585 = vmatpush1.bf16.msra.mxu0 0
    %586 = vmatprep.subr.bf16.mxu0 0
    %587 = vmatpush1.bf16.msra.mxu0 0
    %588 = vmatprep.subr.bf16.mxu0 0
    %589 = vmatpush1.bf16.msra.mxu0 0
    %590 = vmatprep.subr.bf16.mxu0 0
    %591 = vmatpush1.bf16.msra.mxu0 0
    %592 = vmatprep.subr.bf16.mxu0 0
    %593 = vmatpush1.bf16.msra.mxu0 0
    %594 = vmatprep.subr.bf16.mxu0 0
    %595 = vmatpush1.bf16.msra.mxu0 0
    %596 = vmatprep.subr.bf16.mxu0 0
    %597 = vmatpush1.bf16.msra.mxu0 0
    %598 = vmatprep.subr.bf16.mxu0 0
    %599 = vmatpush1.bf16.msra.mxu0 0
    %600 = vmatprep.subr.bf16.mxu0 0
    %601 = vmatpush1.bf16.msra.mxu0 0
    %602 = vmatprep.subr.bf16.mxu0 0
    %603 = vmatpush1.bf16.msra.mxu0 0
    %604 = vmatprep.mubr.bf16.mxu0 0
    %605 = vmatmul.mubr.bf16.gmra.mrb[0].mxu0 %v564
    %v606 = vpop.f32.mrb[0].mxu0
    %v607 = vadd.f32 0.0, %v606
    %v608 = vpop.f32.mrb[0].mxu0
    %v609 = vpop.f32.mrb[0].mxu0
    %v610 = vadd.f32 0.0, %v609
    %v611 = vpop.f32.mrb[0].mxu0
    %612 = vmatprep.mubr.bf16.mxu0 0
    %613 = vmatmul.mubr.bf16.gmra.mrb[0].mxu0 %v567
    %v614 = vpop.f32.mrb[0].mxu0
    %v615 = vadd.f32 0.0, %v614
    %v616 = vpop.f32.mrb[0].mxu0
    %v617 = vpop.f32.mrb[0].mxu0
    %v618 = vadd.f32 0.0, %v617
    %v619 = vpop.f32.mrb[0].mxu0
    %620 = vmatprep.mubr.bf16.mxu0 0
    %621 = vmatmul.mubr.bf16.gmra.mrb[0].mxu0 %v570
    %v622 = vpop.f32.mrb[0].mxu0
    %v623 = vadd.f32 0.0, %v622
    %v624 = vpop.f32.mrb[0].mxu0
    %v625 = vpop.f32.mrb[0].mxu0
    %v626 = vadd.f32 0.0, %v625
    %v627 = vpop.f32.mrb[0].mxu0
    %628 = vdwg.mxu0
    %v629 = vadd.f32 %v521, %v607
    %v630 = vadd.f32 %v522, %v610
    %v631 = vadd.f32 %v523, %v615
    %v632 = vadd.f32 %v524, %v618
    %v633 = vadd.f32 %v525, %v623
    %v634 = vadd.f32 %v526, %v626
    %635 = vst.msk [vmem:[#allocation3] sm:$0xff] %vm292, %v629
    %636 = vst.msk [vmem:[#allocation3 + $0x8] sm:$0xff] %vm292, %v630
    %637 = vst.msk [vmem:[#allocation3 + $0x10] sm:$0xff] %vm292, %v631
    %638 = vst.msk [vmem:[#allocation3 + $0x18] sm:$0xff] %vm292, %v632
    %639 = vst.msk [vmem:[#allocation3 + $0x20] sm:$0xff] %vm292, %v633
    %640 = vst.msk [vmem:[#allocation3 + $0x28] sm:$0xff] %vm292, %v634
    // Predicated region
    $region70: #{lli_transformer_forward.17} parent=1 // pred_check
      %p641 = pneg %p132
    $region71: #{lli_transformer_forward.17} parent=1 // pred_check_branch
      %643 = sbr.rel (%p641) target = $region73
    $region72: #{lli_transformer_forward.17} parent=1 // pred_region
      %v644 = vld [vmem:[#allocation3] sm:$0xff]
      %v645 = vld [vmem:[#allocation3 + $0x8] sm:$0xff]
      %v646 = vld [vmem:[#allocation3 + $0x10] sm:$0xff]
      %v647 = vld [vmem:[#allocation3 + $0x18] sm:$0xff]
      %v648 = vld [vmem:[#allocation3 + $0x20] sm:$0xff]
      %v649 = vld [vmem:[#allocation3 + $0x28] sm:$0xff]
      %v650 = vld [vmem:[#allocation15] sm:$0x1]
      %v652 = vlaneseq
      %v653 = vshrl.u32 %v652, 7
      %v654 = vsub.s32 0, %v653
      %v655 = vrot.slane %v650, %v654
      %v657 = vadd.f32 %v644, %v655
      %v658 = vadd.f32 %v645, %v655
      %v659 = vadd.f32 %v646, %v655
      %v660 = vadd.f32 %v647, %v655
      %v661 = vadd.f32 %v648, %v655
      %v662 = vadd.f32 %v649, %v655
      %v663 = vld [vmem:[#allocation16] sm:$0xf]
      %v664 = vld [vmem:[#allocation16 + $0x4] sm:$0xf]
      %v665 = vld [vmem:[#allocation16 + $0x8] sm:$0xf]
      %v666 = vld [vmem:[#allocation16 + $0xc] sm:$0xf]
      %v667 = vld [vmem:[#allocation16 + $0x10] sm:$0xf]
      %v668 = vld [vmem:[#allocation16 + $0x14] sm:$0xf]
      %v669 = vunpack.c.l.bf16 %v663
      %v670 = vunpack.c.l.bf16 %v664
      %v671 = vunpack.c.l.bf16 %v665
      %v672 = vunpack.c.l.bf16 %v666
      %v673 = vunpack.c.l.bf16 %v667
      %v674 = vunpack.c.l.bf16 %v668
      %v675 = vadd.f32 %v657, %v669
      %v676 = vadd.f32 %v658, %v670
      %v677 = vadd.f32 %v659, %v671
      %v678 = vadd.f32 %v660, %v672
      %v679 = vadd.f32 %v661, %v673
      %v680 = vadd.f32 %v662, %v674
      %v681 = vpack.c.bf16 %v676, %v675
      %v682 = vpack.c.bf16 %v678, %v677
      %v683 = vpack.c.bf16 %v680, %v679
      %v687 = vunpack.c.l.b16 %v681
      %v688 = vunpack.c.h.b16 %v681
      %v689 = vunpack.c.l.b16 %v682
      %v690 = vunpack.c.h.b16 %v682
      %v691 = vunpack.c.l.b16 %v683
      %v692 = vunpack.c.h.b16 %v683
      %v693 = vpack.c.b16 %v687, %v687
      %v694 = vpack.c.b16 %v688, %v688
      %v695 = vpack.c.b16 %v689, %v689
      %v696 = vpack.c.b16 %v690, %v690
      %v697 = vpack.c.b16 %v691, %v691
      %v698 = vpack.c.b16 %v692, %v692
      %vm705 = vcmask 257024
      %706 = vst.msk [vmem:[#allocation18] sm:$0xf] %vm705, %v693
      %707 = vst.msk [vmem:[#allocation18 + $0x4] sm:$0xf] %vm705, %v694
      %708 = vst.msk [vmem:[#allocation18 + $0x8] sm:$0xf] %vm705, %v695
      %709 = vst.msk [vmem:[#allocation18 + $0xc] sm:$0xf] %vm705, %v696
      %710 = vst.msk [vmem:[#allocation18 + $0x10] sm:$0xf] %vm705, %v697
      %711 = vst.msk [vmem:[#allocation18 + $0x14] sm:$0xf] %vm705, %v698
    $region73: #{lli_transformer_forward.17} parent=1 // pred_fallthru
      _
    // Predicated region
    $region74: #{lli_transformer_forward.17} parent=1 // pred_check
      _
    $region75: #{lli_transformer_forward.17} parent=1 // pred_check_branch
      %713 = sbr.rel (0) target = $region77
    $region76: #{lli_transformer_forward.17} parent=1 // pred_region
      %s715 = ssub.s32 384, 384
      %716 = vsyncadd [#allocation6], %s715
      %s717 = sshll.u32 [#allocation18], 4
      %s718 = int_to_ptr.vmem [resolvable:$true] %s717
      %723 = dma.vmem_to_hbm [thread:$0]  %s718, 384, %s8, [#allocation6], 64, 64, 4
    $region77: #{lli_transformer_forward.17} parent=1 // pred_fallthru
      _
    // Predicated region
    $region78: #{lli_transformer_forward.17} parent=1 // pred_check
      _
    $region79: #{lli_transformer_forward.17} parent=1 // pred_check_branch
      %725 = sbr.rel (0) target = $region81
    $region80: #{lli_transformer_forward.17} parent=1 // pred_region
      %726 = dma.done [#allocation6], 384
    $region81: #{lli_transformer_forward.17} parent=1 // pred_fallthru
      _
    %727 = vsyncpa [#allocation5], 1
    %728 = vsyncpa [#allocation8], 1
    %729 = vsyncpa [#allocation11], 1
    %730 = vsyncpa [#allocation14], 1
    %731 = vsyncpa [#allocation17], 1
    %732 = vsyncpa [#allocation6], 1

// kernel: lli_transformer_forward.22
$region0: #{lli_transformer_forward.22}
  #allocation0 [shape = 'u32[]', space=smem, size = 0x4, offset = 0x4, fixed_abs, tag = 'smem constant byte address 0x4 - core index']
  #allocation1 [shape = 'u32[144,128]{1,0:T(1,128)}', space=vmem, size = 0x12000, scoped, tag = 'internal scratch']
  #allocation2 [shape = 'bf16[8,32]{1,0:T(8,128)(2,1)}', space=vmem, size = 0x800, scoped, tag = 'scratch operand']
  %s0 = inlined_call_operand.hbm [shape: bf16[8,32], index: 0, kind: input, shape index: {}]
  %s1 = inlined_call_operand.hbm [shape: f32[1,32], index: 1, kind: input, shape index: {}]
  %s2 = inlined_call_operand.hbm [shape: f32[1,32], index: 2, kind: input, shape index: {}]
  %s3 = inlined_call_operand.hbm [shape: bf16[32,128], index: 3, kind: input, shape index: {}]
  %s4 = inlined_call_operand.hbm [shape: f32[1,128], index: 4, kind: input, shape index: {}]
  %s5 = inlined_call_operand.hbm [shape: bf16[8,128], index: 5, kind: output, shape index: {}]
  %s6 = sld [smem:[#allocation0]]
  $region54: #{lli_transformer_forward.22} parent=0
    _
  %s8 = ssub.s32 1, %s6
  %s9 = scalar_select 0, %s8, %s6
  $region1: #{lli_transformer_forward.22} parent=0
    #allocation3 [shape = 'u8[2048]{0}', space=vmem, size = 0x800, scoped, tag = 'input window, operand 0, single buffered']
    #allocation4 [shape = 's32[1]{0}', space=sflag, size = 0x4, scoped, tag = 'scoped memory for lli_transformer_forward.22']
    #allocation5 [shape = 's32[1]{0}', space=sflag, size = 0x4, scoped, tag = 'scoped memory for lli_transformer_forward.22']
    #allocation6 [shape = 'u8[512]{0}', space=vmem, size = 0x400, scoped, tag = 'input window, operand 1, single buffered']
    #allocation7 [shape = 's32[1]{0}', space=sflag, size = 0x4, scoped, tag = 'scoped memory for lli_transformer_forward.22']
    #allocation8 [shape = 'u8[512]{0}', space=vmem, size = 0x400, scoped, tag = 'input window, operand 2, single buffered']
    #allocation9 [shape = 'u8[8192]{0}', space=vmem, size = 0x2000, scoped, tag = 'input window, operand 3, single buffered']
    #allocation10 [shape = 's32[1]{0}', space=sflag, size = 0x4, scoped, tag = 'scoped memory for lli_transformer_forward.22']
    #allocation11 [shape = 'u8[512]{0}', space=vmem, size = 0x400, scoped, tag = 'input window, operand 4, single buffered']
    #allocation12 [shape = 'u8[2048]{0}', space=vmem, size = 0x800, scoped, tag = 'output window, operand 0, single buffered']
    %10 = vsyncpa [#allocation4], 0
    %11 = vsyncpa [#allocation7], 0
    %12 = vsyncpa [#allocation10], 0
    %13 = vsyncpa [#allocation5], 0
    // Predicated region
    $region2: #{lli_transformer_forward.22} parent=1 // pred_check
      _
    $region3: #{lli_transformer_forward.22} parent=1 // pred_check_branch
      %15 = sbr.rel (0) target = $region5
    $region4: #{lli_transformer_forward.22} parent=1 // pred_region
      %s17 = ssub.s32 64, 64
      %18 = vsyncadd [#allocation4], %s17
      %s20 = sshll.u32 [#allocation3], 4
      %s21 = int_to_ptr.vmem [resolvable:$true] %s20
      %23 = dma.hbm_to_vmem [thread:$0]  %s0, 64, %s21, [#allocation4]
    $region5: #{lli_transformer_forward.22} parent=1 // pred_fallthru
      _
    // Predicated region
    $region6: #{lli_transformer_forward.22} parent=1 // pred_check
      _
    $region7: #{lli_transformer_forward.22} parent=1 // pred_check_branch
      %25 = sbr.rel (0) target = $region9
    $region8: #{lli_transformer_forward.22} parent=1 // pred_region
      %s27 = ssub.s32 16, 16
      %28 = vsyncadd [#allocation7], %s27
      %s30 = sshll.u32 [#allocation6], 4
      %s31 = int_to_ptr.vmem [resolvable:$true] %s30
      %33 = dma.hbm_to_vmem [thread:$0]  %s1, 16, %s31, [#allocation7]
    $region9: #{lli_transformer_forward.22} parent=1 // pred_fallthru
      _
    // Predicated region
    $region10: #{lli_transformer_forward.22} parent=1 // pred_check
      _
    $region11: #{lli_transformer_forward.22} parent=1 // pred_check_branch
      %35 = sbr.rel (0) target = $region13
    $region12: #{lli_transformer_forward.22} parent=1 // pred_region
      %s37 = ssub.s32 16, 16
      %38 = vsyncadd [#allocation7], %s37
      %s40 = sshll.u32 [#allocation8], 4
      %s41 = int_to_ptr.vmem [resolvable:$true] %s40
      %43 = dma.hbm_to_vmem [thread:$0]  %s2, 16, %s41, [#allocation7]
    $region13: #{lli_transformer_forward.22} parent=1 // pred_fallthru
      _
    // Predicated region
    $region14: #{lli_transformer_forward.22} parent=1 // pred_check
      _
    $region15: #{lli_transformer_forward.22} parent=1 // pred_check_branch
      %45 = sbr.rel (0) target = $region17
    $region16: #{lli_transformer_forward.22} parent=1 // pred_region
      %s47 = ssub.s32 256, 256
      %48 = vsyncadd [#allocation10], %s47
      %s49 = sshll.u32 [#allocation9], 4
      %s50 = int_to_ptr.vmem [resolvable:$true] %s49
      %55 = dma.hbm_to_vmem [thread:$0]  %s3, 256, %s50, [#allocation10], 64, 64, 4
    $region17: #{lli_transformer_forward.22} parent=1 // pred_fallthru
      _
    // Predicated region
    $region18: #{lli_transformer_forward.22} parent=1 // pred_check
      _
    $region19: #{lli_transformer_forward.22} parent=1 // pred_check_branch
      %57 = sbr.rel (0) target = $region21
    $region20: #{lli_transformer_forward.22} parent=1 // pred_region
      %s59 = ssub.s32 16, 16
      %60 = vsyncadd [#allocation10], %s59
      %s62 = sshll.u32 [#allocation11], 4
      %s63 = int_to_ptr.vmem [resolvable:$true] %s62
      %65 = dma.hbm_to_vmem [thread:$0]  %s4, 16, %s63, [#allocation10]
    $region21: #{lli_transformer_forward.22} parent=1 // pred_fallthru
      _
    // Predicated region
    $region22: #{lli_transformer_forward.22} parent=1 // pred_check
      _
    $region23: #{lli_transformer_forward.22} parent=1 // pred_check_branch
      %67 = sbr.rel (0) target = $region25
    $region24: #{lli_transformer_forward.22} parent=1 // pred_region
      %68 = dma.done [#allocation4], 64
    $region25: #{lli_transformer_forward.22} parent=1 // pred_fallthru
      _
    // Predicated region
    $region26: #{lli_transformer_forward.22} parent=1 // pred_check
      _
    $region27: #{lli_transformer_forward.22} parent=1 // pred_check_branch
      %70 = sbr.rel (0) target = $region29
    $region28: #{lli_transformer_forward.22} parent=1 // pred_region
      %71 = dma.done [#allocation7], 16
    $region29: #{lli_transformer_forward.22} parent=1 // pred_fallthru
      _
    // Predicated region
    $region30: #{lli_transformer_forward.22} parent=1 // pred_check
      _
    $region31: #{lli_transformer_forward.22} parent=1 // pred_check_branch
      %73 = sbr.rel (0) target = $region33
    $region32: #{lli_transformer_forward.22} parent=1 // pred_region
      %74 = dma.done [#allocation7], 16
    $region33: #{lli_transformer_forward.22} parent=1 // pred_fallthru
      _
    // Predicated region
    $region34: #{lli_transformer_forward.22} parent=1 // pred_check
      _
    $region35: #{lli_transformer_forward.22} parent=1 // pred_check_branch
      %76 = sbr.rel (0) target = $region37
    $region36: #{lli_transformer_forward.22} parent=1 // pred_region
      %77 = dma.done [#allocation10], 256
    $region37: #{lli_transformer_forward.22} parent=1 // pred_fallthru
      _
    // Predicated region
    $region38: #{lli_transformer_forward.22} parent=1 // pred_check
      _
    $region39: #{lli_transformer_forward.22} parent=1 // pred_check_branch
      %79 = sbr.rel (0) target = $region41
    $region40: #{lli_transformer_forward.22} parent=1 // pred_region
      %80 = dma.done [#allocation10], 16
    $region41: #{lli_transformer_forward.22} parent=1 // pred_fallthru
      _
    %p82 = scmp.eq.s32.totalorder 0, 0
    // Predicated region
    $region42: #{lli_transformer_forward.22} parent=1 // pred_check
      %p83 = pneg %p82
    $region43: #{lli_transformer_forward.22} parent=1 // pred_check_branch
      %85 = sbr.rel (%p83) target = $region45
    $region44: #{lli_transformer_forward.22} parent=1 // pred_region
      %v86 = vld [vmem:[#allocation3] sm:$0xf]
      %v87 = vunpack.c.l.bf16 %v86
      %vm88 = vcmask 261120
      %v89 = vsel %vm88, %v87, 0.0
      %90 = vadd.xlane.f32.xlu0 %v89
      %v91 = vpop.xlane.xlu0 %90
      %v92 = vrcp.pop 32.0
      %v93 = vmul.f32 %v91, %v92
      %v94 = vsub.f32 %v87, %v93
      %v95 = vmul.f32 %v94, %v94
      %v96 = vsel %vm88, %v95, 0.0
      %97 = vadd.xlane.f32.xlu0 %v96
      %v98 = vpop.xlane.xlu0 %97
      %v99 = vmul.f32 %v98, %v92
      %v100 = vadd.f32 %v99, 1e-05
      %v101 = vrsqrt.pop %v100
      %v102 = vmul.f32 %v94, %v101
      %v103 = vld [vmem:[#allocation6] sm:$0x1]
      %v105 = vlaneseq
      %v106 = vshrl.u32 %v105, 7
      %v107 = vsub.s32 0, %v106
      %v108 = vrot.slane %v103, %v107
      %v110 = vmul.f32 %v102, %v108
      %v111 = vld [vmem:[#allocation8] sm:$0x1]
      %v113 = vlaneseq
      %v114 = vshrl.u32 %v113, 7
      %v115 = vsub.s32 0, %v114
      %v116 = vrot.slane %v111, %v115
      %v118 = vadd.f32 %v110, %v116
      %v119 = vpack.c.bf16 %v118, %v118
      %vm120 = vcmask 257024
      %121 = vst.msk [vmem:[#allocation2] sm:$0xf] %vm120, %v119
    $region45: #{lli_transformer_forward.22} parent=1 // pred_fallthru
      _
    %v122 = vld [vmem:[#allocation2] sm:$0xf]
    %v123 = vld [vmem:[#allocation9] sm:$0xf]
    %v124 = vld [vmem:[#allocation9 + $0x4] sm:$0xf]
    %v125 = vld [vmem:[#allocation9 + $0x8] sm:$0xf]
    %v126 = vld [vmem:[#allocation9 + $0xc] sm:$0xf]
    %v127 = vld [vmem:[#allocation11] sm:$0x1]
    %v129 = vlaneseq
    %v130 = vshrl.u32 %v129, 7
    %v131 = vsub.s32 0, %v130
    %v132 = vrot.slane %v127, %v131
    %v138 = vunpack.c.l.b16 %v123
    %v139 = vunpack.c.l.b16 %v124
    %v140 = vunpack.c.l.b16 %v125
    %v141 = vunpack.c.l.b16 %v126
    %v142 = vpack.c.b16 %v139, %v138
    %v143 = vpack.c.b16 %v141, %v140
    %vm146 = vcmask 261120
    %v148 = vsel %vm146, %v122, 0
    %150 = vmatprep.subr.bf16.mxu0 0
    %151 = vmatpush1.bf16.msra.mxu0 %v142
    %152 = vmatprep.subr.bf16.mxu0 0
    %153 = vmatpush1.bf16.msra.mxu0 %v143
    %154 = vmatprep.subr.bf16.mxu0 0
    %155 = vmatpush1.bf16.msra.mxu0 0
    %156 = vmatprep.subr.bf16.mxu0 0
    %157 = vmatpush1.bf16.msra.mxu0 0
    %158 = vmatprep.subr.bf16.mxu0 0
    %159 = vmatpush1.bf16.msra.mxu0 0
    %160 = vmatprep.subr.bf16.mxu0 0
    %161 = vmatpush1.bf16.msra.mxu0 0
    %162 = vmatprep.subr.bf16.mxu0 0
    %163 = vmatpush1.bf16.msra.mxu0 0
    %164 = vmatprep.subr.bf16.mxu0 0
    %165 = vmatpush1.bf16.msra.mxu0 0
    %166 = vmatprep.subr.bf16.mxu0 0
    %167 = vmatpush1.bf16.msra.mxu0 0
    %168 = vmatprep.subr.bf16.mxu0 0
    %169 = vmatpush1.bf16.msra.mxu0 0
    %170 = vmatprep.subr.bf16.mxu0 0
    %171 = vmatpush1.bf16.msra.mxu0 0
    %172 = vmatprep.subr.bf16.mxu0 0
    %173 = vmatpush1.bf16.msra.mxu0 0
    %174 = vmatprep.subr.bf16.mxu0 0
    %175 = vmatpush1.bf16.msra.mxu0 0
    %176 = vmatprep.subr.bf16.mxu0 0
    %177 = vmatpush1.bf16.msra.mxu0 0
    %178 = vmatprep.subr.bf16.mxu0 0
    %179 = vmatpush1.bf16.msra.mxu0 0
    %180 = vmatprep.subr.bf16.mxu0 0
    %181 = vmatpush1.bf16.msra.mxu0 0
    %182 = vmatprep.mubr.bf16.mxu0 0
    %183 = vmatmul.mubr.bf16.gmra.mrb[0].mxu0 %v148
    %v184 = vpop.f32.mrb[0].mxu0
    %v185 = vadd.f32 %v132, %v184
    %v186 = vpop.f32.mrb[0].mxu0
    %v187 = vpop.f32.mrb[0].mxu0
    %v188 = vpop.f32.mrb[0].mxu0
    %189 = vdwg.mxu0
    %v190 = vpack.c.bf16 %v185, %v185
    %191 = vst [vmem:[#allocation12] sm:$0xf] %v190
    // Predicated region
    $region46: #{lli_transformer_forward.22} parent=1 // pred_check
      _
    $region47: #{lli_transformer_forward.22} parent=1 // pred_check_branch
      %193 = sbr.rel (0) target = $region49
    $region48: #{lli_transformer_forward.22} parent=1 // pred_region
      %s195 = ssub.s32 64, 64
      %196 = vsyncadd [#allocation5], %s195
      %s198 = sshll.u32 [#allocation12], 4
      %s199 = int_to_ptr.vmem [resolvable:$true] %s198
      %201 = dma.vmem_to_hbm [thread:$0]  %s199, 64, %s5, [#allocation5]
    $region49: #{lli_transformer_forward.22} parent=1 // pred_fallthru
      _
    // Predicated region
    $region50: #{lli_transformer_forward.22} parent=1 // pred_check
      _
    $region51: #{lli_transformer_forward.22} parent=1 // pred_check_branch
      %203 = sbr.rel (0) target = $region53
    $region52: #{lli_transformer_forward.22} parent=1 // pred_region
      %204 = dma.done [#allocation5], 64
    $region53: #{lli_transformer_forward.22} parent=1 // pred_fallthru
      _
    %205 = vsyncpa [#allocation4], 1
    %206 = vsyncpa [#allocation7], 1
    %207 = vsyncpa [#allocation10], 1
    %208 = vsyncpa [#allocation5], 1

// kernel: lli_transformer_forward.23
$region0: #{lli_transformer_forward.23}
  #allocation0 [shape = 'u32[]', space=smem, size = 0x4, offset = 0x4, fixed_abs, tag = 'smem constant byte address 0x4 - core index']
  #allocation1 [shape = 'u32[144,128]{1,0:T(1,128)}', space=vmem, size = 0x12000, scoped, tag = 'internal scratch']
  #allocation2 [shape = 'f32[8,128]{1,0:T(8,128)}', space=vmem, size = 0x1000, scoped, tag = 'scratch operand']
  %s0 = inlined_call_operand.hbm [shape: bf16[8,64], index: 0, kind: input, shape index: {}]
  %s1 = inlined_call_operand.hbm [shape: bf16[64,128], index: 1, kind: input, shape index: {}]
  %s2 = inlined_call_operand.hbm [shape: f32[1,128], index: 2, kind: input, shape index: {}]
  %s3 = inlined_call_operand.hbm [shape: f32[8,128], index: 3, kind: output, shape index: {}]
  %s4 = sld [smem:[#allocation0]]
  $region42: #{lli_transformer_forward.23} parent=0
    _
  %s6 = ssub.s32 1, %s4
  %s7 = scalar_select 0, %s6, %s4
  $region1: #{lli_transformer_forward.23} parent=0
    #allocation3 [shape = 'u8[2048]{0}', space=vmem, size = 0x800, scoped, tag = 'input window, operand 0, single buffered']
    #allocation4 [shape = 's32[1]{0}', space=sflag, size = 0x4, scoped, tag = 'scoped memory for lli_transformer_forward.23']
    #allocation5 [shape = 's32[1]{0}', space=sflag, size = 0x4, scoped, tag = 'scoped memory for lli_transformer_forward.23']
    #allocation6 [shape = 'u8[16384]{0}', space=vmem, size = 0x4000, scoped, tag = 'input window, operand 1, single buffered']
    #allocation7 [shape = 's32[1]{0}', space=sflag, size = 0x4, scoped, tag = 'scoped memory for lli_transformer_forward.23']
    #allocation8 [shape = 'u8[512]{0}', space=vmem, size = 0x400, scoped, tag = 'input window, operand 2, single buffered']
    #allocation9 [shape = 'u8[4096]{0}', space=vmem, size = 0x1000, scoped, tag = 'output window, operand 0, single buffered']
    %8 = vsyncpa [#allocation4], 0
    %9 = vsyncpa [#allocation7], 0
    %10 = vsyncpa [#allocation5], 0
    // Predicated region
    $region2: #{lli_transformer_forward.23} parent=1 // pred_check
      _
    $region3: #{lli_transformer_forward.23} parent=1 // pred_check_branch
      %12 = sbr.rel (0) target = $region5
    $region4: #{lli_transformer_forward.23} parent=1 // pred_region
      %s14 = ssub.s32 64, 64
      %15 = vsyncadd [#allocation4], %s14
      %s17 = sshll.u32 [#allocation3], 4
      %s18 = int_to_ptr.vmem [resolvable:$true] %s17
      %20 = dma.hbm_to_vmem [thread:$0]  %s0, 64, %s18, [#allocation4]
    $region5: #{lli_transformer_forward.23} parent=1 // pred_fallthru
      _
    // Predicated region
    $region6: #{lli_transformer_forward.23} parent=1 // pred_check
      _
    $region7: #{lli_transformer_forward.23} parent=1 // pred_check_branch
      %22 = sbr.rel (0) target = $region9
    $region8: #{lli_transformer_forward.23} parent=1 // pred_region
      %s24 = ssub.s32 512, 512
      %25 = vsyncadd [#allocation7], %s24
      %s26 = sshll.u32 [#allocation6], 4
      %s27 = int_to_ptr.vmem [resolvable:$true] %s26
      %32 = dma.hbm_to_vmem [thread:$0]  %s1, 512, %s27, [#allocation7], 64, 64, 4
    $region9: #{lli_transformer_forward.23} parent=1 // pred_fallthru
      _
    // Predicated region
    $region10: #{lli_transformer_forward.23} parent=1 // pred_check
      _
    $region11: #{lli_transformer_forward.23} parent=1 // pred_check_branch
      %34 = sbr.rel (0) target = $region13
    $region12: #{lli_transformer_forward.23} parent=1 // pred_region
      %s36 = ssub.s32 16, 16
      %37 = vsyncadd [#allocation7], %s36
      %s39 = sshll.u32 [#allocation8], 4
      %s40 = int_to_ptr.vmem [resolvable:$true] %s39
      %42 = dma.hbm_to_vmem [thread:$0]  %s2, 16, %s40, [#allocation7]
    $region13: #{lli_transformer_forward.23} parent=1 // pred_fallthru
      _
    // Predicated region
    $region14: #{lli_transformer_forward.23} parent=1 // pred_check
      _
    $region15: #{lli_transformer_forward.23} parent=1 // pred_check_branch
      %44 = sbr.rel (0) target = $region17
    $region16: #{lli_transformer_forward.23} parent=1 // pred_region
      %45 = dma.done [#allocation4], 64
    $region17: #{lli_transformer_forward.23} parent=1 // pred_fallthru
      _
    // Predicated region
    $region18: #{lli_transformer_forward.23} parent=1 // pred_check
      _
    $region19: #{lli_transformer_forward.23} parent=1 // pred_check_branch
      %47 = sbr.rel (0) target = $region21
    $region20: #{lli_transformer_forward.23} parent=1 // pred_region
      %48 = dma.done [#allocation7], 512
    $region21: #{lli_transformer_forward.23} parent=1 // pred_fallthru
      _
    // Predicated region
    $region22: #{lli_transformer_forward.23} parent=1 // pred_check
      _
    $region23: #{lli_transformer_forward.23} parent=1 // pred_check_branch
      %50 = sbr.rel (0) target = $region25
    $region24: #{lli_transformer_forward.23} parent=1 // pred_region
      %51 = dma.done [#allocation7], 16
    $region25: #{lli_transformer_forward.23} parent=1 // pred_fallthru
      _
    %p53 = scmp.eq.s32.totalorder 0, 0
    // Predicated region
    $region26: #{lli_transformer_forward.23} parent=1 // pred_check
      %p54 = pneg %p53
    $region27: #{lli_transformer_forward.23} parent=1 // pred_check_branch
      %56 = sbr.rel (%p54) target = $region29
    $region28: #{lli_transformer_forward.23} parent=1 // pred_region
      %57 = vst [vmem:[#allocation2] sm:$0xff] 0.0
    $region29: #{lli_transformer_forward.23} parent=1 // pred_fallthru
      _
    %v58 = vld [vmem:[#allocation2] sm:$0xff]
    %v59 = vld [vmem:[#allocation3] sm:$0xf]
    %v60 = vld [vmem:[#allocation6] sm:$0xf]
    %v61 = vld [vmem:[#allocation6 + $0x4] sm:$0xf]
    %v62 = vld [vmem:[#allocation6 + $0x8] sm:$0xf]
    %v63 = vld [vmem:[#allocation6 + $0xc] sm:$0xf]
    %v64 = vld [vmem:[#allocation6 + $0x10] sm:$0xf]
    %v65 = vld [vmem:[#allocation6 + $0x14] sm:$0xf]
    %v66 = vld [vmem:[#allocation6 + $0x18] sm:$0xf]
    %v67 = vld [vmem:[#allocation6 + $0x1c] sm:$0xf]
    %v76 = vunpack.c.l.b16 %v60
    %v77 = vunpack.c.l.b16 %v61
    %v78 = vunpack.c.l.b16 %v62
    %v79 = vunpack.c.l.b16 %v63
    %v80 = vunpack.c.l.b16 %v64
    %v81 = vunpack.c.l.b16 %v65
    %v82 = vunpack.c.l.b16 %v66
    %v83 = vunpack.c.l.b16 %v67
    %v84 = vpack.c.b16 %v77, %v76
    %v85 = vpack.c.b16 %v79, %v78
    %v86 = vpack.c.b16 %v81, %v80
    %v87 = vpack.c.b16 %v83, %v82
    %vm92 = vcmask 523264
    %v94 = vsel %vm92, %v59, 0
    %96 = vmatprep.subr.bf16.mxu0 0
    %97 = vmatpush1.bf16.msra.mxu0 %v84
    %98 = vmatprep.subr.bf16.mxu0 0
    %99 = vmatpush1.bf16.msra.mxu0 %v85
    %100 = vmatprep.subr.bf16.mxu0 0
    %101 = vmatpush1.bf16.msra.mxu0 %v86
    %102 = vmatprep.subr.bf16.mxu0 0
    %103 = vmatpush1.bf16.msra.mxu0 %v87
    %104 = vmatprep.subr.bf16.mxu0 0
    %105 = vmatpush1.bf16.msra.mxu0 0
    %106 = vmatprep.subr.bf16.mxu0 0
    %107 = vmatpush1.bf16.msra.mxu0 0
    %108 = vmatprep.subr.bf16.mxu0 0
    %109 = vmatpush1.bf16.msra.mxu0 0
    %110 = vmatprep.subr.bf16.mxu0 0
    %111 = vmatpush1.bf16.msra.mxu0 0
    %112 = vmatprep.subr.bf16.mxu0 0
    %113 = vmatpush1.bf16.msra.mxu0 0
    %114 = vmatprep.subr.bf16.mxu0 0
    %115 = vmatpush1.bf16.msra.mxu0 0
    %116 = vmatprep.subr.bf16.mxu0 0
    %117 = vmatpush1.bf16.msra.mxu0 0
    %118 = vmatprep.subr.bf16.mxu0 0
    %119 = vmatpush1.bf16.msra.mxu0 0
    %120 = vmatprep.subr.bf16.mxu0 0
    %121 = vmatpush1.bf16.msra.mxu0 0
    %122 = vmatprep.subr.bf16.mxu0 0
    %123 = vmatpush1.bf16.msra.mxu0 0
    %124 = vmatprep.subr.bf16.mxu0 0
    %125 = vmatpush1.bf16.msra.mxu0 0
    %126 = vmatprep.subr.bf16.mxu0 0
    %127 = vmatpush1.bf16.msra.mxu0 0
    %128 = vmatprep.mubr.bf16.mxu0 0
    %129 = vmatmul.mubr.bf16.gmra.mrb[0].mxu0 %v94
    %v130 = vpop.f32.mrb[0].mxu0
    %v131 = vadd.f32 0.0, %v130
    %v132 = vpop.f32.mrb[0].mxu0
    %v133 = vpop.f32.mrb[0].mxu0
    %v134 = vpop.f32.mrb[0].mxu0
    %135 = vdwg.mxu0
    %v136 = vadd.f32 %v58, %v131
    %137 = vst [vmem:[#allocation2] sm:$0xff] %v136
    // Predicated region
    $region30: #{lli_transformer_forward.23} parent=1 // pred_check
      %p138 = pneg %p53
    $region31: #{lli_transformer_forward.23} parent=1 // pred_check_branch
      %140 = sbr.rel (%p138) target = $region33
    $region32: #{lli_transformer_forward.23} parent=1 // pred_region
      %v141 = vld [vmem:[#allocation2] sm:$0xff]
      %v142 = vld [vmem:[#allocation8] sm:$0x1]
      %v144 = vlaneseq
      %v145 = vshrl.u32 %v144, 7
      %v146 = vsub.s32 0, %v145
      %v147 = vrot.slane %v142, %v146
      %v149 = vadd.f32 %v141, %v147
      %150 = vst [vmem:[#allocation9] sm:$0xff] %v149
    $region33: #{lli_transformer_forward.23} parent=1 // pred_fallthru
      _
    // Predicated region
    $region34: #{lli_transformer_forward.23} parent=1 // pred_check
      _
    $region35: #{lli_transformer_forward.23} parent=1 // pred_check_branch
      %152 = sbr.rel (0) target = $region37
    $region36: #{lli_transformer_forward.23} parent=1 // pred_region
      %s154 = ssub.s32 128, 128
      %155 = vsyncadd [#allocation5], %s154
      %s157 = sshll.u32 [#allocation9], 4
      %s158 = int_to_ptr.vmem [resolvable:$true] %s157
      %160 = dma.vmem_to_hbm [thread:$0]  %s158, 128, %s3, [#allocation5]
    $region37: #{lli_transformer_forward.23} parent=1 // pred_fallthru
      _
    // Predicated region
    $region38: #{lli_transformer_forward.23} parent=1 // pred_check
      _
    $region39: #{lli_transformer_forward.23} parent=1 // pred_check_branch
      %162 = sbr.rel (0) target = $region41
    $region40: #{lli_transformer_forward.23} parent=1 // pred_region
      %163 = dma.done [#allocation5], 128
    $region41: #{lli_transformer_forward.23} parent=1 // pred_fallthru
      _
    %164 = vsyncpa [#allocation4], 1
    %165 = vsyncpa [#allocation7], 1
    %166 = vsyncpa [#allocation5], 1

</llo_original>
